<compile_context>
chip_gen: v6e
topology: v6e:2x2x1
jax: 0.10.0
libtpu: 0.0.40
codegen_flags: <defaults>
</compile_context>

<pallas_src>
import functools

import jax
import jax.numpy as jnp
from jax.experimental import pallas as pl
from jax.experimental.pallas import tpu as pltpu

BN_EPS = 1e-5
_VMEM_LIMIT_BYTES = 48 * 1024 * 1024
_HIGHEST = jax.lax.Precision.HIGHEST

_COMPILER_PARAMS = pltpu.CompilerParams(
    dimension_semantics=("parallel", "arbitrary"),
    vmem_limit_bytes=_VMEM_LIMIT_BYTES,
)


# --------------------------- BlockSpec helpers -------------------------------

def _act_spec(tn, c):
    # (1, TN, C) tile of a (B, N, C) activation tensor (channels on lanes).
    return pl.BlockSpec((1, tn, c), lambda b, j: (b, j, 0))


def _per_batch_spec(c):
    # (1, 1, C) per-batch block, resident across the point tiles (accumulator
    # for outputs / tiny per-batch constant for inputs).
    return pl.BlockSpec((1, 1, c), lambda b, j: (b, 0, 0))


def _const_spec(shape):
    # Full-array block (weights / per-channel row vectors), fetched once.
    return pl.BlockSpec(shape, lambda b, j: (0,) * len(shape))


# ------------------------------ kernel bodies --------------------------------

def _accum_stats(pre, s_ref, q_ref):
    # Single-pass BN statistics: per-channel sum and sum of squares.
    # (E[x^2]-E[x]^2 in f32; fine at these batch*point counts.)
    s_ref[0] += jnp.sum(pre, axis=0, keepdims=True)
    q_ref[0] += jnp.sum(pre * pre, axis=0, keepdims=True)


def _accum_minmax(pre, mx_ref, mn_ref):
    # Running per-batch per-channel max/min (for the affine-max trick).
    mx_ref[0] = jnp.maximum(mx_ref[0], jnp.max(pre, axis=0, keepdims=True))
    mn_ref[0] = jnp.minimum(mn_ref[0], jnp.min(pre, axis=0, keepdims=True))


def _layer1_kernel(x_ref, w1_ref, b1_ref, s_ref, q_ref):
    """Pass 1: conv1 on one point tile; accumulate bn1 stats only (no write)."""
    @pl.when(pl.program_id(1) == 0)
    def _():
        s_ref[...] = jnp.zeros_like(s_ref)
        q_ref[...] = jnp.zeros_like(q_ref)

    pre = jnp.dot(x_ref[0], w1_ref[...],
                  preferred_element_type=jnp.float32) + b1_ref[...]
    _accum_stats(pre, s_ref, q_ref)


def _layer2_kernel(x_ref, w1f_ref, sh1_ref, w2_ref, b2_ref,
                   feat_ref, s_ref, q_ref, mx_ref, mn_ref):
    """Pass 2: recompute conv1 with bn1 folded into the weights, relu, conv2.
    Write feat (pre-bn2); accumulate bn2 stats + per-batch running max/min."""
    @pl.when(pl.program_id(1) == 0)
    def _():
        s_ref[...] = jnp.zeros_like(s_ref)
        q_ref[...] = jnp.zeros_like(q_ref)
        mx_ref[...] = jnp.full_like(mx_ref, -jnp.inf)
        mn_ref[...] = jnp.full_like(mn_ref, jnp.inf)

    h1 = jnp.maximum(
        jnp.dot(x_ref[0], w1f_ref[...], preferred_element_type=jnp.float32)
        + sh1_ref[...], 0.0)
    pre = jnp.dot(h1, w2_ref[...],
                  preferred_element_type=jnp.float32) + b2_ref[...]
    feat_ref[0] = pre
    _accum_stats(pre, s_ref, q_ref)
    _accum_minmax(pre, mx_ref, mn_ref)


def _layer3_kernel(f_ref, w3_ref, gc_ref, s_ref, q_ref):
    """Pass 3: conv3 with bn2 folded into w3 and the concat eliminated
    (per-batch constant gc); accumulate bn3 stats only (no activation write)."""
    @pl.when(pl.program_id(1) == 0)
    def _():
        s_ref[...] = jnp.zeros_like(s_ref)
        q_ref[...] = jnp.zeros_like(q_ref)

    pre = jnp.dot(f_ref[0], w3_ref[...],
                  preferred_element_type=jnp.float32) + gc_ref[0]
    _accum_stats(pre, s_ref, q_ref)


def _layer4_kernel(f_ref, w3_ref, gc3_ref, w4_ref, b4_ref,
                   s_ref, q_ref, mx_ref, mn_ref):
    """Pass 4: recompute conv3 with bn2 AND bn3 folded into w3/gc3, relu,
    conv4; accumulate bn4 stats + per-batch max/min (output never hits HBM)."""
    @pl.when(pl.program_id(1) == 0)
    def _():
        s_ref[...] = jnp.zeros_like(s_ref)
        q_ref[...] = jnp.zeros_like(q_ref)
        mx_ref[...] = jnp.full_like(mx_ref, -jnp.inf)
        mn_ref[...] = jnp.full_like(mn_ref, jnp.inf)

    h3 = jnp.maximum(
        jnp.dot(f_ref[0], w3_ref[...], preferred_element_type=jnp.float32)
        + gc3_ref[0], 0.0)
    pre = jnp.dot(h3, w4_ref[...],
                  preferred_element_type=jnp.float32) + b4_ref[...]
    _accum_stats(pre, s_ref, q_ref)
    _accum_minmax(pre, mx_ref, mn_ref)


# -------------------------------- wrapper ------------------------------------

def _row_tile(n):
    # Largest legal point tile <= 1024 (amortizes per-grid-step overhead).
    for t in (1024, 512, 256, 128, 64, 32, 16, 8):
        if n % t == 0:
            return t
    return n  # whole axis is always a legal block


def _bn_scale_shift(s, q, count, gamma, beta):
    """Training-mode BN folded into one per-channel affine: y = scale*x + shift."""
    mean = s / count
    var = jnp.maximum(q / count - mean * mean, 0.0)   # biased variance
    scale = gamma * jax.lax.rsqrt(var + BN_EPS)
    return scale, beta - mean * scale


def _affine_max(scale, shift, running_max, running_min):
    # max over points of scale*x + shift from running max/min of x.
    return jnp.where(scale > 0, scale * running_max + shift,
                     scale * running_min + shift)


@functools.partial(jax.jit, static_argnames=("tile_n",))
def pcn_encoder(x_ncw, params, tile_n=None):
    """x_ncw: (B, 3, N) float32 (PyTorch NCW layout). Returns (B, feature_dim)."""
    B, c_in, N = x_ncw.shape
    assert c_in == 3
    tn = tile_n if tile_n is not None else _row_tile(N)
    assert N % tn == 0, (N, tn)
    grid = (B, N // tn)
    feature_dim = params["w4"].shape[1]
    count = jnp.float32(B * N)
    f32 = jnp.float32

    # NCW -> (B, N, C); zero-pad the 3 input channels to 8 (sublane-friendly K).
    x = jnp.transpose(x_ncw, (0, 2, 1)).astype(f32)
    x = jnp.pad(x, ((0, 0), (0, 0), (0, 8 - c_in)))
    w1 = jnp.pad(params["w1"].astype(f32), ((0, 8 - c_in), (0, 0)))
    b1 = params["b1"]
    w2, b2 = params["w2"], params["b2"]
    w3_g = params["w3"][:256]        # multiplies the broadcast global feature g
    w3_f = params["w3"][256:]        # multiplies bn2(feature)
    b3 = params["b3"]
    w4, b4 = params["w4"], params["b4"]

    # ---- pass 1: conv1; bn1 batch statistics (stats only, no act write) -----
    s1, q1 = pl.pallas_call(
        _layer1_kernel,
        grid=grid,
        in_specs=[_act_spec(tn, 8), _const_spec((8, 128)), _const_spec((1, 128))],
        out_specs=[_per_batch_spec(128), _per_batch_spec(128)],
        out_shape=(jax.ShapeDtypeStruct((B, 1, 128), f32),
                   jax.ShapeDtypeStruct((B, 1, 128), f32)),
        compiler_params=_COMPILER_PARAMS,
    )(x, w1, b1)
    sc1, sh1 = _bn_scale_shift(jnp.sum(s1, 0), jnp.sum(q1, 0), count,
                               params["g1"], params["be1"])
    # relu(bn1(x@w1 + b1)) == relu(x @ (w1*sc1) + (sc1*b1 + sh1))
    w1f = w1 * sc1
    sh1p = sc1 * b1 + sh1

    # ---- pass 2: conv1(recompute)+bn1+relu -> conv2; bn2 stats + max/min ----
    feat, s2, q2, fmx, fmn = pl.pallas_call(
        _layer2_kernel,
        grid=grid,
        in_specs=[_act_spec(tn, 8), _const_spec((8, 128)), _const_spec((1, 128)),
                  _const_spec((128, 256)), _const_spec((1, 256))],
        out_specs=[_act_spec(tn, 256)] + [_per_batch_spec(256)] * 4,
        out_shape=(jax.ShapeDtypeStruct((B, N, 256), f32),
                   jax.ShapeDtypeStruct((B, 1, 256), f32),
                   jax.ShapeDtypeStruct((B, 1, 256), f32),
                   jax.ShapeDtypeStruct((B, 1, 256), f32),
                   jax.ShapeDtypeStruct((B, 1, 256), f32)),
        compiler_params=_COMPILER_PARAMS,
    )(x, w1f, sh1p, w2, b2)
    sc2, sh2 = _bn_scale_shift(jnp.sum(s2, 0), jnp.sum(q2, 0), count,
                               params["g2"], params["be2"])

    # g = per-batch max over points of bn2(feat)  (tiny O(B*C) glue).
    g = _affine_max(sc2, sh2, fmx[:, 0, :], fmn[:, 0, :])            # (B, 256)
    # concat([g, bn2(feat)]) @ w3 + b3
    #   == feat @ (sc2^T * w3[256:]) + (g @ w3[:256] + sh2 @ w3[256:] + b3)
    w3f = sc2.reshape(256, 1) * w3_f                                 # (256, 512)
    gc = (jnp.dot(g, w3_g, precision=_HIGHEST)
          + jnp.dot(sh2, w3_f, precision=_HIGHEST) + b3)             # (B, 512)
    gc = gc.reshape(B, 1, 512)

    # ---- pass 3: conv3 (bn2 + concat folded); bn3 batch statistics ----------
    s3, q3 = pl.pallas_call(
        _layer3_kernel,
        grid=grid,
        in_specs=[_act_spec(tn, 256), _const_spec((256, 512)),
                  _per_batch_spec(512)],
        out_specs=[_per_batch_spec(512), _per_batch_spec(512)],
        out_shape=(jax.ShapeDtypeStruct((B, 1, 512), f32),
                   jax.ShapeDtypeStruct((B, 1, 512), f32)),
        compiler_params=_COMPILER_PARAMS,
    )(feat, w3f, gc)
    sc3, sh3 = _bn_scale_shift(jnp.sum(s3, 0), jnp.sum(q3, 0), count,
                               params["g3"], params["be3"])
    # relu(bn3(feat@w3f + gc)) == relu(feat @ (w3f*sc3) + (gc*sc3 + sh3))
    w3f4 = w3f * sc3
    gc3 = gc * sc3.reshape(1, 1, 512) + sh3.reshape(1, 1, 512)

    # ---- pass 4: conv3(recompute)+bn3+relu -> conv4; bn4 stats + max/min ----
    s4, q4, hmx, hmn = pl.pallas_call(
        _layer4_kernel,
        grid=grid,
        in_specs=[_act_spec(tn, 256), _const_spec((256, 512)),
                  _per_batch_spec(512), _const_spec((512, feature_dim)),
                  _const_spec((1, feature_dim))],
        out_specs=[_per_batch_spec(feature_dim)] * 4,
        out_shape=tuple(jax.ShapeDtypeStruct((B, 1, feature_dim), f32)
                        for _ in range(4)),
        compiler_params=_COMPILER_PARAMS,
    )(feat, w3f4, gc3, w4, b4)
    sc4, sh4 = _bn_scale_shift(jnp.sum(s4, 0), jnp.sum(q4, 0), count,
                               params["g4"], params["be4"])

    # out = per-batch max over points of bn4(conv4(h3))
    return _affine_max(sc4, sh4, hmx[:, 0, :], hmn[:, 0, :])         # (B, F)


# ------------------------------- reference -----------------------------------

def pcn_encoder_reference(x_ncw, params):
    """Pure-JAX f32 reference mirroring the PyTorch forward (training-mode BN)."""
    B, _, N = x_ncw.shape
    hp = jax.lax.Precision.HIGHEST
    x = jnp.transpose(x_ncw, (0, 2, 1)).reshape(B * N, 3)

    def bn(h, g, b):
        m = jnp.mean(h, axis=0, keepdims=True)
        v = jnp.mean((h - m) ** 2, axis=0, keepdims=True)
        return g * (h - m) * jax.lax.rsqrt(v + BN_EPS) + b

    h1 = jnp.maximum(bn(jnp.dot(x, params["w1"], precision=hp) + params["b1"],
                        params["g1"], params["be1"]), 0.0)
    feat = bn(jnp.dot(h1, params["w2"], precision=hp) + params["b2"],
              params["g2"], params["be2"])
    g = jnp.max(feat.reshape(B, N, 256), axis=1, keepdims=True)
    g = jnp.broadcast_to(g, (B, N, 256)).reshape(B * N, 256)
    h = jnp.concatenate([g, feat], axis=-1)
    h3 = jnp.maximum(bn(jnp.dot(h, params["w3"], precision=hp) + params["b3"],
                        params["g3"], params["be3"]), 0.0)
    h4 = bn(jnp.dot(h3, params["w4"], precision=hp) + params["b4"],
            params["g4"], params["be4"])
    f = h4.shape[-1]
    return jnp.max(h4.reshape(B, N, f), axis=1)


def init_params(key, feature_dim):
    """Deterministic synthetic parameters matching the module's shapes.

    Conv1d(ci, co, 1) weight (co, ci, 1) stored transposed as (ci, co);
    BatchNorm affine params stored as (1, co) row vectors (gamma, beta)."""
    dims = [(3, 128), (128, 256), (512, 512), (512, feature_dim)]
    params = {}
    keys = jax.random.split(key, 4 * 4)
    for i, (ci, co) in enumerate(dims, start=1):
        k_w, k_b, k_g, k_be = keys[(i - 1) * 4:(i - 1) * 4 + 4]
        params[f"w{i}"] = jax.random.normal(k_w, (ci, co), jnp.float32) * 0.1
        params[f"b{i}"] = jax.random.normal(k_b, (1, co), jnp.float32) * 0.05
        params[f"g{i}"] = 1.0 + 0.1 * jax.random.normal(k_g, (1, co), jnp.float32)
        params[f"be{i}"] = 0.1 * jax.random.normal(k_be, (1, co), jnp.float32)
    return params


if __name__ == "__main__":
    B, N, FEATURE_DIM = 2, 512, 256

    key = jax.random.PRNGKey(0)
    k_x, k_p = jax.random.split(key)
    x = jax.random.normal(k_x, (B, 3, N), jnp.float32)   # PyTorch NCW layout
    params = init_params(k_p, FEATURE_DIM)

    # tile_n=128 -> grid (B, 4): exercises the cross-tile stats / max
    # accumulators (auto-tiling picks up-to-1024-point tiles for real sizes).
    out = jax.block_until_ready(pcn_encoder(x, params, tile_n=128))
    assert out.shape == (B, FEATURE_DIM), out.shape

    ref = jax.block_until_ready(pcn_encoder_reference(x, params))
    err = float(jnp.max(jnp.abs(out - ref)))
    # Full-f32 pipeline: expected error ~1e-5; tolerance leaves margin for
    # MXU f32 contraction-pass differences vs. the HIGHEST-precision reference.
    assert jnp.allclose(out, ref, rtol=2e-2, atol=2e-2), f"max abs err {err}"
    print("KERNEL_OK")
</pallas_src>

<mosaic_0001>
module attributes {stable_mosaic.version = 11 : i64} {
  func.func @_layer1_kernel(%arg0: i32, %arg1: i32, %arg2: memref<1x128x8xf32, #tpu.memory_space<vmem>>, %arg3: memref<8x128xf32, #tpu.memory_space<vmem>>, %arg4: memref<1x128xf32, #tpu.memory_space<vmem>>, %arg5: memref<1x1x128xf32, #tpu.memory_space<vmem>>, %arg6: memref<1x1x128xf32, #tpu.memory_space<vmem>>) attributes {dimension_semantics = [#tpu.dimension_semantics<parallel>, #tpu.dimension_semantics<arbitrary>], iteration_bounds = array<i64: 2, 4>, scalar_prefetch = 0 : i64, scratch_operands = 0 : i64, tpu.core_type = #tpu.core_type<tc>, window_params = [{transform_indices = @transform_0, window_bounds = array<i64: 1, 128, 8>}, {pipeline_mode = #tpu.pipeline_mode<synchronous>, transform_indices = @transform_1, window_bounds = array<i64: 8, 128>}, {pipeline_mode = #tpu.pipeline_mode<synchronous>, transform_indices = @transform_2, window_bounds = array<i64: 1, 128>}, {transform_indices = @transform_3, window_bounds = array<i64: 1, 1, 128>}, {transform_indices = @transform_4, window_bounds = array<i64: 1, 1, 128>}]} {
    %c0_i32 = arith.constant 0 : i32
    %0 = arith.cmpi eq, %arg1, %c0_i32 : i32
    %1 = arith.extui %0 : i1 to i32
    %c0_i32_0 = arith.constant 0 : i32
    %2 = arith.cmpi ne, %1, %c0_i32_0 : i32
    scf.if %2 {
      %cst_21 = arith.constant 0.000000e+00 : f32
      %27 = vector.broadcast %cst_21 : f32 to vector<1x1x128xf32>
      %c0_22 = arith.constant 0 : index
      %c0_23 = arith.constant 0 : index
      %c0_24 = arith.constant 0 : index
      %28 = vector.load %arg5[%c0_22, %c0_23, %c0_24] : memref<1x1x128xf32, #tpu.memory_space<vmem>>, vector<1x1x128xf32>
      tpu.vector_store %arg5[%c0_22, %c0_23, %c0_24], %27 {strides = array<i32>} : memref<1x1x128xf32, #tpu.memory_space<vmem>>, vector<1x1x128xf32>,
      %cst_25 = arith.constant 0.000000e+00 : f32
      %29 = vector.broadcast %cst_25 : f32 to vector<1x1x128xf32>
      %c0_26 = arith.constant 0 : index
      %c0_27 = arith.constant 0 : index
      %c0_28 = arith.constant 0 : index
      %30 = vector.load %arg6[%c0_26, %c0_27, %c0_28] : memref<1x1x128xf32, #tpu.memory_space<vmem>>, vector<1x1x128xf32>
      tpu.vector_store %arg6[%c0_26, %c0_27, %c0_28], %29 {strides = array<i32>} : memref<1x1x128xf32, #tpu.memory_space<vmem>>, vector<1x1x128xf32>,
    } else {
    }
    %c0 = arith.constant 0 : index
    %c0_1 = arith.constant 0 : index
    %c0_2 = arith.constant 0 : index
    %3 = vector.load %arg2[%c0, %c0_1, %c0_2] : memref<1x128x8xf32, #tpu.memory_space<vmem>>, vector<1x128x8xf32>
    %4 = vector.shape_cast %3 : vector<1x128x8xf32> to vector<128x8xf32>
    %c0_3 = arith.constant 0 : index
    %c0_4 = arith.constant 0 : index
    %5 = vector.load %arg3[%c0_3, %c0_4] : memref<8x128xf32, #tpu.memory_space<vmem>>, vector<8x128xf32>
    %cst = arith.constant dense<0.000000e+00> : vector<128x128xf32>
    %6 = tpu.matmul %4, %5, %cst {dimension_numbers = #tpu.dot_dimension_numbers<[1], [0], [0], [1], [0, 0, 1, 1], [], []>} : vector<128x8xf32>, vector<8x128xf32>, vector<128x128xf32> -> vector<128x128xf32>
    %c0_5 = arith.constant 0 : index
    %c0_6 = arith.constant 0 : index
    %7 = vector.load %arg4[%c0_5, %c0_6] : memref<1x128xf32, #tpu.memory_space<vmem>>, vector<1x128xf32>
    %8 = vector.broadcast %7 : vector<1x128xf32> to vector<128x128xf32>
    %9 = arith.addf %6, %8 : vector<128x128xf32>
    %c0_7 = arith.constant 0 : index
    %c0_8 = arith.constant 0 : index
    %c0_9 = arith.constant 0 : index
    %10 = vector.load %arg5[%c0_7, %c0_8, %c0_9] : memref<1x1x128xf32, #tpu.memory_space<vmem>>, vector<1x1x128xf32>
    %11 = vector.shape_cast %10 : vector<1x1x128xf32> to vector<1x128xf32>
    %cst_10 = arith.constant dense<0.000000e+00> : vector<128xf32>
    %12 = vector.multi_reduction <add>, %9, %cst_10 [0] : vector<128x128xf32> to vector<128xf32>
    %13 = vector.shape_cast %12 : vector<128xf32> to vector<1x128xf32>
    %14 = arith.addf %11, %13 : vector<1x128xf32>
    %c0_11 = arith.constant 0 : index
    %c0_12 = arith.constant 0 : index
    %c0_13 = arith.constant 0 : index
    %15 = vector.load %arg5[%c0_11, %c0_12, %c0_13] : memref<1x1x128xf32, #tpu.memory_space<vmem>>, vector<1x1x128xf32>
    %16 = vector.shape_cast %15 : vector<1x1x128xf32> to vector<1x128xf32>
    %17 = vector.shape_cast %14 : vector<1x128xf32> to vector<1x1x128xf32>
    tpu.vector_store %arg5[%c0_11, %c0_12, %c0_13], %17 {strides = array<i32>} : memref<1x1x128xf32, #tpu.memory_space<vmem>>, vector<1x1x128xf32>,
    %c0_14 = arith.constant 0 : index
    %c0_15 = arith.constant 0 : index
    %c0_16 = arith.constant 0 : index
    %18 = vector.load %arg6[%c0_14, %c0_15, %c0_16] : memref<1x1x128xf32, #tpu.memory_space<vmem>>, vector<1x1x128xf32>
    %19 = vector.shape_cast %18 : vector<1x1x128xf32> to vector<1x128xf32>
    %20 = arith.mulf %9, %9 : vector<128x128xf32>
    %cst_17 = arith.constant dense<0.000000e+00> : vector<128xf32>
    %21 = vector.multi_reduction <add>, %20, %cst_17 [0] : vector<128x128xf32> to vector<128xf32>
    %22 = vector.shape_cast %21 : vector<128xf32> to vector<1x128xf32>
    %23 = arith.addf %19, %22 : vector<1x128xf32>
    %c0_18 = arith.constant 0 : index
    %c0_19 = arith.constant 0 : index
    %c0_20 = arith.constant 0 : index
    %24 = vector.load %arg6[%c0_18, %c0_19, %c0_20] : memref<1x1x128xf32, #tpu.memory_space<vmem>>, vector<1x1x128xf32>
    %25 = vector.shape_cast %24 : vector<1x1x128xf32> to vector<1x128xf32>
    %26 = vector.shape_cast %23 : vector<1x128xf32> to vector<1x1x128xf32>
    tpu.vector_store %arg6[%c0_18, %c0_19, %c0_20], %26 {strides = array<i32>} : memref<1x1x128xf32, #tpu.memory_space<vmem>>, vector<1x1x128xf32>,
    return
  }
  func.func @transform_0(%arg0: i32, %arg1: i32) -> (i32, i32, i32) {
    %c0_i32 = arith.constant 0 : i32
    %c0_i32_0 = arith.constant 0 : i32
    return %arg0, %arg1, %c0_i32 : i32, i32, i32
  }
  func.func @transform_1(%arg0: i32, %arg1: i32) -> (i32, i32) {
    %c0_i32 = arith.constant 0 : i32
    %c0_i32_0 = arith.constant 0 : i32
    %c0_i32_1 = arith.constant 0 : i32
    return %c0_i32, %c0_i32_0 : i32, i32
  }
  func.func @transform_2(%arg0: i32, %arg1: i32) -> (i32, i32) {
    %c0_i32 = arith.constant 0 : i32
    %c0_i32_0 = arith.constant 0 : i32
    %c0_i32_1 = arith.constant 0 : i32
    return %c0_i32, %c0_i32_0 : i32, i32
  }
  func.func @transform_3(%arg0: i32, %arg1: i32) -> (i32, i32, i32) {
    %c0_i32 = arith.constant 0 : i32
    %c0_i32_0 = arith.constant 0 : i32
    %c0_i32_1 = arith.constant 0 : i32
    return %arg0, %c0_i32, %c0_i32_0 : i32, i32, i32
  }
  func.func @transform_4(%arg0: i32, %arg1: i32) -> (i32, i32, i32) {
    %c0_i32 = arith.constant 0 : i32
    %c0_i32_0 = arith.constant 0 : i32
    %c0_i32_1 = arith.constant 0 : i32
    return %arg0, %c0_i32, %c0_i32_0 : i32, i32, i32
  }
}

module attributes {stable_mosaic.version = 11 : i64} {
  func.func @_layer2_kernel(%arg0: i32, %arg1: i32, %arg2: memref<1x128x8xf32, #tpu.memory_space<vmem>>, %arg3: memref<8x128xf32, #tpu.memory_space<vmem>>, %arg4: memref<1x128xf32, #tpu.memory_space<vmem>>, %arg5: memref<128x256xf32, #tpu.memory_space<vmem>>, %arg6: memref<1x256xf32, #tpu.memory_space<vmem>>, %arg7: memref<1x128x256xf32, #tpu.memory_space<vmem>>, %arg8: memref<1x1x256xf32, #tpu.memory_space<vmem>>, %arg9: memref<1x1x256xf32, #tpu.memory_space<vmem>>, %arg10: memref<1x1x256xf32, #tpu.memory_space<vmem>>, %arg11: memref<1x1x256xf32, #tpu.memory_space<vmem>>) attributes {dimension_semantics = [#tpu.dimension_semantics<parallel>, #tpu.dimension_semantics<arbitrary>], iteration_bounds = array<i64: 2, 4>, scalar_prefetch = 0 : i64, scratch_operands = 0 : i64, tpu.core_type = #tpu.core_type<tc>, window_params = [{transform_indices = @transform_0, window_bounds = array<i64: 1, 128, 8>}, {pipeline_mode = #tpu.pipeline_mode<synchronous>, transform_indices = @transform_1, window_bounds = array<i64: 8, 128>}, {pipeline_mode = #tpu.pipeline_mode<synchronous>, transform_indices = @transform_2, window_bounds = array<i64: 1, 128>}, {pipeline_mode = #tpu.pipeline_mode<synchronous>, transform_indices = @transform_3, window_bounds = array<i64: 128, 256>}, {pipeline_mode = #tpu.pipeline_mode<synchronous>, transform_indices = @transform_4, window_bounds = array<i64: 1, 256>}, {transform_indices = @transform_5, window_bounds = array<i64: 1, 128, 256>}, {transform_indices = @transform_6, window_bounds = array<i64: 1, 1, 256>}, {transform_indices = @transform_7, window_bounds = array<i64: 1, 1, 256>}, {transform_indices = @transform_8, window_bounds = array<i64: 1, 1, 256>}, {transform_indices = @transform_9, window_bounds = array<i64: 1, 1, 256>}]} {
    %c0_i32 = arith.constant 0 : i32
    %0 = arith.cmpi eq, %arg1, %c0_i32 : i32
    %1 = arith.extui %0 : i1 to i32
    %c0_i32_0 = arith.constant 0 : i32
    %2 = arith.cmpi ne, %1, %c0_i32_0 : i32
    scf.if %2 {
      %cst_44 = arith.constant 0.000000e+00 : f32
      %53 = vector.broadcast %cst_44 : f32 to vector<1x1x256xf32>
      %c0_45 = arith.constant 0 : index
      %c0_46 = arith.constant 0 : index
      %c0_47 = arith.constant 0 : index
      %54 = vector.load %arg8[%c0_45, %c0_46, %c0_47] : memref<1x1x256xf32, #tpu.memory_space<vmem>>, vector<1x1x256xf32>
      tpu.vector_store %arg8[%c0_45, %c0_46, %c0_47], %53 {strides = array<i32>} : memref<1x1x256xf32, #tpu.memory_space<vmem>>, vector<1x1x256xf32>,
      %cst_48 = arith.constant 0.000000e+00 : f32
      %55 = vector.broadcast %cst_48 : f32 to vector<1x1x256xf32>
      %c0_49 = arith.constant 0 : index
      %c0_50 = arith.constant 0 : index
      %c0_51 = arith.constant 0 : index
      %56 = vector.load %arg9[%c0_49, %c0_50, %c0_51] : memref<1x1x256xf32, #tpu.memory_space<vmem>>, vector<1x1x256xf32>
      tpu.vector_store %arg9[%c0_49, %c0_50, %c0_51], %55 {strides = array<i32>} : memref<1x1x256xf32, #tpu.memory_space<vmem>>, vector<1x1x256xf32>,
      %cst_52 = arith.constant 0xFF800000 : f32
      %57 = vector.broadcast %cst_52 : f32 to vector<1x1x256xf32>
      %c0_53 = arith.constant 0 : index
      %c0_54 = arith.constant 0 : index
      %c0_55 = arith.constant 0 : index
      %58 = vector.load %arg10[%c0_53, %c0_54, %c0_55] : memref<1x1x256xf32, #tpu.memory_space<vmem>>, vector<1x1x256xf32>
      tpu.vector_store %arg10[%c0_53, %c0_54, %c0_55], %57 {strides = array<i32>} : memref<1x1x256xf32, #tpu.memory_space<vmem>>, vector<1x1x256xf32>,
      %cst_56 = arith.constant 0x7F800000 : f32
      %59 = vector.broadcast %cst_56 : f32 to vector<1x1x256xf32>
      %c0_57 = arith.constant 0 : index
      %c0_58 = arith.constant 0 : index
      %c0_59 = arith.constant 0 : index
      %60 = vector.load %arg11[%c0_57, %c0_58, %c0_59] : memref<1x1x256xf32, #tpu.memory_space<vmem>>, vector<1x1x256xf32>
      tpu.vector_store %arg11[%c0_57, %c0_58, %c0_59], %59 {strides = array<i32>} : memref<1x1x256xf32, #tpu.memory_space<vmem>>, vector<1x1x256xf32>,
    } else {
    }
    %c0 = arith.constant 0 : index
    %c0_1 = arith.constant 0 : index
    %c0_2 = arith.constant 0 : index
    %3 = vector.load %arg2[%c0, %c0_1, %c0_2] : memref<1x128x8xf32, #tpu.memory_space<vmem>>, vector<1x128x8xf32>
    %4 = vector.shape_cast %3 : vector<1x128x8xf32> to vector<128x8xf32>
    %c0_3 = arith.constant 0 : index
    %c0_4 = arith.constant 0 : index
    %5 = vector.load %arg3[%c0_3, %c0_4] : memref<8x128xf32, #tpu.memory_space<vmem>>, vector<8x128xf32>
    %cst = arith.constant dense<0.000000e+00> : vector<128x128xf32>
    %6 = tpu.matmul %4, %5, %cst {dimension_numbers = #tpu.dot_dimension_numbers<[1], [0], [0], [1], [0, 0, 1, 1], [], []>} : vector<128x8xf32>, vector<8x128xf32>, vector<128x128xf32> -> vector<128x128xf32>
    %c0_5 = arith.constant 0 : index
    %c0_6 = arith.constant 0 : index
    %7 = vector.load %arg4[%c0_5, %c0_6] : memref<1x128xf32, #tpu.memory_space<vmem>>, vector<1x128xf32>
    %8 = vector.broadcast %7 : vector<1x128xf32> to vector<128x128xf32>
    %9 = arith.addf %6, %8 : vector<128x128xf32>
    %cst_7 = arith.constant 0.000000e+00 : f32
    %10 = vector.broadcast %cst_7 : f32 to vector<128x128xf32>
    %11 = arith.maximumf %9, %10 : vector<128x128xf32>
    %c0_8 = arith.constant 0 : index
    %c0_9 = arith.constant 0 : index
    %12 = vector.load %arg5[%c0_8, %c0_9] : memref<128x256xf32, #tpu.memory_space<vmem>>, vector<128x256xf32>
    %cst_10 = arith.constant dense<0.000000e+00> : vector<128x256xf32>
    %13 = tpu.matmul %11, %12, %cst_10 {dimension_numbers = #tpu.dot_dimension_numbers<[1], [0], [0], [1], [0, 0, 1, 1], [], []>} : vector<128x128xf32>, vector<128x256xf32>, vector<128x256xf32> -> vector<128x256xf32>
    %c0_11 = arith.constant 0 : index
    %c0_12 = arith.constant 0 : index
    %14 = vector.load %arg6[%c0_11, %c0_12] : memref<1x256xf32, #tpu.memory_space<vmem>>, vector<1x256xf32>
    %15 = vector.broadcast %14 : vector<1x256xf32> to vector<128x256xf32>
    %16 = arith.addf %13, %15 : vector<128x256xf32>
    %c0_13 = arith.constant 0 : index
    %c0_14 = arith.constant 0 : index
    %c0_15 = arith.constant 0 : index
    %17 = vector.load %arg7[%c0_13, %c0_14, %c0_15] : memref<1x128x256xf32, #tpu.memory_space<vmem>>, vector<1x128x256xf32>
    %18 = vector.shape_cast %17 : vector<1x128x256xf32> to vector<128x256xf32>
    %19 = vector.shape_cast %16 : vector<128x256xf32> to vector<1x128x256xf32>
    tpu.vector_store %arg7[%c0_13, %c0_14, %c0_15], %19 {strides = array<i32>} : memref<1x128x256xf32, #tpu.memory_space<vmem>>, vector<1x128x256xf32>,
    %c0_16 = arith.constant 0 : index
    %c0_17 = arith.constant 0 : index
    %c0_18 = arith.constant 0 : index
    %20 = vector.load %arg8[%c0_16, %c0_17, %c0_18] : memref<1x1x256xf32, #tpu.memory_space<vmem>>, vector<1x1x256xf32>
    %21 = vector.shape_cast %20 : vector<1x1x256xf32> to vector<1x256xf32>
    %cst_19 = arith.constant dense<0.000000e+00> : vector<256xf32>
    %22 = vector.multi_reduction <add>, %16, %cst_19 [0] : vector<128x256xf32> to vector<256xf32>
    %23 = vector.shape_cast %22 : vector<256xf32> to vector<1x256xf32>
    %24 = arith.addf %21, %23 : vector<1x256xf32>
    %c0_20 = arith.constant 0 : index
    %c0_21 = arith.constant 0 : index
    %c0_22 = arith.constant 0 : index
    %25 = vector.load %arg8[%c0_20, %c0_21, %c0_22] : memref<1x1x256xf32, #tpu.memory_space<vmem>>, vector<1x1x256xf32>
    %26 = vector.shape_cast %25 : vector<1x1x256xf32> to vector<1x256xf32>
    %27 = vector.shape_cast %24 : vector<1x256xf32> to vector<1x1x256xf32>
    tpu.vector_store %arg8[%c0_20, %c0_21, %c0_22], %27 {strides = array<i32>} : memref<1x1x256xf32, #tpu.memory_space<vmem>>, vector<1x1x256xf32>,
    %c0_23 = arith.constant 0 : index
    %c0_24 = arith.constant 0 : index
    %c0_25 = arith.constant 0 : index
    %28 = vector.load %arg9[%c0_23, %c0_24, %c0_25] : memref<1x1x256xf32, #tpu.memory_space<vmem>>, vector<1x1x256xf32>
    %29 = vector.shape_cast %28 : vector<1x1x256xf32> to vector<1x256xf32>
    %30 = arith.mulf %16, %16 : vector<128x256xf32>
    %cst_26 = arith.constant dense<0.000000e+00> : vector<256xf32>
    %31 = vector.multi_reduction <add>, %30, %cst_26 [0] : vector<128x256xf32> to vector<256xf32>
    %32 = vector.shape_cast %31 : vector<256xf32> to vector<1x256xf32>
    %33 = arith.addf %29, %32 : vector<1x256xf32>
    %c0_27 = arith.constant 0 : index
    %c0_28 = arith.constant 0 : index
    %c0_29 = arith.constant 0 : index
    %34 = vector.load %arg9[%c0_27, %c0_28, %c0_29] : memref<1x1x256xf32, #tpu.memory_space<vmem>>, vector<1x1x256xf32>
    %35 = vector.shape_cast %34 : vector<1x1x256xf32> to vector<1x256xf32>
    %36 = vector.shape_cast %33 : vector<1x256xf32> to vector<1x1x256xf32>
    tpu.vector_store %arg9[%c0_27, %c0_28, %c0_29], %36 {strides = array<i32>} : memref<1x1x256xf32, #tpu.memory_space<vmem>>, vector<1x1x256xf32>,
    %c0_30 = arith.constant 0 : index
    %c0_31 = arith.constant 0 : index
    %c0_32 = arith.constant 0 : index
    %37 = vector.load %arg10[%c0_30, %c0_31, %c0_32] : memref<1x1x256xf32, #tpu.memory_space<vmem>>, vector<1x1x256xf32>
    %38 = vector.shape_cast %37 : vector<1x1x256xf32> to vector<1x256xf32>
    %cst_33 = arith.constant dense<0xFF800000> : vector<256xf32>
    %39 = vector.multi_reduction <maximumf>, %16, %cst_33 [0] : vector<128x256xf32> to vector<256xf32>
    %40 = vector.shape_cast %39 : vector<256xf32> to vector<1x256xf32>
    %41 = arith.maximumf %38, %40 : vector<1x256xf32>
    %c0_34 = arith.constant 0 : index
    %c0_35 = arith.constant 0 : index
    %c0_36 = arith.constant 0 : index
    %42 = vector.load %arg10[%c0_34, %c0_35, %c0_36] : memref<1x1x256xf32, #tpu.memory_space<vmem>>, vector<1x1x256xf32>
    %43 = vector.shape_cast %42 : vector<1x1x256xf32> to vector<1x256xf32>
    %44 = vector.shape_cast %41 : vector<1x256xf32> to vector<1x1x256xf32>
    tpu.vector_store %arg10[%c0_34, %c0_35, %c0_36], %44 {strides = array<i32>} : memref<1x1x256xf32, #tpu.memory_space<vmem>>, vector<1x1x256xf32>,
    %c0_37 = arith.constant 0 : index
    %c0_38 = arith.constant 0 : index
    %c0_39 = arith.constant 0 : index
    %45 = vector.load %arg11[%c0_37, %c0_38, %c0_39] : memref<1x1x256xf32, #tpu.memory_space<vmem>>, vector<1x1x256xf32>
    %46 = vector.shape_cast %45 : vector<1x1x256xf32> to vector<1x256xf32>
    %cst_40 = arith.constant dense<0x7F800000> : vector<256xf32>
    %47 = vector.multi_reduction <minimumf>, %16, %cst_40 [0] : vector<128x256xf32> to vector<256xf32>
    %48 = vector.shape_cast %47 : vector<256xf32> to vector<1x256xf32>
    %49 = arith.minimumf %46, %48 : vector<1x256xf32>
    %c0_41 = arith.constant 0 : index
    %c0_42 = arith.constant 0 : index
    %c0_43 = arith.constant 0 : index
    %50 = vector.load %arg11[%c0_41, %c0_42, %c0_43] : memref<1x1x256xf32, #tpu.memory_space<vmem>>, vector<1x1x256xf32>
    %51 = vector.shape_cast %50 : vector<1x1x256xf32> to vector<1x256xf32>
    %52 = vector.shape_cast %49 : vector<1x256xf32> to vector<1x1x256xf32>
    tpu.vector_store %arg11[%c0_41, %c0_42, %c0_43], %52 {strides = array<i32>} : memref<1x1x256xf32, #tpu.memory_space<vmem>>, vector<1x1x256xf32>,
    return
  }
  func.func @transform_0(%arg0: i32, %arg1: i32) -> (i32, i32, i32) {
    %c0_i32 = arith.constant 0 : i32
    %c0_i32_0 = arith.constant 0 : i32
    return %arg0, %arg1, %c0_i32 : i32, i32, i32
  }
  func.func @transform_1(%arg0: i32, %arg1: i32) -> (i32, i32) {
    %c0_i32 = arith.constant 0 : i32
    %c0_i32_0 = arith.constant 0 : i32
    %c0_i32_1 = arith.constant 0 : i32
    return %c0_i32, %c0_i32_0 : i32, i32
  }
  func.func @transform_2(%arg0: i32, %arg1: i32) -> (i32, i32) {
    %c0_i32 = arith.constant 0 : i32
    %c0_i32_0 = arith.constant 0 : i32
    %c0_i32_1 = arith.constant 0 : i32
    return %c0_i32, %c0_i32_0 : i32, i32
  }
  func.func @transform_3(%arg0: i32, %arg1: i32) -> (i32, i32) {
    %c0_i32 = arith.constant 0 : i32
    %c0_i32_0 = arith.constant 0 : i32
    %c0_i32_1 = arith.constant 0 : i32
    return %c0_i32, %c0_i32_0 : i32, i32
  }
  func.func @transform_4(%arg0: i32, %arg1: i32) -> (i32, i32) {
    %c0_i32 = arith.constant 0 : i32
    %c0_i32_0 = arith.constant 0 : i32
    %c0_i32_1 = arith.constant 0 : i32
    return %c0_i32, %c0_i32_0 : i32, i32
  }
  func.func @transform_5(%arg0: i32, %arg1: i32) -> (i32, i32, i32) {
    %c0_i32 = arith.constant 0 : i32
    %c0_i32_0 = arith.constant 0 : i32
    return %arg0, %arg1, %c0_i32 : i32, i32, i32
  }
  func.func @transform_6(%arg0: i32, %arg1: i32) -> (i32, i32, i32) {
    %c0_i32 = arith.constant 0 : i32
    %c0_i32_0 = arith.constant 0 : i32
    %c0_i32_1 = arith.constant 0 : i32
    return %arg0, %c0_i32, %c0_i32_0 : i32, i32, i32
  }
  func.func @transform_7(%arg0: i32, %arg1: i32) -> (i32, i32, i32) {
    %c0_i32 = arith.constant 0 : i32
    %c0_i32_0 = arith.constant 0 : i32
    %c0_i32_1 = arith.constant 0 : i32
    return %arg0, %c0_i32, %c0_i32_0 : i32, i32, i32
  }
  func.func @transform_8(%arg0: i32, %arg1: i32) -> (i32, i32, i32) {
    %c0_i32 = arith.constant 0 : i32
    %c0_i32_0 = arith.constant 0 : i32
    %c0_i32_1 = arith.constant 0 : i32
    return %arg0, %c0_i32, %c0_i32_0 : i32, i32, i32
  }
  func.func @transform_9(%arg0: i32, %arg1: i32) -> (i32, i32, i32) {
    %c0_i32 = arith.constant 0 : i32
    %c0_i32_0 = arith.constant 0 : i32
    %c0_i32_1 = arith.constant 0 : i32
    return %arg0, %c0_i32, %c0_i32_0 : i32, i32, i32
  }
}

module attributes {stable_mosaic.version = 11 : i64} {
  func.func @_layer3_kernel(%arg0: i32, %arg1: i32, %arg2: memref<1x128x256xf32, #tpu.memory_space<vmem>>, %arg3: memref<256x512xf32, #tpu.memory_space<vmem>>, %arg4: memref<1x1x512xf32, #tpu.memory_space<vmem>>, %arg5: memref<1x1x512xf32, #tpu.memory_space<vmem>>, %arg6: memref<1x1x512xf32, #tpu.memory_space<vmem>>) attributes {dimension_semantics = [#tpu.dimension_semantics<parallel>, #tpu.dimension_semantics<arbitrary>], iteration_bounds = array<i64: 2, 4>, scalar_prefetch = 0 : i64, scratch_operands = 0 : i64, tpu.core_type = #tpu.core_type<tc>, window_params = [{transform_indices = @transform_0, window_bounds = array<i64: 1, 128, 256>}, {pipeline_mode = #tpu.pipeline_mode<synchronous>, transform_indices = @transform_1, window_bounds = array<i64: 256, 512>}, {transform_indices = @transform_2, window_bounds = array<i64: 1, 1, 512>}, {transform_indices = @transform_3, window_bounds = array<i64: 1, 1, 512>}, {transform_indices = @transform_4, window_bounds = array<i64: 1, 1, 512>}]} {
    %c0_i32 = arith.constant 0 : i32
    %0 = arith.cmpi eq, %arg1, %c0_i32 : i32
    %1 = arith.extui %0 : i1 to i32
    %c0_i32_0 = arith.constant 0 : i32
    %2 = arith.cmpi ne, %1, %c0_i32_0 : i32
    scf.if %2 {
      %cst_22 = arith.constant 0.000000e+00 : f32
      %28 = vector.broadcast %cst_22 : f32 to vector<1x1x512xf32>
      %c0_23 = arith.constant 0 : index
      %c0_24 = arith.constant 0 : index
      %c0_25 = arith.constant 0 : index
      %29 = vector.load %arg5[%c0_23, %c0_24, %c0_25] : memref<1x1x512xf32, #tpu.memory_space<vmem>>, vector<1x1x512xf32>
      tpu.vector_store %arg5[%c0_23, %c0_24, %c0_25], %28 {strides = array<i32>} : memref<1x1x512xf32, #tpu.memory_space<vmem>>, vector<1x1x512xf32>,
      %cst_26 = arith.constant 0.000000e+00 : f32
      %30 = vector.broadcast %cst_26 : f32 to vector<1x1x512xf32>
      %c0_27 = arith.constant 0 : index
      %c0_28 = arith.constant 0 : index
      %c0_29 = arith.constant 0 : index
      %31 = vector.load %arg6[%c0_27, %c0_28, %c0_29] : memref<1x1x512xf32, #tpu.memory_space<vmem>>, vector<1x1x512xf32>
      tpu.vector_store %arg6[%c0_27, %c0_28, %c0_29], %30 {strides = array<i32>} : memref<1x1x512xf32, #tpu.memory_space<vmem>>, vector<1x1x512xf32>,
    } else {
    }
    %c0 = arith.constant 0 : index
    %c0_1 = arith.constant 0 : index
    %c0_2 = arith.constant 0 : index
    %3 = vector.load %arg2[%c0, %c0_1, %c0_2] : memref<1x128x256xf32, #tpu.memory_space<vmem>>, vector<1x128x256xf32>
    %4 = vector.shape_cast %3 : vector<1x128x256xf32> to vector<128x256xf32>
    %c0_3 = arith.constant 0 : index
    %c0_4 = arith.constant 0 : index
    %5 = vector.load %arg3[%c0_3, %c0_4] : memref<256x512xf32, #tpu.memory_space<vmem>>, vector<256x512xf32>
    %cst = arith.constant dense<0.000000e+00> : vector<128x512xf32>
    %6 = tpu.matmul %4, %5, %cst {dimension_numbers = #tpu.dot_dimension_numbers<[1], [0], [0], [1], [0, 0, 1, 1], [], []>} : vector<128x256xf32>, vector<256x512xf32>, vector<128x512xf32> -> vector<128x512xf32>
    %c0_5 = arith.constant 0 : index
    %c0_6 = arith.constant 0 : index
    %c0_7 = arith.constant 0 : index
    %7 = vector.load %arg4[%c0_5, %c0_6, %c0_7] : memref<1x1x512xf32, #tpu.memory_space<vmem>>, vector<1x1x512xf32>
    %8 = vector.shape_cast %7 : vector<1x1x512xf32> to vector<1x512xf32>
    %9 = vector.broadcast %8 : vector<1x512xf32> to vector<128x512xf32>
    %10 = arith.addf %6, %9 : vector<128x512xf32>
    %c0_8 = arith.constant 0 : index
    %c0_9 = arith.constant 0 : index
    %c0_10 = arith.constant 0 : index
    %11 = vector.load %arg5[%c0_8, %c0_9, %c0_10] : memref<1x1x512xf32, #tpu.memory_space<vmem>>, vector<1x1x512xf32>
    %12 = vector.shape_cast %11 : vector<1x1x512xf32> to vector<1x512xf32>
    %cst_11 = arith.constant dense<0.000000e+00> : vector<512xf32>
    %13 = vector.multi_reduction <add>, %10, %cst_11 [0] : vector<128x512xf32> to vector<512xf32>
    %14 = vector.shape_cast %13 : vector<512xf32> to vector<1x512xf32>
    %15 = arith.addf %12, %14 : vector<1x512xf32>
    %c0_12 = arith.constant 0 : index
    %c0_13 = arith.constant 0 : index
    %c0_14 = arith.constant 0 : index
    %16 = vector.load %arg5[%c0_12, %c0_13, %c0_14] : memref<1x1x512xf32, #tpu.memory_space<vmem>>, vector<1x1x512xf32>
    %17 = vector.shape_cast %16 : vector<1x1x512xf32> to vector<1x512xf32>
    %18 = vector.shape_cast %15 : vector<1x512xf32> to vector<1x1x512xf32>
    tpu.vector_store %arg5[%c0_12, %c0_13, %c0_14], %18 {strides = array<i32>} : memref<1x1x512xf32, #tpu.memory_space<vmem>>, vector<1x1x512xf32>,
    %c0_15 = arith.constant 0 : index
    %c0_16 = arith.constant 0 : index
    %c0_17 = arith.constant 0 : index
    %19 = vector.load %arg6[%c0_15, %c0_16, %c0_17] : memref<1x1x512xf32, #tpu.memory_space<vmem>>, vector<1x1x512xf32>
    %20 = vector.shape_cast %19 : vector<1x1x512xf32> to vector<1x512xf32>
    %21 = arith.mulf %10, %10 : vector<128x512xf32>
    %cst_18 = arith.constant dense<0.000000e+00> : vector<512xf32>
    %22 = vector.multi_reduction <add>, %21, %cst_18 [0] : vector<128x512xf32> to vector<512xf32>
    %23 = vector.shape_cast %22 : vector<512xf32> to vector<1x512xf32>
    %24 = arith.addf %20, %23 : vector<1x512xf32>
    %c0_19 = arith.constant 0 : index
    %c0_20 = arith.constant 0 : index
    %c0_21 = arith.constant 0 : index
    %25 = vector.load %arg6[%c0_19, %c0_20, %c0_21] : memref<1x1x512xf32, #tpu.memory_space<vmem>>, vector<1x1x512xf32>
    %26 = vector.shape_cast %25 : vector<1x1x512xf32> to vector<1x512xf32>
    %27 = vector.shape_cast %24 : vector<1x512xf32> to vector<1x1x512xf32>
    tpu.vector_store %arg6[%c0_19, %c0_20, %c0_21], %27 {strides = array<i32>} : memref<1x1x512xf32, #tpu.memory_space<vmem>>, vector<1x1x512xf32>,
    return
  }
  func.func @transform_0(%arg0: i32, %arg1: i32) -> (i32, i32, i32) {
    %c0_i32 = arith.constant 0 : i32
    %c0_i32_0 = arith.constant 0 : i32
    return %arg0, %arg1, %c0_i32 : i32, i32, i32
  }
  func.func @transform_1(%arg0: i32, %arg1: i32) -> (i32, i32) {
    %c0_i32 = arith.constant 0 : i32
    %c0_i32_0 = arith.constant 0 : i32
    %c0_i32_1 = arith.constant 0 : i32
    return %c0_i32, %c0_i32_0 : i32, i32
  }
  func.func @transform_2(%arg0: i32, %arg1: i32) -> (i32, i32, i32) {
    %c0_i32 = arith.constant 0 : i32
    %c0_i32_0 = arith.constant 0 : i32
    %c0_i32_1 = arith.constant 0 : i32
    return %arg0, %c0_i32, %c0_i32_0 : i32, i32, i32
  }
  func.func @transform_3(%arg0: i32, %arg1: i32) -> (i32, i32, i32) {
    %c0_i32 = arith.constant 0 : i32
    %c0_i32_0 = arith.constant 0 : i32
    %c0_i32_1 = arith.constant 0 : i32
    return %arg0, %c0_i32, %c0_i32_0 : i32, i32, i32
  }
  func.func @transform_4(%arg0: i32, %arg1: i32) -> (i32, i32, i32) {
    %c0_i32 = arith.constant 0 : i32
    %c0_i32_0 = arith.constant 0 : i32
    %c0_i32_1 = arith.constant 0 : i32
    return %arg0, %c0_i32, %c0_i32_0 : i32, i32, i32
  }
}

module attributes {stable_mosaic.version = 11 : i64} {
  func.func @_layer4_kernel(%arg0: i32, %arg1: i32, %arg2: memref<1x128x256xf32, #tpu.memory_space<vmem>>, %arg3: memref<256x512xf32, #tpu.memory_space<vmem>>, %arg4: memref<1x1x512xf32, #tpu.memory_space<vmem>>, %arg5: memref<512x256xf32, #tpu.memory_space<vmem>>, %arg6: memref<1x256xf32, #tpu.memory_space<vmem>>, %arg7: memref<1x1x256xf32, #tpu.memory_space<vmem>>, %arg8: memref<1x1x256xf32, #tpu.memory_space<vmem>>, %arg9: memref<1x1x256xf32, #tpu.memory_space<vmem>>, %arg10: memref<1x1x256xf32, #tpu.memory_space<vmem>>) attributes {dimension_semantics = [#tpu.dimension_semantics<parallel>, #tpu.dimension_semantics<arbitrary>], iteration_bounds = array<i64: 2, 4>, scalar_prefetch = 0 : i64, scratch_operands = 0 : i64, tpu.core_type = #tpu.core_type<tc>, window_params = [{transform_indices = @transform_0, window_bounds = array<i64: 1, 128, 256>}, {pipeline_mode = #tpu.pipeline_mode<synchronous>, transform_indices = @transform_1, window_bounds = array<i64: 256, 512>}, {transform_indices = @transform_2, window_bounds = array<i64: 1, 1, 512>}, {pipeline_mode = #tpu.pipeline_mode<synchronous>, transform_indices = @transform_3, window_bounds = array<i64: 512, 256>}, {pipeline_mode = #tpu.pipeline_mode<synchronous>, transform_indices = @transform_4, window_bounds = array<i64: 1, 256>}, {transform_indices = @transform_5, window_bounds = array<i64: 1, 1, 256>}, {transform_indices = @transform_6, window_bounds = array<i64: 1, 1, 256>}, {transform_indices = @transform_7, window_bounds = array<i64: 1, 1, 256>}, {transform_indices = @transform_8, window_bounds = array<i64: 1, 1, 256>}]} {
    %c0_i32 = arith.constant 0 : i32
    %0 = arith.cmpi eq, %arg1, %c0_i32 : i32
    %1 = arith.extui %0 : i1 to i32
    %c0_i32_0 = arith.constant 0 : i32
    %2 = arith.cmpi ne, %1, %c0_i32_0 : i32
    scf.if %2 {
      %cst_42 = arith.constant 0.000000e+00 : f32
      %51 = vector.broadcast %cst_42 : f32 to vector<1x1x256xf32>
      %c0_43 = arith.constant 0 : index
      %c0_44 = arith.constant 0 : index
      %c0_45 = arith.constant 0 : index
      %52 = vector.load %arg7[%c0_43, %c0_44, %c0_45] : memref<1x1x256xf32, #tpu.memory_space<vmem>>, vector<1x1x256xf32>
      tpu.vector_store %arg7[%c0_43, %c0_44, %c0_45], %51 {strides = array<i32>} : memref<1x1x256xf32, #tpu.memory_space<vmem>>, vector<1x1x256xf32>,
      %cst_46 = arith.constant 0.000000e+00 : f32
      %53 = vector.broadcast %cst_46 : f32 to vector<1x1x256xf32>
      %c0_47 = arith.constant 0 : index
      %c0_48 = arith.constant 0 : index
      %c0_49 = arith.constant 0 : index
      %54 = vector.load %arg8[%c0_47, %c0_48, %c0_49] : memref<1x1x256xf32, #tpu.memory_space<vmem>>, vector<1x1x256xf32>
      tpu.vector_store %arg8[%c0_47, %c0_48, %c0_49], %53 {strides = array<i32>} : memref<1x1x256xf32, #tpu.memory_space<vmem>>, vector<1x1x256xf32>,
      %cst_50 = arith.constant 0xFF800000 : f32
      %55 = vector.broadcast %cst_50 : f32 to vector<1x1x256xf32>
      %c0_51 = arith.constant 0 : index
      %c0_52 = arith.constant 0 : index
      %c0_53 = arith.constant 0 : index
      %56 = vector.load %arg9[%c0_51, %c0_52, %c0_53] : memref<1x1x256xf32, #tpu.memory_space<vmem>>, vector<1x1x256xf32>
      tpu.vector_store %arg9[%c0_51, %c0_52, %c0_53], %55 {strides = array<i32>} : memref<1x1x256xf32, #tpu.memory_space<vmem>>, vector<1x1x256xf32>,
      %cst_54 = arith.constant 0x7F800000 : f32
      %57 = vector.broadcast %cst_54 : f32 to vector<1x1x256xf32>
      %c0_55 = arith.constant 0 : index
      %c0_56 = arith.constant 0 : index
      %c0_57 = arith.constant 0 : index
      %58 = vector.load %arg10[%c0_55, %c0_56, %c0_57] : memref<1x1x256xf32, #tpu.memory_space<vmem>>, vector<1x1x256xf32>
      tpu.vector_store %arg10[%c0_55, %c0_56, %c0_57], %57 {strides = array<i32>} : memref<1x1x256xf32, #tpu.memory_space<vmem>>, vector<1x1x256xf32>,
    } else {
    }
    %c0 = arith.constant 0 : index
    %c0_1 = arith.constant 0 : index
    %c0_2 = arith.constant 0 : index
    %3 = vector.load %arg2[%c0, %c0_1, %c0_2] : memref<1x128x256xf32, #tpu.memory_space<vmem>>, vector<1x128x256xf32>
    %4 = vector.shape_cast %3 : vector<1x128x256xf32> to vector<128x256xf32>
    %c0_3 = arith.constant 0 : index
    %c0_4 = arith.constant 0 : index
    %5 = vector.load %arg3[%c0_3, %c0_4] : memref<256x512xf32, #tpu.memory_space<vmem>>, vector<256x512xf32>
    %cst = arith.constant dense<0.000000e+00> : vector<128x512xf32>
    %6 = tpu.matmul %4, %5, %cst {dimension_numbers = #tpu.dot_dimension_numbers<[1], [0], [0], [1], [0, 0, 1, 1], [], []>} : vector<128x256xf32>, vector<256x512xf32>, vector<128x512xf32> -> vector<128x512xf32>
    %c0_5 = arith.constant 0 : index
    %c0_6 = arith.constant 0 : index
    %c0_7 = arith.constant 0 : index
    %7 = vector.load %arg4[%c0_5, %c0_6, %c0_7] : memref<1x1x512xf32, #tpu.memory_space<vmem>>, vector<1x1x512xf32>
    %8 = vector.shape_cast %7 : vector<1x1x512xf32> to vector<1x512xf32>
    %9 = vector.broadcast %8 : vector<1x512xf32> to vector<128x512xf32>
    %10 = arith.addf %6, %9 : vector<128x512xf32>
    %cst_8 = arith.constant 0.000000e+00 : f32
    %11 = vector.broadcast %cst_8 : f32 to vector<128x512xf32>
    %12 = arith.maximumf %10, %11 : vector<128x512xf32>
    %c0_9 = arith.constant 0 : index
    %c0_10 = arith.constant 0 : index
    %13 = vector.load %arg5[%c0_9, %c0_10] : memref<512x256xf32, #tpu.memory_space<vmem>>, vector<512x256xf32>
    %cst_11 = arith.constant dense<0.000000e+00> : vector<128x256xf32>
    %14 = tpu.matmul %12, %13, %cst_11 {dimension_numbers = #tpu.dot_dimension_numbers<[1], [0], [0], [1], [0, 0, 1, 1], [], []>} : vector<128x512xf32>, vector<512x256xf32>, vector<128x256xf32> -> vector<128x256xf32>
    %c0_12 = arith.constant 0 : index
    %c0_13 = arith.constant 0 : index
    %15 = vector.load %arg6[%c0_12, %c0_13] : memref<1x256xf32, #tpu.memory_space<vmem>>, vector<1x256xf32>
    %16 = vector.broadcast %15 : vector<1x256xf32> to vector<128x256xf32>
    %17 = arith.addf %14, %16 : vector<128x256xf32>
    %c0_14 = arith.constant 0 : index
    %c0_15 = arith.constant 0 : index
    %c0_16 = arith.constant 0 : index
    %18 = vector.load %arg7[%c0_14, %c0_15, %c0_16] : memref<1x1x256xf32, #tpu.memory_space<vmem>>, vector<1x1x256xf32>
    %19 = vector.shape_cast %18 : vector<1x1x256xf32> to vector<1x256xf32>
    %cst_17 = arith.constant dense<0.000000e+00> : vector<256xf32>
    %20 = vector.multi_reduction <add>, %17, %cst_17 [0] : vector<128x256xf32> to vector<256xf32>
    %21 = vector.shape_cast %20 : vector<256xf32> to vector<1x256xf32>
    %22 = arith.addf %19, %21 : vector<1x256xf32>
    %c0_18 = arith.constant 0 : index
    %c0_19 = arith.constant 0 : index
    %c0_20 = arith.constant 0 : index
    %23 = vector.load %arg7[%c0_18, %c0_19, %c0_20] : memref<1x1x256xf32, #tpu.memory_space<vmem>>, vector<1x1x256xf32>
    %24 = vector.shape_cast %23 : vector<1x1x256xf32> to vector<1x256xf32>
    %25 = vector.shape_cast %22 : vector<1x256xf32> to vector<1x1x256xf32>
    tpu.vector_store %arg7[%c0_18, %c0_19, %c0_20], %25 {strides = array<i32>} : memref<1x1x256xf32, #tpu.memory_space<vmem>>, vector<1x1x256xf32>,
    %c0_21 = arith.constant 0 : index
    %c0_22 = arith.constant 0 : index
    %c0_23 = arith.constant 0 : index
    %26 = vector.load %arg8[%c0_21, %c0_22, %c0_23] : memref<1x1x256xf32, #tpu.memory_space<vmem>>, vector<1x1x256xf32>
    %27 = vector.shape_cast %26 : vector<1x1x256xf32> to vector<1x256xf32>
    %28 = arith.mulf %17, %17 : vector<128x256xf32>
    %cst_24 = arith.constant dense<0.000000e+00> : vector<256xf32>
    %29 = vector.multi_reduction <add>, %28, %cst_24 [0] : vector<128x256xf32> to vector<256xf32>
    %30 = vector.shape_cast %29 : vector<256xf32> to vector<1x256xf32>
    %31 = arith.addf %27, %30 : vector<1x256xf32>
    %c0_25 = arith.constant 0 : index
    %c0_26 = arith.constant 0 : index
    %c0_27 = arith.constant 0 : index
    %32 = vector.load %arg8[%c0_25, %c0_26, %c0_27] : memref<1x1x256xf32, #tpu.memory_space<vmem>>, vector<1x1x256xf32>
    %33 = vector.shape_cast %32 : vector<1x1x256xf32> to vector<1x256xf32>
    %34 = vector.shape_cast %31 : vector<1x256xf32> to vector<1x1x256xf32>
    tpu.vector_store %arg8[%c0_25, %c0_26, %c0_27], %34 {strides = array<i32>} : memref<1x1x256xf32, #tpu.memory_space<vmem>>, vector<1x1x256xf32>,
    %c0_28 = arith.constant 0 : index
    %c0_29 = arith.constant 0 : index
    %c0_30 = arith.constant 0 : index
    %35 = vector.load %arg9[%c0_28, %c0_29, %c0_30] : memref<1x1x256xf32, #tpu.memory_space<vmem>>, vector<1x1x256xf32>
    %36 = vector.shape_cast %35 : vector<1x1x256xf32> to vector<1x256xf32>
    %cst_31 = arith.constant dense<0xFF800000> : vector<256xf32>
    %37 = vector.multi_reduction <maximumf>, %17, %cst_31 [0] : vector<128x256xf32> to vector<256xf32>
    %38 = vector.shape_cast %37 : vector<256xf32> to vector<1x256xf32>
    %39 = arith.maximumf %36, %38 : vector<1x256xf32>
    %c0_32 = arith.constant 0 : index
    %c0_33 = arith.constant 0 : index
    %c0_34 = arith.constant 0 : index
    %40 = vector.load %arg9[%c0_32, %c0_33, %c0_34] : memref<1x1x256xf32, #tpu.memory_space<vmem>>, vector<1x1x256xf32>
    %41 = vector.shape_cast %40 : vector<1x1x256xf32> to vector<1x256xf32>
    %42 = vector.shape_cast %39 : vector<1x256xf32> to vector<1x1x256xf32>
    tpu.vector_store %arg9[%c0_32, %c0_33, %c0_34], %42 {strides = array<i32>} : memref<1x1x256xf32, #tpu.memory_space<vmem>>, vector<1x1x256xf32>,
    %c0_35 = arith.constant 0 : index
    %c0_36 = arith.constant 0 : index
    %c0_37 = arith.constant 0 : index
    %43 = vector.load %arg10[%c0_35, %c0_36, %c0_37] : memref<1x1x256xf32, #tpu.memory_space<vmem>>, vector<1x1x256xf32>
    %44 = vector.shape_cast %43 : vector<1x1x256xf32> to vector<1x256xf32>
    %cst_38 = arith.constant dense<0x7F800000> : vector<256xf32>
    %45 = vector.multi_reduction <minimumf>, %17, %cst_38 [0] : vector<128x256xf32> to vector<256xf32>
    %46 = vector.shape_cast %45 : vector<256xf32> to vector<1x256xf32>
    %47 = arith.minimumf %44, %46 : vector<1x256xf32>
    %c0_39 = arith.constant 0 : index
    %c0_40 = arith.constant 0 : index
    %c0_41 = arith.constant 0 : index
    %48 = vector.load %arg10[%c0_39, %c0_40, %c0_41] : memref<1x1x256xf32, #tpu.memory_space<vmem>>, vector<1x1x256xf32>
    %49 = vector.shape_cast %48 : vector<1x1x256xf32> to vector<1x256xf32>
    %50 = vector.shape_cast %47 : vector<1x256xf32> to vector<1x1x256xf32>
    tpu.vector_store %arg10[%c0_39, %c0_40, %c0_41], %50 {strides = array<i32>} : memref<1x1x256xf32, #tpu.memory_space<vmem>>, vector<1x1x256xf32>,
    return
  }
  func.func @transform_0(%arg0: i32, %arg1: i32) -> (i32, i32, i32) {
    %c0_i32 = arith.constant 0 : i32
    %c0_i32_0 = arith.constant 0 : i32
    return %arg0, %arg1, %c0_i32 : i32, i32, i32
  }
  func.func @transform_1(%arg0: i32, %arg1: i32) -> (i32, i32) {
    %c0_i32 = arith.constant 0 : i32
    %c0_i32_0 = arith.constant 0 : i32
    %c0_i32_1 = arith.constant 0 : i32
    return %c0_i32, %c0_i32_0 : i32, i32
  }
  func.func @transform_2(%arg0: i32, %arg1: i32) -> (i32, i32, i32) {
    %c0_i32 = arith.constant 0 : i32
    %c0_i32_0 = arith.constant 0 : i32
    %c0_i32_1 = arith.constant 0 : i32
    return %arg0, %c0_i32, %c0_i32_0 : i32, i32, i32
  }
  func.func @transform_3(%arg0: i32, %arg1: i32) -> (i32, i32) {
    %c0_i32 = arith.constant 0 : i32
    %c0_i32_0 = arith.constant 0 : i32
    %c0_i32_1 = arith.constant 0 : i32
    return %c0_i32, %c0_i32_0 : i32, i32
  }
  func.func @transform_4(%arg0: i32, %arg1: i32) -> (i32, i32) {
    %c0_i32 = arith.constant 0 : i32
    %c0_i32_0 = arith.constant 0 : i32
    %c0_i32_1 = arith.constant 0 : i32
    return %c0_i32, %c0_i32_0 : i32, i32
  }
  func.func @transform_5(%arg0: i32, %arg1: i32) -> (i32, i32, i32) {
    %c0_i32 = arith.constant 0 : i32
    %c0_i32_0 = arith.constant 0 : i32
    %c0_i32_1 = arith.constant 0 : i32
    return %arg0, %c0_i32, %c0_i32_0 : i32, i32, i32
  }
  func.func @transform_6(%arg0: i32, %arg1: i32) -> (i32, i32, i32) {
    %c0_i32 = arith.constant 0 : i32
    %c0_i32_0 = arith.constant 0 : i32
    %c0_i32_1 = arith.constant 0 : i32
    return %arg0, %c0_i32, %c0_i32_0 : i32, i32, i32
  }
  func.func @transform_7(%arg0: i32, %arg1: i32) -> (i32, i32, i32) {
    %c0_i32 = arith.constant 0 : i32
    %c0_i32_0 = arith.constant 0 : i32
    %c0_i32_1 = arith.constant 0 : i32
    return %arg0, %c0_i32, %c0_i32_0 : i32, i32, i32
  }
  func.func @transform_8(%arg0: i32, %arg1: i32) -> (i32, i32, i32) {
    %c0_i32 = arith.constant 0 : i32
    %c0_i32_0 = arith.constant 0 : i32
    %c0_i32_1 = arith.constant 0 : i32
    return %arg0, %c0_i32, %c0_i32_0 : i32, i32, i32
  }
}

</mosaic_0001>

<llo_original>
// kernel: pcn_encoder.4
$region0: #{pcn_encoder.4}
  #allocation0 [shape = 'u32[]', space=smem, size = 0x4, offset = 0x4, fixed_abs, tag = 'smem constant byte address 0x4 - core index']
  #allocation1 [shape = 'u32[144,128]{1,0:T(1,128)}', space=vmem, size = 0x12000, scoped, tag = 'internal scratch']
  %s0 = inlined_call_operand.vmem [shape: f32[2,512,8], index: 0, kind: input, shape index: {}]
  %s1 = inlined_call_operand.vmem [shape: f32[8,128], index: 1, kind: input, shape index: {}]
  %s2 = inlined_call_operand.vmem [shape: f32[1,128], index: 2, kind: input, shape index: {}]
  %s3 = inlined_call_operand.vmem [shape: f32[2,1,128], index: 3, kind: output, shape index: {0}]
  %s4 = inlined_call_operand.vmem [shape: f32[2,1,128], index: 4, kind: output, shape index: {1}]
  %5 = xla_tuple %s3, %s4
  %s6 = sld [smem:[#allocation0]]
  $region57: #{pcn_encoder.4} parent=0
    _
  %s8 = ssub.s32 1, %s6
  %s9 = scalar_select 0, %s8, %s6
  loop: start=0, step=1, limit=10
  $region2: #{pcn_encoder.4} parent=0 // loop_pre_header
    _
  $region3: #{pcn_encoder.4} parent=0 // loop_header
    %s11 = sphi 0, %s15
    %p12 = scmp.ge.s32.totalorder %s11, 10
    %s18 = sphi 0, %s30
    %s19 = sphi 0, %s26
    %s20 = sphi 0, %s18
    %s21 = sphi 0, %s19
    %s22 = sphi 0, %s20
    %s23 = sphi 0, %s21
    %s35 = sphi 0, %s37
    %s38 = sphi 0, %s35
    %s39 = sphi 0, %s38
    %s55 = sphi 0, %s39
    %s59 = sphi 0, %s59
    %s61 = sphi 0, %s59
    %s62 = sphi 0, %s61
    %s76 = sphi 0, %s62
    %s80 = sphi 0, %s80
    %s82 = sphi 0, %s80
    %s83 = sphi 0, %s82
    %s97 = sphi 0, %s83
    %s103 = sphi 0, %s105
    %s106 = sphi 0, %s103
    %s107 = sphi 0, %s106
    %s123 = sphi 0, %s107
    %s129 = sphi 0, %s131
    %s132 = sphi 0, %s129
    %s133 = sphi 0, %s132
    %s149 = sphi 0, %s133
  $region4: #{pcn_encoder.4} parent=0 // loop_header_branch
    %14 = sbr.rel (%p12) target = $region8
  $region5: #{pcn_encoder.4} parent=0 // loop_body
    %s16 = ssub.s32 %s11, 1
    %s17 = ssub.s32 %s11, 2
    %s24 = sadd.s32 1, %s19
    %p25 = scmp.ge.s32.totalorder %s24, 4
    %s26 = scalar_select %p25, 0, %s24
    %s27 = sadd.s32 1, %s18
    %s28 = scalar_select %p25, %s27, %s18
    %p29 = scmp.ge.s32.totalorder %s28, 2
    %s30 = scalar_select %p29, 0, %s28
    %s31 = ssub.s32 %s18, %s30
    %s32 = ssub.s32 %s19, %s26
    %s33 = sor.u32 %s31, %s32
    %p34 = scmp.eq.s32.totalorder %s33, 0
    %s36 = sadd.s32 %s35, 1
    %s37 = scalar_select %p34, %s35, %s36
    %p40 = pneg %p34
    %p41 = scmp.eq.s32.totalorder %s11, 7
    %p42 = por %p40, %p41
    %p43 = scmp.ne.s32.totalorder %s35, %s38
    %p44 = scmp.eq.s32.totalorder %s11, 0
    %p45 = por %p43, %p44
    %p46 = scmp.ne.s32.totalorder %s35, %s38
    %p47 = scmp.eq.s32.totalorder %s16, 7
    %p48 = por %p46, %p47
    %p49 = scmp.ne.s32.totalorder %s38, %s39
    %p50 = scmp.eq.s32.totalorder %s16, 0
    %p51 = por %p49, %p50
    %p52 = scmp.ne.s32.totalorder %s38, %s39
    %p53 = scmp.eq.s32.totalorder %s17, 7
    %p54 = por %p52, %p53
    %p56 = scmp.ne.s32.totalorder %s39, %s55
    %p57 = scmp.eq.s32.totalorder %s17, 0
    %p58 = por %p56, %p57
    %s60 = sadd.s32 %s59, 1
    %p63 = scmp.eq.s32.totalorder %s11, 7
    %p64 = scmp.ne.s32.totalorder %s59, %s61
    %p65 = scmp.eq.s32.totalorder %s11, 0
    %p66 = por %p64, %p65
    %p67 = scmp.ne.s32.totalorder %s59, %s61
    %p68 = scmp.eq.s32.totalorder %s16, 7
    %p69 = por %p67, %p68
    %p70 = scmp.ne.s32.totalorder %s61, %s62
    %p71 = scmp.eq.s32.totalorder %s16, 0
    %p72 = por %p70, %p71
    %p73 = scmp.ne.s32.totalorder %s61, %s62
    %p74 = scmp.eq.s32.totalorder %s17, 7
    %p75 = por %p73, %p74
    %p77 = scmp.ne.s32.totalorder %s62, %s76
    %p78 = scmp.eq.s32.totalorder %s17, 0
    %p79 = por %p77, %p78
    %s81 = sadd.s32 %s80, 1
    %p84 = scmp.eq.s32.totalorder %s11, 7
    %p85 = scmp.ne.s32.totalorder %s80, %s82
    %p86 = scmp.eq.s32.totalorder %s11, 0
    %p87 = por %p85, %p86
    %p88 = scmp.ne.s32.totalorder %s80, %s82
    %p89 = scmp.eq.s32.totalorder %s16, 7
    %p90 = por %p88, %p89
    %p91 = scmp.ne.s32.totalorder %s82, %s83
    %p92 = scmp.eq.s32.totalorder %s16, 0
    %p93 = por %p91, %p92
    %p94 = scmp.ne.s32.totalorder %s82, %s83
    %p95 = scmp.eq.s32.totalorder %s17, 7
    %p96 = por %p94, %p95
    %p98 = scmp.ne.s32.totalorder %s83, %s97
    %p99 = scmp.eq.s32.totalorder %s17, 0
    %p100 = por %p98, %p99
    %s101 = ssub.s32 %s18, %s30
    %p102 = scmp.eq.s32.totalorder %s101, 0
    %s104 = sadd.s32 %s103, 1
    %s105 = scalar_select %p102, %s103, %s104
    %p108 = pneg %p102
    %p109 = scmp.eq.s32.totalorder %s11, 7
    %p110 = por %p108, %p109
    %p111 = scmp.ne.s32.totalorder %s103, %s106
    %p112 = scmp.eq.s32.totalorder %s11, 0
    %p113 = por %p111, %p112
    %p114 = scmp.ne.s32.totalorder %s103, %s106
    %p115 = scmp.eq.s32.totalorder %s16, 7
    %p116 = por %p114, %p115
    %p117 = scmp.ne.s32.totalorder %s106, %s107
    %p118 = scmp.eq.s32.totalorder %s16, 0
    %p119 = por %p117, %p118
    %p120 = scmp.ne.s32.totalorder %s106, %s107
    %p121 = scmp.eq.s32.totalorder %s17, 7
    %p122 = por %p120, %p121
    %p124 = scmp.ne.s32.totalorder %s107, %s123
    %p125 = scmp.eq.s32.totalorder %s17, 0
    %p126 = por %p124, %p125
    %s127 = ssub.s32 %s18, %s30
    %p128 = scmp.eq.s32.totalorder %s127, 0
    %s130 = sadd.s32 %s129, 1
    %s131 = scalar_select %p128, %s129, %s130
    %p134 = pneg %p128
    %p135 = scmp.eq.s32.totalorder %s11, 7
    %p136 = por %p134, %p135
    %p137 = scmp.ne.s32.totalorder %s129, %s132
    %p138 = scmp.eq.s32.totalorder %s11, 0
    %p139 = por %p137, %p138
    %p140 = scmp.ne.s32.totalorder %s129, %s132
    %p141 = scmp.eq.s32.totalorder %s16, 7
    %p142 = por %p140, %p141
    %p143 = scmp.ne.s32.totalorder %s132, %s133
    %p144 = scmp.eq.s32.totalorder %s16, 0
    %p145 = por %p143, %p144
    %p146 = scmp.ne.s32.totalorder %s132, %s133
    %p147 = scmp.eq.s32.totalorder %s17, 7
    %p148 = por %p146, %p147
    %p150 = scmp.ne.s32.totalorder %s133, %s149
    %p151 = scmp.eq.s32.totalorder %s17, 0
    %p152 = por %p150, %p151
    %p153 = scmp.le.s32.totalorder 1, %s11
    %p154 = scmp.lt.s32.totalorder %s11, 9
    %p155 = pnand %p153, %p154
    %p156 = pneg %p155
    // Predicated region
    $region9: #{pcn_encoder.4} parent=5 // pred_check
      _
    $region10: #{pcn_encoder.4} parent=5 // pred_check_branch
      %158 = sbr.rel (%p155) target = $region12
    $region11: #{pcn_encoder.4} parent=5 // pred_region
      %s159 = ssub.s32 %s11, 1
      // Predicated region
      $region13: #{pcn_encoder.4} parent=11 // pred_check
        %p160 = pneg %p72
      $region14: #{pcn_encoder.4} parent=11 // pred_check_branch
        %162 = sbr.rel (%p160) target = $region16
      $region15: #{pcn_encoder.4} parent=11 // pred_region
        _
      $region16: #{pcn_encoder.4} parent=11 // pred_fallthru
        _
      // Predicated region
      $region17: #{pcn_encoder.4} parent=11 // pred_check
        %p163 = pneg %p93
      $region18: #{pcn_encoder.4} parent=11 // pred_check_branch
        %165 = sbr.rel (%p163) target = $region20
      $region19: #{pcn_encoder.4} parent=11 // pred_region
        _
      $region20: #{pcn_encoder.4} parent=11 // pred_fallthru
        _
    $region12: #{pcn_encoder.4} parent=5 // pred_fallthru
      _
    %p166 = scmp.lt.s32.totalorder %s11, 8
    // Predicated region
    $region21: #{pcn_encoder.4} parent=5 // pred_check
      %p167 = pneg %p166
    $region22: #{pcn_encoder.4} parent=5 // pred_check_branch
      %169 = sbr.rel (%p167) target = $region24
    $region23: #{pcn_encoder.4} parent=5 // pred_region
      // Predicated region
      $region25: #{pcn_encoder.4} parent=23 // pred_check
        %p170 = pneg %p45
      $region26: #{pcn_encoder.4} parent=23 // pred_check_branch
        %172 = sbr.rel (%p170) target = $region28
      $region27: #{pcn_encoder.4} parent=23 // pred_region
        %s173 = smul.u32 16, %s19
        %p174 = scmp.lt.s32.totalorder %s18, 1
        %s175 = scalar_select %p174, %s18, 1
        %p176 = scmp.lt.s32.totalorder %s173, 63
        %s177 = scalar_select %p176, %s173, 63
        %s178 = smul.addr %s175, 64
        %s179 = sadd.s32 %s177, %s178
        %s180 = smul.addr %s179, 8
        %s181 = scalar_lea.vmem %s0, %s180
        %s182 = smul.u32 16, %s19
      $region28: #{pcn_encoder.4} parent=23 // pred_fallthru
        _
    $region24: #{pcn_encoder.4} parent=5 // pred_fallthru
      _
    %p183 = scmp.le.s32.totalorder 1, %s11
    %p184 = scmp.lt.s32.totalorder %s11, 9
    %p185 = pnand %p183, %p184
    %p186 = pneg %p185
    // Predicated region
    $region29: #{pcn_encoder.4} parent=5 // pred_check
      _
    $region30: #{pcn_encoder.4} parent=5 // pred_check_branch
      %188 = sbr.rel (%p185) target = $region32
    $region31: #{pcn_encoder.4} parent=5 // pred_region
      %s189 = ssub.s32 %s11, 1
      %s190 = smul.u32 16, %s21
      %p191 = scmp.lt.s32.totalorder %s20, 1
      %s192 = scalar_select %p191, %s20, 1
      %p193 = scmp.lt.s32.totalorder %s190, 63
      %s194 = scalar_select %p193, %s190, 63
      %s195 = smul.addr %s192, 64
      %s196 = sadd.s32 %s194, %s195
      %s197 = smul.addr %s196, 8
      %s198 = scalar_lea.vmem %s0, %s197
      %p199 = pneg %p51
      %p200 = pneg %p48
      %p201 = pneg %p72
      %p202 = pneg %p69
      %p203 = pneg %p93
      %p204 = pneg %p90
      %p205 = pneg %p119
      %p206 = pneg %p116
      %p207 = scmp.lt.s32.totalorder %s20, 1
      %s208 = scalar_select %p207, %s20, 1
      %s209 = scalar_lea.vmem %s3, %s208
      %p210 = pneg %p145
      %p211 = pneg %p142
      %p212 = scmp.lt.s32.totalorder %s20, 1
      %s213 = scalar_select %p212, %s20, 1
      %s214 = scalar_lea.vmem %s4, %s213
      %s215 = smul.u32 16, %s21
      %p216 = scmp.lt.s32.totalorder %s20, 1
      %s217 = scalar_select %p216, %s20, 1
      %p218 = scmp.lt.s32.totalorder %s215, 63
      %s219 = scalar_select %p218, %s215, 63
      %s220 = smul.addr %s217, 64
      %s221 = sadd.s32 %s219, %s220
      %s222 = smul.addr %s221, 8
      %s223 = scalar_lea.vmem %s0, %s222
      %s224 = smul.u32 16, %s21
      %p225 = scmp.lt.s32.totalorder %s20, 1
      %s226 = scalar_select %p225, %s20, 1
      %s227 = scalar_lea.vmem %s3, %s226
      %p228 = scmp.lt.s32.totalorder %s20, 1
      %s229 = scalar_select %p228, %s20, 1
      %s230 = scalar_lea.vmem %s4, %s229
      %p231 = scmp.eq.s32.totalorder %s21, 0
      // Predicated region
      $region33: #{pcn_encoder.4} parent=31 // pred_check
        %p232 = pneg %p231
      $region34: #{pcn_encoder.4} parent=31 // pred_check_branch
        %234 = sbr.rel (%p232) target = $region36
      $region35: #{pcn_encoder.4} parent=31 // pred_region
        %235 = vst [vmem:[%s227] sm:$0x1] 0.0
        %236 = vst [vmem:[%s230] sm:$0x1] 0.0
      $region36: #{pcn_encoder.4} parent=31 // pred_fallthru
        _
      %v237 = vld [vmem:[%s223] sm:$0xff]
      %v238 = vld [vmem:[%s223 + $0x8] sm:$0xff]
      %v239 = vld [vmem:[%s223 + $0x10] sm:$0xff]
      %v240 = vld [vmem:[%s223 + $0x18] sm:$0xff]
      %v241 = vld [vmem:[%s223 + $0x20] sm:$0xff]
      %v242 = vld [vmem:[%s223 + $0x28] sm:$0xff]
      %v243 = vld [vmem:[%s223 + $0x30] sm:$0xff]
      %v244 = vld [vmem:[%s223 + $0x38] sm:$0xff]
      %v245 = vld [vmem:[%s223 + $0x40] sm:$0xff]
      %v246 = vld [vmem:[%s223 + $0x48] sm:$0xff]
      %v247 = vld [vmem:[%s223 + $0x50] sm:$0xff]
      %v248 = vld [vmem:[%s223 + $0x58] sm:$0xff]
      %v249 = vld [vmem:[%s223 + $0x60] sm:$0xff]
      %v250 = vld [vmem:[%s223 + $0x68] sm:$0xff]
      %v251 = vld [vmem:[%s223 + $0x70] sm:$0xff]
      %v252 = vld [vmem:[%s223 + $0x78] sm:$0xff]
      %v253 = vld [vmem:[%s1] sm:$0xff]
      %v254 = vld [vmem:[%s2] sm:$0x1]
      %v256 = vlaneseq
      %v257 = vshrl.u32 %v256, 7
      %v258 = vsub.s32 0, %v257
      %v259 = vrot.slane %v254, %v258
      %vm261 = vcmask 64512
      %v263 = vsel %vm261, %v237, 0
      %v266 = vsel %vm261, %v238, 0
      %v269 = vsel %vm261, %v239, 0
      %v272 = vsel %vm261, %v240, 0
      %v275 = vsel %vm261, %v241, 0
      %v278 = vsel %vm261, %v242, 0
      %v281 = vsel %vm261, %v243, 0
      %v284 = vsel %vm261, %v244, 0
      %v287 = vsel %vm261, %v245, 0
      %v290 = vsel %vm261, %v246, 0
      %v293 = vsel %vm261, %v247, 0
      %v296 = vsel %vm261, %v248, 0
      %v299 = vsel %vm261, %v249, 0
      %v302 = vsel %vm261, %v250, 0
      %v305 = vsel %vm261, %v251, 0
      %v308 = vsel %vm261, %v252, 0
      %310 = vmatprep.subr.mxu0 0.0
      %311 = vmatpush1.msra.mxu0 0.0
      %312 = vmatprep.subr.mxu0 0.0
      %313 = vmatpush1.msra.mxu0 0.0
      %314 = vmatprep.subr.mxu0 0.0
      %315 = vmatpush1.msra.mxu0 0.0
      %316 = vmatprep.subr.mxu0 0.0
      %317 = vmatpush1.msra.mxu0 0.0
      %318 = vmatprep.subr.mxu0 0.0
      %319 = vmatpush1.msra.mxu0 0.0
      %320 = vmatprep.subr.mxu0 0.0
      %321 = vmatpush1.msra.mxu0 0.0
      %322 = vmatprep.subr.mxu0 0.0
      %323 = vmatpush1.msra.mxu0 0.0
      %324 = vmatprep.subr.mxu0 0.0
      %325 = vmatpush1.msra.mxu0 0.0
      %326 = vmatprep.subr.mxu0 0.0
      %327 = vmatpush1.msra.mxu0 0.0
      %328 = vmatprep.subr.mxu0 0.0
      %329 = vmatpush1.msra.mxu0 0.0
      %330 = vmatprep.subr.mxu0 0.0
      %331 = vmatpush1.msra.mxu0 0.0
      %332 = vmatprep.subr.mxu0 0.0
      %333 = vmatpush1.msra.mxu0 0.0
      %334 = vmatprep.subr.mxu0 0.0
      %335 = vmatpush1.msra.mxu0 0.0
      %336 = vmatprep.subr.mxu0 0.0
      %337 = vmatpush1.msra.mxu0 0.0
      %338 = vmatprep.subr.mxu0 0.0
      %339 = vmatpush1.msra.mxu0 0.0
      %340 = vmatprep.subr.mxu0 0.0
      %341 = vmatpush1.msra.mxu0 %v253
      %342 = vmatprep.subr.mxu0 0.0
      %343 = vmatpush2.msra.mxu0 0.0
      %344 = vmatprep.subr.mxu0 0.0
      %345 = vmatpush2.msra.mxu0 0.0
      %346 = vmatprep.subr.mxu0 0.0
      %347 = vmatpush2.msra.mxu0 0.0
      %348 = vmatprep.subr.mxu0 0.0
      %349 = vmatpush2.msra.mxu0 0.0
      %350 = vmatprep.subr.mxu0 0.0
      %351 = vmatpush2.msra.mxu0 0.0
      %352 = vmatprep.subr.mxu0 0.0
      %353 = vmatpush2.msra.mxu0 0.0
      %354 = vmatprep.subr.mxu0 0.0
      %355 = vmatpush2.msra.mxu0 0.0
      %356 = vmatprep.subr.mxu0 0.0
      %357 = vmatpush2.msra.mxu0 0.0
      %358 = vmatprep.subr.mxu0 0.0
      %359 = vmatpush2.msra.mxu0 0.0
      %360 = vmatprep.subr.mxu0 0.0
      %361 = vmatpush2.msra.mxu0 0.0
      %362 = vmatprep.subr.mxu0 0.0
      %363 = vmatpush2.msra.mxu0 0.0
      %364 = vmatprep.subr.mxu0 0.0
      %365 = vmatpush2.msra.mxu0 0.0
      %366 = vmatprep.subr.mxu0 0.0
      %367 = vmatpush2.msra.mxu0 0.0
      %368 = vmatprep.subr.mxu0 0.0
      %369 = vmatpush2.msra.mxu0 0.0
      %370 = vmatprep.subr.mxu0 0.0
      %371 = vmatpush2.msra.mxu0 0.0
      %372 = vmatprep.subr.mxu0 0.0
      %373 = vmatpush2.msra.mxu0 0.0
      %374 = vmatprep.mubr.f32.mxu0 0.0
      %375 = vmatmul.mubr.f32.gmra.mxu0 %v263
      %v376 = vpop.f32.mrf.mxu0
      %v377 = vadd.f32 %v259, %v376
      %v378 = vpop.f32.mrf.mxu0
      %379 = vmatprep.mubr.f32.mxu0 0.0
      %380 = vmatmul.mubr.f32.gmra.mxu0 %v266
      %v381 = vpop.f32.mrf.mxu0
      %v382 = vadd.f32 %v259, %v381
      %v383 = vpop.f32.mrf.mxu0
      %384 = vmatprep.mubr.f32.mxu0 0.0
      %385 = vmatmul.mubr.f32.gmra.mxu0 %v269
      %v386 = vpop.f32.mrf.mxu0
      %v387 = vadd.f32 %v259, %v386
      %v388 = vpop.f32.mrf.mxu0
      %389 = vmatprep.mubr.f32.mxu0 0.0
      %390 = vmatmul.mubr.f32.gmra.mxu0 %v272
      %v391 = vpop.f32.mrf.mxu0
      %v392 = vadd.f32 %v259, %v391
      %v393 = vpop.f32.mrf.mxu0
      %394 = vmatprep.mubr.f32.mxu0 0.0
      %395 = vmatmul.mubr.f32.gmra.mxu0 %v275
      %v396 = vpop.f32.mrf.mxu0
      %v397 = vadd.f32 %v259, %v396
      %v398 = vpop.f32.mrf.mxu0
      %399 = vmatprep.mubr.f32.mxu0 0.0
      %400 = vmatmul.mubr.f32.gmra.mxu0 %v278
      %v401 = vpop.f32.mrf.mxu0
      %v402 = vadd.f32 %v259, %v401
      %v403 = vpop.f32.mrf.mxu0
      %404 = vmatprep.mubr.f32.mxu0 0.0
      %405 = vmatmul.mubr.f32.gmra.mxu0 %v281
      %v406 = vpop.f32.mrf.mxu0
      %v407 = vadd.f32 %v259, %v406
      %v408 = vpop.f32.mrf.mxu0
      %409 = vmatprep.mubr.f32.mxu0 0.0
      %410 = vmatmul.mubr.f32.gmra.mxu0 %v284
      %v411 = vpop.f32.mrf.mxu0
      %v412 = vadd.f32 %v259, %v411
      %v413 = vpop.f32.mrf.mxu0
      %414 = vmatprep.mubr.f32.mxu0 0.0
      %415 = vmatmul.mubr.f32.gmra.mxu0 %v287
      %v416 = vpop.f32.mrf.mxu0
      %v417 = vadd.f32 %v259, %v416
      %v418 = vpop.f32.mrf.mxu0
      %419 = vmatprep.mubr.f32.mxu0 0.0
      %420 = vmatmul.mubr.f32.gmra.mxu0 %v290
      %v421 = vpop.f32.mrf.mxu0
      %v422 = vadd.f32 %v259, %v421
      %v423 = vpop.f32.mrf.mxu0
      %424 = vmatprep.mubr.f32.mxu0 0.0
      %425 = vmatmul.mubr.f32.gmra.mxu0 %v293
      %v426 = vpop.f32.mrf.mxu0
      %v427 = vadd.f32 %v259, %v426
      %v428 = vpop.f32.mrf.mxu0
      %429 = vmatprep.mubr.f32.mxu0 0.0
      %430 = vmatmul.mubr.f32.gmra.mxu0 %v296
      %v431 = vpop.f32.mrf.mxu0
      %v432 = vadd.f32 %v259, %v431
      %v433 = vpop.f32.mrf.mxu0
      %434 = vmatprep.mubr.f32.mxu0 0.0
      %435 = vmatmul.mubr.f32.gmra.mxu0 %v299
      %v436 = vpop.f32.mrf.mxu0
      %v437 = vadd.f32 %v259, %v436
      %v438 = vpop.f32.mrf.mxu0
      %439 = vmatprep.mubr.f32.mxu0 0.0
      %440 = vmatmul.mubr.f32.gmra.mxu0 %v302
      %v441 = vpop.f32.mrf.mxu0
      %v442 = vadd.f32 %v259, %v441
      %v443 = vpop.f32.mrf.mxu0
      %444 = vmatprep.mubr.f32.mxu0 0.0
      %445 = vmatmul.mubr.f32.gmra.mxu0 %v305
      %v446 = vpop.f32.mrf.mxu0
      %v447 = vadd.f32 %v259, %v446
      %v448 = vpop.f32.mrf.mxu0
      %449 = vmatprep.mubr.f32.mxu0 0.0
      %450 = vmatmul.mubr.f32.gmra.mxu0 %v308
      %v451 = vpop.f32.mrf.mxu0
      %v452 = vadd.f32 %v259, %v451
      %v453 = vpop.f32.mrf.mxu0
      %454 = vdwg.mxu0
      %v455 = vld [vmem:[%s227] sm:$0x1]
      %v456 = vadd.f32 %v377, %v382
      %v457 = vadd.f32 %v456, %v387
      %v458 = vadd.f32 %v457, %v392
      %v459 = vadd.f32 %v458, %v397
      %v460 = vadd.f32 %v459, %v402
      %v461 = vadd.f32 %v460, %v407
      %v462 = vadd.f32 %v461, %v412
      %v463 = vadd.f32 %v462, %v417
      %v464 = vadd.f32 %v463, %v422
      %v465 = vadd.f32 %v464, %v427
      %v466 = vadd.f32 %v465, %v432
      %v467 = vadd.f32 %v466, %v437
      %v468 = vadd.f32 %v467, %v442
      %v469 = vadd.f32 %v468, %v447
      %v470 = vadd.f32 %v469, %v452
      %v471 = vrot.slane %v470, 4
      %v472 = vadd.f32 %v470, %v471
      %v473 = vrot.slane %v472, 2
      %v474 = vadd.f32 %v472, %v473
      %v475 = vrot.slane %v474, 1
      %v476 = vadd.f32 %v474, %v475
      %v477 = vadd.f32 %v455, %v476
      %478 = vst [vmem:[%s227] sm:$0x1] %v477
      %v479 = vld [vmem:[%s230] sm:$0x1]
      %v480 = vmul.f32 %v377, %v377
      %v481 = vmul.f32 %v382, %v382
      %v482 = vmul.f32 %v387, %v387
      %v483 = vmul.f32 %v392, %v392
      %v484 = vmul.f32 %v397, %v397
      %v485 = vmul.f32 %v402, %v402
      %v486 = vmul.f32 %v407, %v407
      %v487 = vmul.f32 %v412, %v412
      %v488 = vmul.f32 %v417, %v417
      %v489 = vmul.f32 %v422, %v422
      %v490 = vmul.f32 %v427, %v427
      %v491 = vmul.f32 %v432, %v432
      %v492 = vmul.f32 %v437, %v437
      %v493 = vmul.f32 %v442, %v442
      %v494 = vmul.f32 %v447, %v447
      %v495 = vmul.f32 %v452, %v452
      %v496 = vadd.f32 %v480, %v481
      %v497 = vadd.f32 %v496, %v482
      %v498 = vadd.f32 %v497, %v483
      %v499 = vadd.f32 %v498, %v484
      %v500 = vadd.f32 %v499, %v485
      %v501 = vadd.f32 %v500, %v486
      %v502 = vadd.f32 %v501, %v487
      %v503 = vadd.f32 %v502, %v488
      %v504 = vadd.f32 %v503, %v489
      %v505 = vadd.f32 %v504, %v490
      %v506 = vadd.f32 %v505, %v491
      %v507 = vadd.f32 %v506, %v492
      %v508 = vadd.f32 %v507, %v493
      %v509 = vadd.f32 %v508, %v494
      %v510 = vadd.f32 %v509, %v495
      %v511 = vrot.slane %v510, 4
      %v512 = vadd.f32 %v510, %v511
      %v513 = vrot.slane %v512, 2
      %v514 = vadd.f32 %v512, %v513
      %v515 = vrot.slane %v514, 1
      %v516 = vadd.f32 %v514, %v515
      %v517 = vadd.f32 %v479, %v516
      %518 = vst [vmem:[%s230] sm:$0x1] %v517
      %p519 = scmp.lt.s32.totalorder %s20, 1
      %s520 = scalar_select %p519, %s20, 1
      %s521 = scalar_lea.vmem %s3, %s520
      %p522 = scmp.lt.s32.totalorder %s20, 1
      %s523 = scalar_select %p522, %s20, 1
      %s524 = scalar_lea.vmem %s4, %s523
      // Predicated region
      $region37: #{pcn_encoder.4} parent=31 // pred_check
        %p525 = pneg %p116
      $region38: #{pcn_encoder.4} parent=31 // pred_check_branch
        %527 = sbr.rel (%p525) target = $region40
      $region39: #{pcn_encoder.4} parent=31 // pred_region
        _
      $region40: #{pcn_encoder.4} parent=31 // pred_fallthru
        _
      // Predicated region
      $region41: #{pcn_encoder.4} parent=31 // pred_check
        %p528 = pneg %p142
      $region42: #{pcn_encoder.4} parent=31 // pred_check_branch
        %530 = sbr.rel (%p528) target = $region44
      $region43: #{pcn_encoder.4} parent=31 // pred_region
        _
      $region44: #{pcn_encoder.4} parent=31 // pred_fallthru
        _
    $region32: #{pcn_encoder.4} parent=5 // pred_fallthru
      _
    %p531 = scmp.le.s32.totalorder 2, %s11
    // Predicated region
    $region45: #{pcn_encoder.4} parent=5 // pred_check
      %p532 = pneg %p531
    $region46: #{pcn_encoder.4} parent=5 // pred_check_branch
      %534 = sbr.rel (%p532) target = $region48
    $region47: #{pcn_encoder.4} parent=5 // pred_region
      %s535 = ssub.s32 %s11, 2
      // Predicated region
      $region49: #{pcn_encoder.4} parent=47 // pred_check
        %p536 = pneg %p122
      $region50: #{pcn_encoder.4} parent=47 // pred_check_branch
        %538 = sbr.rel (%p536) target = $region52
      $region51: #{pcn_encoder.4} parent=47 // pred_region
        %p539 = scmp.lt.s32.totalorder %s22, 1
        %s540 = scalar_select %p539, %s22, 1
        %s541 = scalar_lea.vmem %s3, %s540
      $region52: #{pcn_encoder.4} parent=47 // pred_fallthru
        _
      // Predicated region
      $region53: #{pcn_encoder.4} parent=47 // pred_check
        %p542 = pneg %p148
      $region54: #{pcn_encoder.4} parent=47 // pred_check_branch
        %544 = sbr.rel (%p542) target = $region56
      $region55: #{pcn_encoder.4} parent=47 // pred_region
        %p545 = scmp.lt.s32.totalorder %s22, 1
        %s546 = scalar_select %p545, %s22, 1
        %s547 = scalar_lea.vmem %s4, %s546
      $region56: #{pcn_encoder.4} parent=47 // pred_fallthru
        _
    $region48: #{pcn_encoder.4} parent=5 // pred_fallthru
      _
  $region6: #{pcn_encoder.4} parent=0 // loop_footer
    %s15 = sadd.s32 1, %s11
  $region7: #{pcn_encoder.4} parent=0 // loop_footer_branch
    %10 = sbr.rel target = $region3
  $region8: #{pcn_encoder.4} parent=0 // loop_exit
    _

// kernel: pcn_encoder.5
$region0: #{pcn_encoder.5}
  #allocation0 [shape = 'u32[]', space=smem, size = 0x4, offset = 0x4, fixed_abs, tag = 'smem constant byte address 0x4 - core index']
  #allocation1 [shape = 'u32[144,128]{1,0:T(1,128)}', space=vmem, size = 0x12000, scoped, tag = 'internal scratch']
  %s0 = inlined_call_operand.vmem [shape: f32[2,512,8], index: 0, kind: input, shape index: {}]
  %s1 = inlined_call_operand.vmem [shape: f32[8,128], index: 1, kind: input, shape index: {}]
  %s2 = inlined_call_operand.vmem [shape: f32[1,128], index: 2, kind: input, shape index: {}]
  %s3 = inlined_call_operand.vmem [shape: f32[128,256], index: 3, kind: input, shape index: {}]
  %s4 = inlined_call_operand.vmem [shape: f32[1,256], index: 4, kind: input, shape index: {}]
  %s5 = inlined_call_operand.vmem [shape: f32[2,512,256], index: 5, kind: output, shape index: {0}]
  %s6 = inlined_call_operand.vmem [shape: f32[2,1,256], index: 6, kind: output, shape index: {1}]
  %s7 = inlined_call_operand.vmem [shape: f32[2,1,256], index: 7, kind: output, shape index: {2}]
  %s8 = inlined_call_operand.vmem [shape: f32[2,1,256], index: 8, kind: output, shape index: {3}]
  %s9 = inlined_call_operand.vmem [shape: f32[2,1,256], index: 9, kind: output, shape index: {4}]
  %10 = xla_tuple %s5, %s6, %s7, %s8, %s9
  %s11 = sld [smem:[#allocation0]]
  $region89: #{pcn_encoder.5} parent=0
    _
  %s13 = ssub.s32 1, %s11
  %s14 = scalar_select 0, %s13, %s11
  loop: start=0, step=1, limit=10
  $region2: #{pcn_encoder.5} parent=0 // loop_pre_header
    _
  $region3: #{pcn_encoder.5} parent=0 // loop_header
    %s16 = sphi 0, %s20
    %p17 = scmp.ge.s32.totalorder %s16, 10
    %s23 = sphi 0, %s35
    %s24 = sphi 0, %s31
    %s25 = sphi 0, %s23
    %s26 = sphi 0, %s24
    %s27 = sphi 0, %s25
    %s28 = sphi 0, %s26
    %s40 = sphi 0, %s42
    %s43 = sphi 0, %s40
    %s44 = sphi 0, %s43
    %s60 = sphi 0, %s44
    %s64 = sphi 0, %s64
    %s66 = sphi 0, %s64
    %s67 = sphi 0, %s66
    %s81 = sphi 0, %s67
    %s85 = sphi 0, %s85
    %s87 = sphi 0, %s85
    %s88 = sphi 0, %s87
    %s102 = sphi 0, %s88
    %s106 = sphi 0, %s106
    %s108 = sphi 0, %s106
    %s109 = sphi 0, %s108
    %s123 = sphi 0, %s109
    %s127 = sphi 0, %s127
    %s129 = sphi 0, %s127
    %s130 = sphi 0, %s129
    %s144 = sphi 0, %s130
    %s152 = sphi 0, %s154
    %s155 = sphi 0, %s152
    %s156 = sphi 0, %s155
    %s172 = sphi 0, %s156
    %s178 = sphi 0, %s180
    %s181 = sphi 0, %s178
    %s182 = sphi 0, %s181
    %s198 = sphi 0, %s182
    %s204 = sphi 0, %s206
    %s207 = sphi 0, %s204
    %s208 = sphi 0, %s207
    %s224 = sphi 0, %s208
    %s230 = sphi 0, %s232
    %s233 = sphi 0, %s230
    %s234 = sphi 0, %s233
    %s250 = sphi 0, %s234
    %s256 = sphi 0, %s258
    %s259 = sphi 0, %s256
    %s260 = sphi 0, %s259
    %s276 = sphi 0, %s260
  $region4: #{pcn_encoder.5} parent=0 // loop_header_branch
    %19 = sbr.rel (%p17) target = $region8
  $region5: #{pcn_encoder.5} parent=0 // loop_body
    %s21 = ssub.s32 %s16, 1
    %s22 = ssub.s32 %s16, 2
    %s29 = sadd.s32 1, %s24
    %p30 = scmp.ge.s32.totalorder %s29, 4
    %s31 = scalar_select %p30, 0, %s29
    %s32 = sadd.s32 1, %s23
    %s33 = scalar_select %p30, %s32, %s23
    %p34 = scmp.ge.s32.totalorder %s33, 2
    %s35 = scalar_select %p34, 0, %s33
    %s36 = ssub.s32 %s23, %s35
    %s37 = ssub.s32 %s24, %s31
    %s38 = sor.u32 %s36, %s37
    %p39 = scmp.eq.s32.totalorder %s38, 0
    %s41 = sadd.s32 %s40, 1
    %s42 = scalar_select %p39, %s40, %s41
    %p45 = pneg %p39
    %p46 = scmp.eq.s32.totalorder %s16, 7
    %p47 = por %p45, %p46
    %p48 = scmp.ne.s32.totalorder %s40, %s43
    %p49 = scmp.eq.s32.totalorder %s16, 0
    %p50 = por %p48, %p49
    %p51 = scmp.ne.s32.totalorder %s40, %s43
    %p52 = scmp.eq.s32.totalorder %s21, 7
    %p53 = por %p51, %p52
    %p54 = scmp.ne.s32.totalorder %s43, %s44
    %p55 = scmp.eq.s32.totalorder %s21, 0
    %p56 = por %p54, %p55
    %p57 = scmp.ne.s32.totalorder %s43, %s44
    %p58 = scmp.eq.s32.totalorder %s22, 7
    %p59 = por %p57, %p58
    %p61 = scmp.ne.s32.totalorder %s44, %s60
    %p62 = scmp.eq.s32.totalorder %s22, 0
    %p63 = por %p61, %p62
    %s65 = sadd.s32 %s64, 1
    %p68 = scmp.eq.s32.totalorder %s16, 7
    %p69 = scmp.ne.s32.totalorder %s64, %s66
    %p70 = scmp.eq.s32.totalorder %s16, 0
    %p71 = por %p69, %p70
    %p72 = scmp.ne.s32.totalorder %s64, %s66
    %p73 = scmp.eq.s32.totalorder %s21, 7
    %p74 = por %p72, %p73
    %p75 = scmp.ne.s32.totalorder %s66, %s67
    %p76 = scmp.eq.s32.totalorder %s21, 0
    %p77 = por %p75, %p76
    %p78 = scmp.ne.s32.totalorder %s66, %s67
    %p79 = scmp.eq.s32.totalorder %s22, 7
    %p80 = por %p78, %p79
    %p82 = scmp.ne.s32.totalorder %s67, %s81
    %p83 = scmp.eq.s32.totalorder %s22, 0
    %p84 = por %p82, %p83
    %s86 = sadd.s32 %s85, 1
    %p89 = scmp.eq.s32.totalorder %s16, 7
    %p90 = scmp.ne.s32.totalorder %s85, %s87
    %p91 = scmp.eq.s32.totalorder %s16, 0
    %p92 = por %p90, %p91
    %p93 = scmp.ne.s32.totalorder %s85, %s87
    %p94 = scmp.eq.s32.totalorder %s21, 7
    %p95 = por %p93, %p94
    %p96 = scmp.ne.s32.totalorder %s87, %s88
    %p97 = scmp.eq.s32.totalorder %s21, 0
    %p98 = por %p96, %p97
    %p99 = scmp.ne.s32.totalorder %s87, %s88
    %p100 = scmp.eq.s32.totalorder %s22, 7
    %p101 = por %p99, %p100
    %p103 = scmp.ne.s32.totalorder %s88, %s102
    %p104 = scmp.eq.s32.totalorder %s22, 0
    %p105 = por %p103, %p104
    %s107 = sadd.s32 %s106, 1
    %p110 = scmp.eq.s32.totalorder %s16, 7
    %p111 = scmp.ne.s32.totalorder %s106, %s108
    %p112 = scmp.eq.s32.totalorder %s16, 0
    %p113 = por %p111, %p112
    %p114 = scmp.ne.s32.totalorder %s106, %s108
    %p115 = scmp.eq.s32.totalorder %s21, 7
    %p116 = por %p114, %p115
    %p117 = scmp.ne.s32.totalorder %s108, %s109
    %p118 = scmp.eq.s32.totalorder %s21, 0
    %p119 = por %p117, %p118
    %p120 = scmp.ne.s32.totalorder %s108, %s109
    %p121 = scmp.eq.s32.totalorder %s22, 7
    %p122 = por %p120, %p121
    %p124 = scmp.ne.s32.totalorder %s109, %s123
    %p125 = scmp.eq.s32.totalorder %s22, 0
    %p126 = por %p124, %p125
    %s128 = sadd.s32 %s127, 1
    %p131 = scmp.eq.s32.totalorder %s16, 7
    %p132 = scmp.ne.s32.totalorder %s127, %s129
    %p133 = scmp.eq.s32.totalorder %s16, 0
    %p134 = por %p132, %p133
    %p135 = scmp.ne.s32.totalorder %s127, %s129
    %p136 = scmp.eq.s32.totalorder %s21, 7
    %p137 = por %p135, %p136
    %p138 = scmp.ne.s32.totalorder %s129, %s130
    %p139 = scmp.eq.s32.totalorder %s21, 0
    %p140 = por %p138, %p139
    %p141 = scmp.ne.s32.totalorder %s129, %s130
    %p142 = scmp.eq.s32.totalorder %s22, 7
    %p143 = por %p141, %p142
    %p145 = scmp.ne.s32.totalorder %s130, %s144
    %p146 = scmp.eq.s32.totalorder %s22, 0
    %p147 = por %p145, %p146
    %s148 = ssub.s32 %s23, %s35
    %s149 = ssub.s32 %s24, %s31
    %s150 = sor.u32 %s148, %s149
    %p151 = scmp.eq.s32.totalorder %s150, 0
    %s153 = sadd.s32 %s152, 1
    %s154 = scalar_select %p151, %s152, %s153
    %p157 = pneg %p151
    %p158 = scmp.eq.s32.totalorder %s16, 7
    %p159 = por %p157, %p158
    %p160 = scmp.ne.s32.totalorder %s152, %s155
    %p161 = scmp.eq.s32.totalorder %s16, 0
    %p162 = por %p160, %p161
    %p163 = scmp.ne.s32.totalorder %s152, %s155
    %p164 = scmp.eq.s32.totalorder %s21, 7
    %p165 = por %p163, %p164
    %p166 = scmp.ne.s32.totalorder %s155, %s156
    %p167 = scmp.eq.s32.totalorder %s21, 0
    %p168 = por %p166, %p167
    %p169 = scmp.ne.s32.totalorder %s155, %s156
    %p170 = scmp.eq.s32.totalorder %s22, 7
    %p171 = por %p169, %p170
    %p173 = scmp.ne.s32.totalorder %s156, %s172
    %p174 = scmp.eq.s32.totalorder %s22, 0
    %p175 = por %p173, %p174
    %s176 = ssub.s32 %s23, %s35
    %p177 = scmp.eq.s32.totalorder %s176, 0
    %s179 = sadd.s32 %s178, 1
    %s180 = scalar_select %p177, %s178, %s179
    %p183 = pneg %p177
    %p184 = scmp.eq.s32.totalorder %s16, 7
    %p185 = por %p183, %p184
    %p186 = scmp.ne.s32.totalorder %s178, %s181
    %p187 = scmp.eq.s32.totalorder %s16, 0
    %p188 = por %p186, %p187
    %p189 = scmp.ne.s32.totalorder %s178, %s181
    %p190 = scmp.eq.s32.totalorder %s21, 7
    %p191 = por %p189, %p190
    %p192 = scmp.ne.s32.totalorder %s181, %s182
    %p193 = scmp.eq.s32.totalorder %s21, 0
    %p194 = por %p192, %p193
    %p195 = scmp.ne.s32.totalorder %s181, %s182
    %p196 = scmp.eq.s32.totalorder %s22, 7
    %p197 = por %p195, %p196
    %p199 = scmp.ne.s32.totalorder %s182, %s198
    %p200 = scmp.eq.s32.totalorder %s22, 0
    %p201 = por %p199, %p200
    %s202 = ssub.s32 %s23, %s35
    %p203 = scmp.eq.s32.totalorder %s202, 0
    %s205 = sadd.s32 %s204, 1
    %s206 = scalar_select %p203, %s204, %s205
    %p209 = pneg %p203
    %p210 = scmp.eq.s32.totalorder %s16, 7
    %p211 = por %p209, %p210
    %p212 = scmp.ne.s32.totalorder %s204, %s207
    %p213 = scmp.eq.s32.totalorder %s16, 0
    %p214 = por %p212, %p213
    %p215 = scmp.ne.s32.totalorder %s204, %s207
    %p216 = scmp.eq.s32.totalorder %s21, 7
    %p217 = por %p215, %p216
    %p218 = scmp.ne.s32.totalorder %s207, %s208
    %p219 = scmp.eq.s32.totalorder %s21, 0
    %p220 = por %p218, %p219
    %p221 = scmp.ne.s32.totalorder %s207, %s208
    %p222 = scmp.eq.s32.totalorder %s22, 7
    %p223 = por %p221, %p222
    %p225 = scmp.ne.s32.totalorder %s208, %s224
    %p226 = scmp.eq.s32.totalorder %s22, 0
    %p227 = por %p225, %p226
    %s228 = ssub.s32 %s23, %s35
    %p229 = scmp.eq.s32.totalorder %s228, 0
    %s231 = sadd.s32 %s230, 1
    %s232 = scalar_select %p229, %s230, %s231
    %p235 = pneg %p229
    %p236 = scmp.eq.s32.totalorder %s16, 7
    %p237 = por %p235, %p236
    %p238 = scmp.ne.s32.totalorder %s230, %s233
    %p239 = scmp.eq.s32.totalorder %s16, 0
    %p240 = por %p238, %p239
    %p241 = scmp.ne.s32.totalorder %s230, %s233
    %p242 = scmp.eq.s32.totalorder %s21, 7
    %p243 = por %p241, %p242
    %p244 = scmp.ne.s32.totalorder %s233, %s234
    %p245 = scmp.eq.s32.totalorder %s21, 0
    %p246 = por %p244, %p245
    %p247 = scmp.ne.s32.totalorder %s233, %s234
    %p248 = scmp.eq.s32.totalorder %s22, 7
    %p249 = por %p247, %p248
    %p251 = scmp.ne.s32.totalorder %s234, %s250
    %p252 = scmp.eq.s32.totalorder %s22, 0
    %p253 = por %p251, %p252
    %s254 = ssub.s32 %s23, %s35
    %p255 = scmp.eq.s32.totalorder %s254, 0
    %s257 = sadd.s32 %s256, 1
    %s258 = scalar_select %p255, %s256, %s257
    %p261 = pneg %p255
    %p262 = scmp.eq.s32.totalorder %s16, 7
    %p263 = por %p261, %p262
    %p264 = scmp.ne.s32.totalorder %s256, %s259
    %p265 = scmp.eq.s32.totalorder %s16, 0
    %p266 = por %p264, %p265
    %p267 = scmp.ne.s32.totalorder %s256, %s259
    %p268 = scmp.eq.s32.totalorder %s21, 7
    %p269 = por %p267, %p268
    %p270 = scmp.ne.s32.totalorder %s259, %s260
    %p271 = scmp.eq.s32.totalorder %s21, 0
    %p272 = por %p270, %p271
    %p273 = scmp.ne.s32.totalorder %s259, %s260
    %p274 = scmp.eq.s32.totalorder %s22, 7
    %p275 = por %p273, %p274
    %p277 = scmp.ne.s32.totalorder %s260, %s276
    %p278 = scmp.eq.s32.totalorder %s22, 0
    %p279 = por %p277, %p278
    %p280 = scmp.le.s32.totalorder 1, %s16
    %p281 = scmp.lt.s32.totalorder %s16, 9
    %p282 = pnand %p280, %p281
    %p283 = pneg %p282
    // Predicated region
    $region9: #{pcn_encoder.5} parent=5 // pred_check
      _
    $region10: #{pcn_encoder.5} parent=5 // pred_check_branch
      %285 = sbr.rel (%p282) target = $region12
    $region11: #{pcn_encoder.5} parent=5 // pred_region
      %s286 = ssub.s32 %s16, 1
      // Predicated region
      $region13: #{pcn_encoder.5} parent=11 // pred_check
        %p287 = pneg %p77
      $region14: #{pcn_encoder.5} parent=11 // pred_check_branch
        %289 = sbr.rel (%p287) target = $region16
      $region15: #{pcn_encoder.5} parent=11 // pred_region
        _
      $region16: #{pcn_encoder.5} parent=11 // pred_fallthru
        _
      // Predicated region
      $region17: #{pcn_encoder.5} parent=11 // pred_check
        %p290 = pneg %p98
      $region18: #{pcn_encoder.5} parent=11 // pred_check_branch
        %292 = sbr.rel (%p290) target = $region20
      $region19: #{pcn_encoder.5} parent=11 // pred_region
        _
      $region20: #{pcn_encoder.5} parent=11 // pred_fallthru
        _
      // Predicated region
      $region21: #{pcn_encoder.5} parent=11 // pred_check
        %p293 = pneg %p119
      $region22: #{pcn_encoder.5} parent=11 // pred_check_branch
        %295 = sbr.rel (%p293) target = $region24
      $region23: #{pcn_encoder.5} parent=11 // pred_region
        _
      $region24: #{pcn_encoder.5} parent=11 // pred_fallthru
        _
      // Predicated region
      $region25: #{pcn_encoder.5} parent=11 // pred_check
        %p296 = pneg %p140
      $region26: #{pcn_encoder.5} parent=11 // pred_check_branch
        %298 = sbr.rel (%p296) target = $region28
      $region27: #{pcn_encoder.5} parent=11 // pred_region
        _
      $region28: #{pcn_encoder.5} parent=11 // pred_fallthru
        _
    $region12: #{pcn_encoder.5} parent=5 // pred_fallthru
      _
    %p299 = scmp.lt.s32.totalorder %s16, 8
    // Predicated region
    $region29: #{pcn_encoder.5} parent=5 // pred_check
      %p300 = pneg %p299
    $region30: #{pcn_encoder.5} parent=5 // pred_check_branch
      %302 = sbr.rel (%p300) target = $region32
    $region31: #{pcn_encoder.5} parent=5 // pred_region
      // Predicated region
      $region33: #{pcn_encoder.5} parent=31 // pred_check
        %p303 = pneg %p50
      $region34: #{pcn_encoder.5} parent=31 // pred_check_branch
        %305 = sbr.rel (%p303) target = $region36
      $region35: #{pcn_encoder.5} parent=31 // pred_region
        %s306 = smul.u32 16, %s24
        %p307 = scmp.lt.s32.totalorder %s23, 1
        %s308 = scalar_select %p307, %s23, 1
        %p309 = scmp.lt.s32.totalorder %s306, 63
        %s310 = scalar_select %p309, %s306, 63
        %s311 = smul.addr %s308, 64
        %s312 = sadd.s32 %s310, %s311
        %s313 = smul.addr %s312, 8
        %s314 = scalar_lea.vmem %s0, %s313
        %s315 = smul.u32 16, %s24
      $region36: #{pcn_encoder.5} parent=31 // pred_fallthru
        _
    $region32: #{pcn_encoder.5} parent=5 // pred_fallthru
      _
    %p316 = scmp.le.s32.totalorder 1, %s16
    %p317 = scmp.lt.s32.totalorder %s16, 9
    %p318 = pnand %p316, %p317
    %p319 = pneg %p318
    // Predicated region
    $region37: #{pcn_encoder.5} parent=5 // pred_check
      _
    $region38: #{pcn_encoder.5} parent=5 // pred_check_branch
      %321 = sbr.rel (%p318) target = $region40
    $region39: #{pcn_encoder.5} parent=5 // pred_region
      %s322 = ssub.s32 %s16, 1
      %s323 = smul.u32 16, %s26
      %p324 = scmp.lt.s32.totalorder %s25, 1
      %s325 = scalar_select %p324, %s25, 1
      %p326 = scmp.lt.s32.totalorder %s323, 63
      %s327 = scalar_select %p326, %s323, 63
      %s328 = smul.addr %s325, 64
      %s329 = sadd.s32 %s327, %s328
      %s330 = smul.addr %s329, 8
      %s331 = scalar_lea.vmem %s0, %s330
      %p332 = pneg %p56
      %p333 = pneg %p53
      %p334 = pneg %p77
      %p335 = pneg %p74
      %p336 = pneg %p98
      %p337 = pneg %p95
      %p338 = pneg %p119
      %p339 = pneg %p116
      %p340 = pneg %p140
      %p341 = pneg %p137
      %p342 = pneg %p168
      %p343 = pneg %p165
      %s344 = smul.u32 16, %s26
      %p345 = scmp.lt.s32.totalorder %s25, 1
      %s346 = scalar_select %p345, %s25, 1
      %p347 = scmp.lt.s32.totalorder %s344, 63
      %s348 = scalar_select %p347, %s344, 63
      %s349 = smul.addr %s348, 2
      %s350 = smul.addr %s346, 128
      %s351 = sadd.s32 %s349, %s350
      %s352 = smul.addr %s351, 8
      %s353 = scalar_lea.vmem %s5, %s352
      %p354 = pneg %p194
      %p355 = pneg %p191
      %p356 = scmp.lt.s32.totalorder %s25, 1
      %s357 = scalar_select %p356, %s25, 1
      %s358 = smul.addr %s357, 2
      %s359 = scalar_lea.vmem %s6, %s358
      %p360 = pneg %p220
      %p361 = pneg %p217
      %p362 = scmp.lt.s32.totalorder %s25, 1
      %s363 = scalar_select %p362, %s25, 1
      %s364 = smul.addr %s363, 2
      %s365 = scalar_lea.vmem %s7, %s364
      %p366 = pneg %p246
      %p367 = pneg %p243
      %p368 = scmp.lt.s32.totalorder %s25, 1
      %s369 = scalar_select %p368, %s25, 1
      %s370 = smul.addr %s369, 2
      %s371 = scalar_lea.vmem %s8, %s370
      %p372 = pneg %p272
      %p373 = pneg %p269
      %p374 = scmp.lt.s32.totalorder %s25, 1
      %s375 = scalar_select %p374, %s25, 1
      %s376 = smul.addr %s375, 2
      %s377 = scalar_lea.vmem %s9, %s376
      %s378 = smul.u32 16, %s26
      %p379 = scmp.lt.s32.totalorder %s25, 1
      %s380 = scalar_select %p379, %s25, 1
      %p381 = scmp.lt.s32.totalorder %s378, 63
      %s382 = scalar_select %p381, %s378, 63
      %s383 = smul.addr %s380, 64
      %s384 = sadd.s32 %s382, %s383
      %s385 = smul.addr %s384, 8
      %s386 = scalar_lea.vmem %s0, %s385
      %s387 = smul.u32 16, %s26
      %s388 = smul.u32 16, %s26
      %p389 = scmp.lt.s32.totalorder %s25, 1
      %s390 = scalar_select %p389, %s25, 1
      %p391 = scmp.lt.s32.totalorder %s388, 63
      %s392 = scalar_select %p391, %s388, 63
      %s393 = smul.addr %s392, 2
      %s394 = smul.addr %s390, 128
      %s395 = sadd.s32 %s393, %s394
      %s396 = smul.addr %s395, 8
      %s397 = scalar_lea.vmem %s5, %s396
      %s398 = smul.u32 16, %s26
      %p399 = scmp.lt.s32.totalorder %s25, 1
      %s400 = scalar_select %p399, %s25, 1
      %s401 = smul.addr %s400, 2
      %s402 = scalar_lea.vmem %s6, %s401
      %p403 = scmp.lt.s32.totalorder %s25, 1
      %s404 = scalar_select %p403, %s25, 1
      %s405 = smul.addr %s404, 2
      %s406 = scalar_lea.vmem %s7, %s405
      %p407 = scmp.lt.s32.totalorder %s25, 1
      %s408 = scalar_select %p407, %s25, 1
      %s409 = smul.addr %s408, 2
      %s410 = scalar_lea.vmem %s8, %s409
      %p411 = scmp.lt.s32.totalorder %s25, 1
      %s412 = scalar_select %p411, %s25, 1
      %s413 = smul.addr %s412, 2
      %s414 = scalar_lea.vmem %s9, %s413
      %p415 = scmp.eq.s32.totalorder %s26, 0
      // Predicated region
      $region41: #{pcn_encoder.5} parent=39 // pred_check
        %p416 = pneg %p415
      $region42: #{pcn_encoder.5} parent=39 // pred_check_branch
        %418 = sbr.rel (%p416) target = $region44
      $region43: #{pcn_encoder.5} parent=39 // pred_region
        %v419 = vlaneseq
        %vm420 = vcmp.ge.s32.totalorder %v419, 0
        %vm421 = vcmp.lt.s32.totalorder %v419, 256
        %vm422 = vmand %vm420, %vm421
        %423 = vst.msk [vmem:[%s402] sm:$0x3] %vm422, 0.0
        %424 = vst.msk [vmem:[%s406] sm:$0x3] %vm422, 0.0
        %425 = vst.msk [vmem:[%s410] sm:$0x3] %vm422, -inf
        %426 = vst.msk [vmem:[%s414] sm:$0x3] %vm422, inf
      $region44: #{pcn_encoder.5} parent=39 // pred_fallthru
        _
      %v427 = vld [vmem:[%s386] sm:$0xff]
      %v428 = vld [vmem:[%s386 + $0x8] sm:$0xff]
      %v429 = vld [vmem:[%s386 + $0x10] sm:$0xff]
      %v430 = vld [vmem:[%s386 + $0x18] sm:$0xff]
      %v431 = vld [vmem:[%s386 + $0x20] sm:$0xff]
      %v432 = vld [vmem:[%s386 + $0x28] sm:$0xff]
      %v433 = vld [vmem:[%s386 + $0x30] sm:$0xff]
      %v434 = vld [vmem:[%s386 + $0x38] sm:$0xff]
      %v435 = vld [vmem:[%s386 + $0x40] sm:$0xff]
      %v436 = vld [vmem:[%s386 + $0x48] sm:$0xff]
      %v437 = vld [vmem:[%s386 + $0x50] sm:$0xff]
      %v438 = vld [vmem:[%s386 + $0x58] sm:$0xff]
      %v439 = vld [vmem:[%s386 + $0x60] sm:$0xff]
      %v440 = vld [vmem:[%s386 + $0x68] sm:$0xff]
      %v441 = vld [vmem:[%s386 + $0x70] sm:$0xff]
      %v442 = vld [vmem:[%s386 + $0x78] sm:$0xff]
      %v443 = vld [vmem:[%s1] sm:$0xff]
      %v444 = vld [vmem:[%s2] sm:$0x1]
      %v446 = vlaneseq
      %v447 = vshrl.u32 %v446, 7
      %v448 = vsub.s32 0, %v447
      %v449 = vrot.slane %v444, %v448
      %vm451 = vcmask 64512
      %v453 = vsel %vm451, %v427, 0
      %v456 = vsel %vm451, %v428, 0
      %v459 = vsel %vm451, %v429, 0
      %v462 = vsel %vm451, %v430, 0
      %v465 = vsel %vm451, %v431, 0
      %v468 = vsel %vm451, %v432, 0
      %v471 = vsel %vm451, %v433, 0
      %v474 = vsel %vm451, %v434, 0
      %v477 = vsel %vm451, %v435, 0
      %v480 = vsel %vm451, %v436, 0
      %v483 = vsel %vm451, %v437, 0
      %v486 = vsel %vm451, %v438, 0
      %v489 = vsel %vm451, %v439, 0
      %v492 = vsel %vm451, %v440, 0
      %v495 = vsel %vm451, %v441, 0
      %v498 = vsel %vm451, %v442, 0
      %500 = vmatprep.subr.mxu0 0.0
      %501 = vmatpush1.msra.mxu0 0.0
      %502 = vmatprep.subr.mxu0 0.0
      %503 = vmatpush1.msra.mxu0 0.0
      %504 = vmatprep.subr.mxu0 0.0
      %505 = vmatpush1.msra.mxu0 0.0
      %506 = vmatprep.subr.mxu0 0.0
      %507 = vmatpush1.msra.mxu0 0.0
      %508 = vmatprep.subr.mxu0 0.0
      %509 = vmatpush1.msra.mxu0 0.0
      %510 = vmatprep.subr.mxu0 0.0
      %511 = vmatpush1.msra.mxu0 0.0
      %512 = vmatprep.subr.mxu0 0.0
      %513 = vmatpush1.msra.mxu0 0.0
      %514 = vmatprep.subr.mxu0 0.0
      %515 = vmatpush1.msra.mxu0 0.0
      %516 = vmatprep.subr.mxu0 0.0
      %517 = vmatpush1.msra.mxu0 0.0
      %518 = vmatprep.subr.mxu0 0.0
      %519 = vmatpush1.msra.mxu0 0.0
      %520 = vmatprep.subr.mxu0 0.0
      %521 = vmatpush1.msra.mxu0 0.0
      %522 = vmatprep.subr.mxu0 0.0
      %523 = vmatpush1.msra.mxu0 0.0
      %524 = vmatprep.subr.mxu0 0.0
      %525 = vmatpush1.msra.mxu0 0.0
      %526 = vmatprep.subr.mxu0 0.0
      %527 = vmatpush1.msra.mxu0 0.0
      %528 = vmatprep.subr.mxu0 0.0
      %529 = vmatpush1.msra.mxu0 0.0
      %530 = vmatprep.subr.mxu0 0.0
      %531 = vmatpush1.msra.mxu0 %v443
      %532 = vmatprep.subr.mxu0 0.0
      %533 = vmatpush2.msra.mxu0 0.0
      %534 = vmatprep.subr.mxu0 0.0
      %535 = vmatpush2.msra.mxu0 0.0
      %536 = vmatprep.subr.mxu0 0.0
      %537 = vmatpush2.msra.mxu0 0.0
      %538 = vmatprep.subr.mxu0 0.0
      %539 = vmatpush2.msra.mxu0 0.0
      %540 = vmatprep.subr.mxu0 0.0
      %541 = vmatpush2.msra.mxu0 0.0
      %542 = vmatprep.subr.mxu0 0.0
      %543 = vmatpush2.msra.mxu0 0.0
      %544 = vmatprep.subr.mxu0 0.0
      %545 = vmatpush2.msra.mxu0 0.0
      %546 = vmatprep.subr.mxu0 0.0
      %547 = vmatpush2.msra.mxu0 0.0
      %548 = vmatprep.subr.mxu0 0.0
      %549 = vmatpush2.msra.mxu0 0.0
      %550 = vmatprep.subr.mxu0 0.0
      %551 = vmatpush2.msra.mxu0 0.0
      %552 = vmatprep.subr.mxu0 0.0
      %553 = vmatpush2.msra.mxu0 0.0
      %554 = vmatprep.subr.mxu0 0.0
      %555 = vmatpush2.msra.mxu0 0.0
      %556 = vmatprep.subr.mxu0 0.0
      %557 = vmatpush2.msra.mxu0 0.0
      %558 = vmatprep.subr.mxu0 0.0
      %559 = vmatpush2.msra.mxu0 0.0
      %560 = vmatprep.subr.mxu0 0.0
      %561 = vmatpush2.msra.mxu0 0.0
      %562 = vmatprep.subr.mxu0 0.0
      %563 = vmatpush2.msra.mxu0 0.0
      %564 = vmatprep.mubr.f32.mxu0 0.0
      %565 = vmatmul.mubr.f32.gmra.mxu0 %v453
      %v566 = vpop.f32.mrf.mxu0
      %v567 = vadd.f32 %v449, %v566
      %v568 = vpop.f32.mrf.mxu0
      %569 = vmatprep.mubr.f32.mxu0 0.0
      %570 = vmatmul.mubr.f32.gmra.mxu0 %v456
      %v571 = vpop.f32.mrf.mxu0
      %v572 = vadd.f32 %v449, %v571
      %v573 = vpop.f32.mrf.mxu0
      %574 = vmatprep.mubr.f32.mxu0 0.0
      %575 = vmatmul.mubr.f32.gmra.mxu0 %v459
      %v576 = vpop.f32.mrf.mxu0
      %v577 = vadd.f32 %v449, %v576
      %v578 = vpop.f32.mrf.mxu0
      %579 = vmatprep.mubr.f32.mxu0 0.0
      %580 = vmatmul.mubr.f32.gmra.mxu0 %v462
      %v581 = vpop.f32.mrf.mxu0
      %v582 = vadd.f32 %v449, %v581
      %v583 = vpop.f32.mrf.mxu0
      %584 = vmatprep.mubr.f32.mxu0 0.0
      %585 = vmatmul.mubr.f32.gmra.mxu0 %v465
      %v586 = vpop.f32.mrf.mxu0
      %v587 = vadd.f32 %v449, %v586
      %v588 = vpop.f32.mrf.mxu0
      %589 = vmatprep.mubr.f32.mxu0 0.0
      %590 = vmatmul.mubr.f32.gmra.mxu0 %v468
      %v591 = vpop.f32.mrf.mxu0
      %v592 = vadd.f32 %v449, %v591
      %v593 = vpop.f32.mrf.mxu0
      %594 = vmatprep.mubr.f32.mxu0 0.0
      %595 = vmatmul.mubr.f32.gmra.mxu0 %v471
      %v596 = vpop.f32.mrf.mxu0
      %v597 = vadd.f32 %v449, %v596
      %v598 = vpop.f32.mrf.mxu0
      %599 = vmatprep.mubr.f32.mxu0 0.0
      %600 = vmatmul.mubr.f32.gmra.mxu0 %v474
      %v601 = vpop.f32.mrf.mxu0
      %v602 = vadd.f32 %v449, %v601
      %v603 = vpop.f32.mrf.mxu0
      %604 = vmatprep.mubr.f32.mxu0 0.0
      %605 = vmatmul.mubr.f32.gmra.mxu0 %v477
      %v606 = vpop.f32.mrf.mxu0
      %v607 = vadd.f32 %v449, %v606
      %v608 = vpop.f32.mrf.mxu0
      %609 = vmatprep.mubr.f32.mxu0 0.0
      %610 = vmatmul.mubr.f32.gmra.mxu0 %v480
      %v611 = vpop.f32.mrf.mxu0
      %v612 = vadd.f32 %v449, %v611
      %v613 = vpop.f32.mrf.mxu0
      %614 = vmatprep.mubr.f32.mxu0 0.0
      %615 = vmatmul.mubr.f32.gmra.mxu0 %v483
      %v616 = vpop.f32.mrf.mxu0
      %v617 = vadd.f32 %v449, %v616
      %v618 = vpop.f32.mrf.mxu0
      %619 = vmatprep.mubr.f32.mxu0 0.0
      %620 = vmatmul.mubr.f32.gmra.mxu0 %v486
      %v621 = vpop.f32.mrf.mxu0
      %v622 = vadd.f32 %v449, %v621
      %v623 = vpop.f32.mrf.mxu0
      %624 = vmatprep.mubr.f32.mxu0 0.0
      %625 = vmatmul.mubr.f32.gmra.mxu0 %v489
      %v626 = vpop.f32.mrf.mxu0
      %v627 = vadd.f32 %v449, %v626
      %v628 = vpop.f32.mrf.mxu0
      %629 = vmatprep.mubr.f32.mxu0 0.0
      %630 = vmatmul.mubr.f32.gmra.mxu0 %v492
      %v631 = vpop.f32.mrf.mxu0
      %v632 = vadd.f32 %v449, %v631
      %v633 = vpop.f32.mrf.mxu0
      %634 = vmatprep.mubr.f32.mxu0 0.0
      %635 = vmatmul.mubr.f32.gmra.mxu0 %v495
      %v636 = vpop.f32.mrf.mxu0
      %v637 = vadd.f32 %v449, %v636
      %v638 = vpop.f32.mrf.mxu0
      %639 = vmatprep.mubr.f32.mxu0 0.0
      %640 = vmatmul.mubr.f32.gmra.mxu0 %v498
      %v641 = vpop.f32.mrf.mxu0
      %v642 = vadd.f32 %v449, %v641
      %v643 = vpop.f32.mrf.mxu0
      %644 = vdwg.mxu0
      %v645 = vmax.f32 %v567, 0.0
      %v646 = vmax.f32 %v572, 0.0
      %v647 = vmax.f32 %v577, 0.0
      %v648 = vmax.f32 %v582, 0.0
      %v649 = vmax.f32 %v587, 0.0
      %v650 = vmax.f32 %v592, 0.0
      %v651 = vmax.f32 %v597, 0.0
      %v652 = vmax.f32 %v602, 0.0
      %v653 = vmax.f32 %v607, 0.0
      %v654 = vmax.f32 %v612, 0.0
      %v655 = vmax.f32 %v617, 0.0
      %v656 = vmax.f32 %v622, 0.0
      %v657 = vmax.f32 %v627, 0.0
      %v658 = vmax.f32 %v632, 0.0
      %v659 = vmax.f32 %v637, 0.0
      %v660 = vmax.f32 %v642, 0.0
      %v661 = vld [vmem:[%s3] sm:$0xff]
      %v662 = vld [vmem:[%s3 + $0x8] sm:$0xff]
      %v663 = vld [vmem:[%s3 + $0x10] sm:$0xff]
      %v664 = vld [vmem:[%s3 + $0x18] sm:$0xff]
      %v665 = vld [vmem:[%s3 + $0x20] sm:$0xff]
      %v666 = vld [vmem:[%s3 + $0x28] sm:$0xff]
      %v667 = vld [vmem:[%s3 + $0x30] sm:$0xff]
      %v668 = vld [vmem:[%s3 + $0x38] sm:$0xff]
      %v669 = vld [vmem:[%s3 + $0x40] sm:$0xff]
      %v670 = vld [vmem:[%s3 + $0x48] sm:$0xff]
      %v671 = vld [vmem:[%s3 + $0x50] sm:$0xff]
      %v672 = vld [vmem:[%s3 + $0x58] sm:$0xff]
      %v673 = vld [vmem:[%s3 + $0x60] sm:$0xff]
      %v674 = vld [vmem:[%s3 + $0x68] sm:$0xff]
      %v675 = vld [vmem:[%s3 + $0x70] sm:$0xff]
      %v676 = vld [vmem:[%s3 + $0x78] sm:$0xff]
      %v677 = vld [vmem:[%s3 + $0x80] sm:$0xff]
      %v678 = vld [vmem:[%s3 + $0x88] sm:$0xff]
      %v679 = vld [vmem:[%s3 + $0x90] sm:$0xff]
      %v680 = vld [vmem:[%s3 + $0x98] sm:$0xff]
      %v681 = vld [vmem:[%s3 + $0xa0] sm:$0xff]
      %v682 = vld [vmem:[%s3 + $0xa8] sm:$0xff]
      %v683 = vld [vmem:[%s3 + $0xb0] sm:$0xff]
      %v684 = vld [vmem:[%s3 + $0xb8] sm:$0xff]
      %v685 = vld [vmem:[%s3 + $0xc0] sm:$0xff]
      %v686 = vld [vmem:[%s3 + $0xc8] sm:$0xff]
      %v687 = vld [vmem:[%s3 + $0xd0] sm:$0xff]
      %v688 = vld [vmem:[%s3 + $0xd8] sm:$0xff]
      %v689 = vld [vmem:[%s3 + $0xe0] sm:$0xff]
      %v690 = vld [vmem:[%s3 + $0xe8] sm:$0xff]
      %v691 = vld [vmem:[%s3 + $0xf0] sm:$0xff]
      %v692 = vld [vmem:[%s3 + $0xf8] sm:$0xff]
      %v693 = vld [vmem:[%s4] sm:$0x3]
      %v695 = vlaneseq
      %v696 = vshrl.u32 %v695, 7
      %v697 = vsub.s32 0, %v696
      %v698 = vrot.slane %v693, %v697
      %v699 = vlaneseq
      %v700 = vshrl.u32 %v699, 7
      %v701 = vsub.s32 1, %v700
      %v702 = vrot.slane %v693, %v701
      %705 = vmatprep.subr.mxu0 %v692
      %706 = vmatpush1.msra.mxu0 %v691
      %707 = vmatprep.subr.mxu0 %v690
      %708 = vmatpush1.msra.mxu0 %v689
      %709 = vmatprep.subr.mxu0 %v688
      %710 = vmatpush1.msra.mxu0 %v687
      %711 = vmatprep.subr.mxu0 %v686
      %712 = vmatpush1.msra.mxu0 %v685
      %713 = vmatprep.subr.mxu0 %v684
      %714 = vmatpush1.msra.mxu0 %v683
      %715 = vmatprep.subr.mxu0 %v682
      %716 = vmatpush1.msra.mxu0 %v681
      %717 = vmatprep.subr.mxu0 %v680
      %718 = vmatpush1.msra.mxu0 %v679
      %719 = vmatprep.subr.mxu0 %v678
      %720 = vmatpush1.msra.mxu0 %v677
      %721 = vmatprep.subr.mxu0 %v676
      %722 = vmatpush1.msra.mxu0 %v675
      %723 = vmatprep.subr.mxu0 %v674
      %724 = vmatpush1.msra.mxu0 %v673
      %725 = vmatprep.subr.mxu0 %v672
      %726 = vmatpush1.msra.mxu0 %v671
      %727 = vmatprep.subr.mxu0 %v670
      %728 = vmatpush1.msra.mxu0 %v669
      %729 = vmatprep.subr.mxu0 %v668
      %730 = vmatpush1.msra.mxu0 %v667
      %731 = vmatprep.subr.mxu0 %v666
      %732 = vmatpush1.msra.mxu0 %v665
      %733 = vmatprep.subr.mxu0 %v664
      %734 = vmatpush1.msra.mxu0 %v663
      %735 = vmatprep.subr.mxu0 %v662
      %736 = vmatpush1.msra.mxu0 %v661
      %737 = vmatprep.subr.mxu0 0.0
      %738 = vmatpush2.msra.mxu0 0.0
      %739 = vmatprep.subr.mxu0 0.0
      %740 = vmatpush2.msra.mxu0 0.0
      %741 = vmatprep.subr.mxu0 0.0
      %742 = vmatpush2.msra.mxu0 0.0
      %743 = vmatprep.subr.mxu0 0.0
      %744 = vmatpush2.msra.mxu0 0.0
      %745 = vmatprep.subr.mxu0 0.0
      %746 = vmatpush2.msra.mxu0 0.0
      %747 = vmatprep.subr.mxu0 0.0
      %748 = vmatpush2.msra.mxu0 0.0
      %749 = vmatprep.subr.mxu0 0.0
      %750 = vmatpush2.msra.mxu0 0.0
      %751 = vmatprep.subr.mxu0 0.0
      %752 = vmatpush2.msra.mxu0 0.0
      %753 = vmatprep.subr.mxu0 0.0
      %754 = vmatpush2.msra.mxu0 0.0
      %755 = vmatprep.subr.mxu0 0.0
      %756 = vmatpush2.msra.mxu0 0.0
      %757 = vmatprep.subr.mxu0 0.0
      %758 = vmatpush2.msra.mxu0 0.0
      %759 = vmatprep.subr.mxu0 0.0
      %760 = vmatpush2.msra.mxu0 0.0
      %761 = vmatprep.subr.mxu0 0.0
      %762 = vmatpush2.msra.mxu0 0.0
      %763 = vmatprep.subr.mxu0 0.0
      %764 = vmatpush2.msra.mxu0 0.0
      %765 = vmatprep.subr.mxu0 0.0
      %766 = vmatpush2.msra.mxu0 0.0
      %767 = vmatprep.subr.mxu0 0.0
      %768 = vmatpush2.msra.mxu0 0.0
      %769 = vmatprep.mubr.f32.mxu0 0.0
      %770 = vmatmul.mubr.f32.gmra.mxu0 %v645
      %v771 = vpop.f32.mrf.mxu0
      %v772 = vadd.f32 %v698, %v771
      %v773 = vpop.f32.mrf.mxu0
      %v774 = vadd.f32 %v702, %v773
      %775 = vmatprep.mubr.f32.mxu0 0.0
      %776 = vmatmul.mubr.f32.gmra.mxu0 %v646
      %v777 = vpop.f32.mrf.mxu0
      %v778 = vadd.f32 %v698, %v777
      %v779 = vpop.f32.mrf.mxu0
      %v780 = vadd.f32 %v702, %v779
      %781 = vmatprep.mubr.f32.mxu0 0.0
      %782 = vmatmul.mubr.f32.gmra.mxu0 %v647
      %v783 = vpop.f32.mrf.mxu0
      %v784 = vadd.f32 %v698, %v783
      %v785 = vpop.f32.mrf.mxu0
      %v786 = vadd.f32 %v702, %v785
      %787 = vmatprep.mubr.f32.mxu0 0.0
      %788 = vmatmul.mubr.f32.gmra.mxu0 %v648
      %v789 = vpop.f32.mrf.mxu0
      %v790 = vadd.f32 %v698, %v789
      %v791 = vpop.f32.mrf.mxu0
      %v792 = vadd.f32 %v702, %v791
      %793 = vmatprep.mubr.f32.mxu0 0.0
      %794 = vmatmul.mubr.f32.gmra.mxu0 %v649
      %v795 = vpop.f32.mrf.mxu0
      %v796 = vadd.f32 %v698, %v795
      %v797 = vpop.f32.mrf.mxu0
      %v798 = vadd.f32 %v702, %v797
      %799 = vmatprep.mubr.f32.mxu0 0.0
      %800 = vmatmul.mubr.f32.gmra.mxu0 %v650
      %v801 = vpop.f32.mrf.mxu0
      %v802 = vadd.f32 %v698, %v801
      %v803 = vpop.f32.mrf.mxu0
      %v804 = vadd.f32 %v702, %v803
      %805 = vmatprep.mubr.f32.mxu0 0.0
      %806 = vmatmul.mubr.f32.gmra.mxu0 %v651
      %v807 = vpop.f32.mrf.mxu0
      %v808 = vadd.f32 %v698, %v807
      %v809 = vpop.f32.mrf.mxu0
      %v810 = vadd.f32 %v702, %v809
      %811 = vmatprep.mubr.f32.mxu0 0.0
      %812 = vmatmul.mubr.f32.gmra.mxu0 %v652
      %v813 = vpop.f32.mrf.mxu0
      %v814 = vadd.f32 %v698, %v813
      %v815 = vpop.f32.mrf.mxu0
      %v816 = vadd.f32 %v702, %v815
      %817 = vmatprep.mubr.f32.mxu0 0.0
      %818 = vmatmul.mubr.f32.gmra.mxu0 %v653
      %v819 = vpop.f32.mrf.mxu0
      %v820 = vadd.f32 %v698, %v819
      %v821 = vpop.f32.mrf.mxu0
      %v822 = vadd.f32 %v702, %v821
      %823 = vmatprep.mubr.f32.mxu0 0.0
      %824 = vmatmul.mubr.f32.gmra.mxu0 %v654
      %v825 = vpop.f32.mrf.mxu0
      %v826 = vadd.f32 %v698, %v825
      %v827 = vpop.f32.mrf.mxu0
      %v828 = vadd.f32 %v702, %v827
      %829 = vmatprep.mubr.f32.mxu0 0.0
      %830 = vmatmul.mubr.f32.gmra.mxu0 %v655
      %v831 = vpop.f32.mrf.mxu0
      %v832 = vadd.f32 %v698, %v831
      %v833 = vpop.f32.mrf.mxu0
      %v834 = vadd.f32 %v702, %v833
      %835 = vmatprep.mubr.f32.mxu0 0.0
      %836 = vmatmul.mubr.f32.gmra.mxu0 %v656
      %v837 = vpop.f32.mrf.mxu0
      %v838 = vadd.f32 %v698, %v837
      %v839 = vpop.f32.mrf.mxu0
      %v840 = vadd.f32 %v702, %v839
      %841 = vmatprep.mubr.f32.mxu0 0.0
      %842 = vmatmul.mubr.f32.gmra.mxu0 %v657
      %v843 = vpop.f32.mrf.mxu0
      %v844 = vadd.f32 %v698, %v843
      %v845 = vpop.f32.mrf.mxu0
      %v846 = vadd.f32 %v702, %v845
      %847 = vmatprep.mubr.f32.mxu0 0.0
      %848 = vmatmul.mubr.f32.gmra.mxu0 %v658
      %v849 = vpop.f32.mrf.mxu0
      %v850 = vadd.f32 %v698, %v849
      %v851 = vpop.f32.mrf.mxu0
      %v852 = vadd.f32 %v702, %v851
      %853 = vmatprep.mubr.f32.mxu0 0.0
      %854 = vmatmul.mubr.f32.gmra.mxu0 %v659
      %v855 = vpop.f32.mrf.mxu0
      %v856 = vadd.f32 %v698, %v855
      %v857 = vpop.f32.mrf.mxu0
      %v858 = vadd.f32 %v702, %v857
      %859 = vmatprep.mubr.f32.mxu0 0.0
      %860 = vmatmul.mubr.f32.gmra.mxu0 %v660
      %v861 = vpop.f32.mrf.mxu0
      %v862 = vadd.f32 %v698, %v861
      %v863 = vpop.f32.mrf.mxu0
      %v864 = vadd.f32 %v702, %v863
      %865 = vdwg.mxu0
      %866 = vst [vmem:[%s397] sm:$0xff] %v772
      %867 = vst [vmem:[%s397 + $0x8] sm:$0xff] %v774
      %868 = vst [vmem:[%s397 + $0x10] sm:$0xff] %v778
      %869 = vst [vmem:[%s397 + $0x18] sm:$0xff] %v780
      %870 = vst [vmem:[%s397 + $0x20] sm:$0xff] %v784
      %871 = vst [vmem:[%s397 + $0x28] sm:$0xff] %v786
      %872 = vst [vmem:[%s397 + $0x30] sm:$0xff] %v790
      %873 = vst [vmem:[%s397 + $0x38] sm:$0xff] %v792
      %874 = vst [vmem:[%s397 + $0x40] sm:$0xff] %v796
      %875 = vst [vmem:[%s397 + $0x48] sm:$0xff] %v798
      %876 = vst [vmem:[%s397 + $0x50] sm:$0xff] %v802
      %877 = vst [vmem:[%s397 + $0x58] sm:$0xff] %v804
      %878 = vst [vmem:[%s397 + $0x60] sm:$0xff] %v808
      %879 = vst [vmem:[%s397 + $0x68] sm:$0xff] %v810
      %880 = vst [vmem:[%s397 + $0x70] sm:$0xff] %v814
      %881 = vst [vmem:[%s397 + $0x78] sm:$0xff] %v816
      %882 = vst [vmem:[%s397 + $0x80] sm:$0xff] %v820
      %883 = vst [vmem:[%s397 + $0x88] sm:$0xff] %v822
      %884 = vst [vmem:[%s397 + $0x90] sm:$0xff] %v826
      %885 = vst [vmem:[%s397 + $0x98] sm:$0xff] %v828
      %886 = vst [vmem:[%s397 + $0xa0] sm:$0xff] %v832
      %887 = vst [vmem:[%s397 + $0xa8] sm:$0xff] %v834
      %888 = vst [vmem:[%s397 + $0xb0] sm:$0xff] %v838
      %889 = vst [vmem:[%s397 + $0xb8] sm:$0xff] %v840
      %890 = vst [vmem:[%s397 + $0xc0] sm:$0xff] %v844
      %891 = vst [vmem:[%s397 + $0xc8] sm:$0xff] %v846
      %892 = vst [vmem:[%s397 + $0xd0] sm:$0xff] %v850
      %893 = vst [vmem:[%s397 + $0xd8] sm:$0xff] %v852
      %894 = vst [vmem:[%s397 + $0xe0] sm:$0xff] %v856
      %895 = vst [vmem:[%s397 + $0xe8] sm:$0xff] %v858
      %896 = vst [vmem:[%s397 + $0xf0] sm:$0xff] %v862
      %897 = vst [vmem:[%s397 + $0xf8] sm:$0xff] %v864
      %v898 = vld [vmem:[%s402] sm:$0x3]
      %v899 = vadd.f32 %v772, %v778
      %v900 = vadd.f32 %v899, %v784
      %v901 = vadd.f32 %v900, %v790
      %v902 = vadd.f32 %v901, %v796
      %v903 = vadd.f32 %v902, %v802
      %v904 = vadd.f32 %v903, %v808
      %v905 = vadd.f32 %v904, %v814
      %v906 = vadd.f32 %v905, %v820
      %v907 = vadd.f32 %v906, %v826
      %v908 = vadd.f32 %v907, %v832
      %v909 = vadd.f32 %v908, %v838
      %v910 = vadd.f32 %v909, %v844
      %v911 = vadd.f32 %v910, %v850
      %v912 = vadd.f32 %v911, %v856
      %v913 = vadd.f32 %v912, %v862
      %v914 = vrot.slane %v913, 4
      %v915 = vadd.f32 %v913, %v914
      %v916 = vrot.slane %v915, 2
      %v917 = vadd.f32 %v915, %v916
      %v918 = vrot.slane %v917, 1
      %v919 = vadd.f32 %v917, %v918
      %v920 = vadd.f32 %v774, %v780
      %v921 = vadd.f32 %v920, %v786
      %v922 = vadd.f32 %v921, %v792
      %v923 = vadd.f32 %v922, %v798
      %v924 = vadd.f32 %v923, %v804
      %v925 = vadd.f32 %v924, %v810
      %v926 = vadd.f32 %v925, %v816
      %v927 = vadd.f32 %v926, %v822
      %v928 = vadd.f32 %v927, %v828
      %v929 = vadd.f32 %v928, %v834
      %v930 = vadd.f32 %v929, %v840
      %v931 = vadd.f32 %v930, %v846
      %v932 = vadd.f32 %v931, %v852
      %v933 = vadd.f32 %v932, %v858
      %v934 = vadd.f32 %v933, %v864
      %v935 = vrot.slane %v934, 4
      %v936 = vadd.f32 %v934, %v935
      %v937 = vrot.slane %v936, 2
      %v938 = vadd.f32 %v936, %v937
      %v939 = vrot.slane %v938, 1
      %v940 = vadd.f32 %v938, %v939
      %v943 = vcombine.low %v919, %v940
      %v945 = vunpack.c.l.s4 1966171168
      %v946 = vunpack.c.0.s8 %v945
      %v947 = vlaneseq
      %v948 = vshrl.u32 %v947, 7
      %v949 = vsub.s32 %v946, %v948
      %v950 = vrot.slane %v943, %v949
      %v952 = vunpack.c.l.s4 1966171168
      %v953 = vunpack.c.0.s8 %v952
      %v954 = vlaneseq
      %v955 = vshrl.u32 %v954, 7
      %v956 = vsub.s32 %v953, %v955
      %v957 = vrot.slane %v950, %v956
      %v959 = vadd.f32 %v898, %v957
      %v960 = vlaneseq
      %vm961 = vcmp.ge.s32.totalorder %v960, 0
      %vm962 = vcmp.lt.s32.totalorder %v960, 256
      %vm963 = vmand %vm961, %vm962
      %964 = vst.msk [vmem:[%s402] sm:$0x3] %vm963, %v959
      %v965 = vld [vmem:[%s406] sm:$0x3]
      %v966 = vmul.f32 %v772, %v772
      %v967 = vmul.f32 %v774, %v774
      %v968 = vmul.f32 %v778, %v778
      %v969 = vmul.f32 %v780, %v780
      %v970 = vmul.f32 %v784, %v784
      %v971 = vmul.f32 %v786, %v786
      %v972 = vmul.f32 %v790, %v790
      %v973 = vmul.f32 %v792, %v792
      %v974 = vmul.f32 %v796, %v796
      %v975 = vmul.f32 %v798, %v798
      %v976 = vmul.f32 %v802, %v802
      %v977 = vmul.f32 %v804, %v804
      %v978 = vmul.f32 %v808, %v808
      %v979 = vmul.f32 %v810, %v810
      %v980 = vmul.f32 %v814, %v814
      %v981 = vmul.f32 %v816, %v816
      %v982 = vmul.f32 %v820, %v820
      %v983 = vmul.f32 %v822, %v822
      %v984 = vmul.f32 %v826, %v826
      %v985 = vmul.f32 %v828, %v828
      %v986 = vmul.f32 %v832, %v832
      %v987 = vmul.f32 %v834, %v834
      %v988 = vmul.f32 %v838, %v838
      %v989 = vmul.f32 %v840, %v840
      %v990 = vmul.f32 %v844, %v844
      %v991 = vmul.f32 %v846, %v846
      %v992 = vmul.f32 %v850, %v850
      %v993 = vmul.f32 %v852, %v852
      %v994 = vmul.f32 %v856, %v856
      %v995 = vmul.f32 %v858, %v858
      %v996 = vmul.f32 %v862, %v862
      %v997 = vmul.f32 %v864, %v864
      %v998 = vadd.f32 %v966, %v968
      %v999 = vadd.f32 %v998, %v970
      %v1000 = vadd.f32 %v999, %v972
      %v1001 = vadd.f32 %v1000, %v974
      %v1002 = vadd.f32 %v1001, %v976
      %v1003 = vadd.f32 %v1002, %v978
      %v1004 = vadd.f32 %v1003, %v980
      %v1005 = vadd.f32 %v1004, %v982
      %v1006 = vadd.f32 %v1005, %v984
      %v1007 = vadd.f32 %v1006, %v986
      %v1008 = vadd.f32 %v1007, %v988
      %v1009 = vadd.f32 %v1008, %v990
      %v1010 = vadd.f32 %v1009, %v992
      %v1011 = vadd.f32 %v1010, %v994
      %v1012 = vadd.f32 %v1011, %v996
      %v1013 = vrot.slane %v1012, 4
      %v1014 = vadd.f32 %v1012, %v1013
      %v1015 = vrot.slane %v1014, 2
      %v1016 = vadd.f32 %v1014, %v1015
      %v1017 = vrot.slane %v1016, 1
      %v1018 = vadd.f32 %v1016, %v1017
      %v1019 = vadd.f32 %v967, %v969
      %v1020 = vadd.f32 %v1019, %v971
      %v1021 = vadd.f32 %v1020, %v973
      %v1022 = vadd.f32 %v1021, %v975
      %v1023 = vadd.f32 %v1022, %v977
      %v1024 = vadd.f32 %v1023, %v979
      %v1025 = vadd.f32 %v1024, %v981
      %v1026 = vadd.f32 %v1025, %v983
      %v1027 = vadd.f32 %v1026, %v985
      %v1028 = vadd.f32 %v1027, %v987
      %v1029 = vadd.f32 %v1028, %v989
      %v1030 = vadd.f32 %v1029, %v991
      %v1031 = vadd.f32 %v1030, %v993
      %v1032 = vadd.f32 %v1031, %v995
      %v1033 = vadd.f32 %v1032, %v997
      %v1034 = vrot.slane %v1033, 4
      %v1035 = vadd.f32 %v1033, %v1034
      %v1036 = vrot.slane %v1035, 2
      %v1037 = vadd.f32 %v1035, %v1036
      %v1038 = vrot.slane %v1037, 1
      %v1039 = vadd.f32 %v1037, %v1038
      %v1042 = vcombine.low %v1018, %v1039
      %v1044 = vunpack.c.l.s4 1966171168
      %v1045 = vunpack.c.0.s8 %v1044
      %v1046 = vlaneseq
      %v1047 = vshrl.u32 %v1046, 7
      %v1048 = vsub.s32 %v1045, %v1047
      %v1049 = vrot.slane %v1042, %v1048
      %v1051 = vunpack.c.l.s4 1966171168
      %v1052 = vunpack.c.0.s8 %v1051
      %v1053 = vlaneseq
      %v1054 = vshrl.u32 %v1053, 7
      %v1055 = vsub.s32 %v1052, %v1054
      %v1056 = vrot.slane %v1049, %v1055
      %v1058 = vadd.f32 %v965, %v1056
      %1059 = vst.msk [vmem:[%s406] sm:$0x3] %vm963, %v1058
      %v1060 = vld [vmem:[%s410] sm:$0x3]
      %v1061 = vmax.f32 %v772, %v784
      %v1062 = vmax.f32 %v778, %v790
      %v1063 = vmax.f32 %v1061, %v796
      %v1064 = vmax.f32 %v1062, %v802
      %v1065 = vmax.f32 %v1063, %v808
      %v1066 = vmax.f32 %v1064, %v814
      %v1067 = vmax.f32 %v1065, %v820
      %v1068 = vmax.f32 %v1066, %v826
      %v1069 = vmax.f32 %v1067, %v832
      %v1070 = vmax.f32 %v1068, %v838
      %v1071 = vmax.f32 %v1069, %v844
      %v1072 = vmax.f32 %v1070, %v850
      %v1073 = vmax.f32 %v1071, %v856
      %v1074 = vmax.f32 %v1072, %v862
      %v1075 = vmax.f32 %v1073, %v1074
      %v1076 = vrot.slane %v1075, 4
      %v1077 = vmax.f32 %v1075, %v1076
      %v1078 = vrot.slane %v1077, 2
      %v1079 = vmax.f32 %v1077, %v1078
      %v1080 = vrot.slane %v1079, 1
      %v1081 = vmax.f32 %v1079, %v1080
      %v1082 = vmax.f32 %v774, %v786
      %v1083 = vmax.f32 %v780, %v792
      %v1084 = vmax.f32 %v1082, %v798
      %v1085 = vmax.f32 %v1083, %v804
      %v1086 = vmax.f32 %v1084, %v810
      %v1087 = vmax.f32 %v1085, %v816
      %v1088 = vmax.f32 %v1086, %v822
      %v1089 = vmax.f32 %v1087, %v828
      %v1090 = vmax.f32 %v1088, %v834
      %v1091 = vmax.f32 %v1089, %v840
      %v1092 = vmax.f32 %v1090, %v846
      %v1093 = vmax.f32 %v1091, %v852
      %v1094 = vmax.f32 %v1092, %v858
      %v1095 = vmax.f32 %v1093, %v864
      %v1096 = vmax.f32 %v1094, %v1095
      %v1097 = vrot.slane %v1096, 4
      %v1098 = vmax.f32 %v1096, %v1097
      %v1099 = vrot.slane %v1098, 2
      %v1100 = vmax.f32 %v1098, %v1099
      %v1101 = vrot.slane %v1100, 1
      %v1102 = vmax.f32 %v1100, %v1101
      %v1105 = vcombine.low %v1081, %v1102
      %v1107 = vunpack.c.l.s4 1966171168
      %v1108 = vunpack.c.0.s8 %v1107
      %v1109 = vlaneseq
      %v1110 = vshrl.u32 %v1109, 7
      %v1111 = vsub.s32 %v1108, %v1110
      %v1112 = vrot.slane %v1105, %v1111
      %v1114 = vunpack.c.l.s4 1966171168
      %v1115 = vunpack.c.0.s8 %v1114
      %v1116 = vlaneseq
      %v1117 = vshrl.u32 %v1116, 7
      %v1118 = vsub.s32 %v1115, %v1117
      %v1119 = vrot.slane %v1112, %v1118
      %v1121 = vmax.f32 %v1060, %v1119
      %1122 = vst.msk [vmem:[%s410] sm:$0x3] %vm963, %v1121
      %v1123 = vld [vmem:[%s414] sm:$0x3]
      %v1124 = vmin.f32 %v772, %v784
      %v1125 = vmin.f32 %v778, %v790
      %v1126 = vmin.f32 %v1124, %v796
      %v1127 = vmin.f32 %v1125, %v802
      %v1128 = vmin.f32 %v1126, %v808
      %v1129 = vmin.f32 %v1127, %v814
      %v1130 = vmin.f32 %v1128, %v820
      %v1131 = vmin.f32 %v1129, %v826
      %v1132 = vmin.f32 %v1130, %v832
      %v1133 = vmin.f32 %v1131, %v838
      %v1134 = vmin.f32 %v1132, %v844
      %v1135 = vmin.f32 %v1133, %v850
      %v1136 = vmin.f32 %v1134, %v856
      %v1137 = vmin.f32 %v1135, %v862
      %v1138 = vmin.f32 %v1136, %v1137
      %v1139 = vrot.slane %v1138, 4
      %v1140 = vmin.f32 %v1138, %v1139
      %v1141 = vrot.slane %v1140, 2
      %v1142 = vmin.f32 %v1140, %v1141
      %v1143 = vrot.slane %v1142, 1
      %v1144 = vmin.f32 %v1142, %v1143
      %v1145 = vmin.f32 %v774, %v786
      %v1146 = vmin.f32 %v780, %v792
      %v1147 = vmin.f32 %v1145, %v798
      %v1148 = vmin.f32 %v1146, %v804
      %v1149 = vmin.f32 %v1147, %v810
      %v1150 = vmin.f32 %v1148, %v816
      %v1151 = vmin.f32 %v1149, %v822
      %v1152 = vmin.f32 %v1150, %v828
      %v1153 = vmin.f32 %v1151, %v834
      %v1154 = vmin.f32 %v1152, %v840
      %v1155 = vmin.f32 %v1153, %v846
      %v1156 = vmin.f32 %v1154, %v852
      %v1157 = vmin.f32 %v1155, %v858
      %v1158 = vmin.f32 %v1156, %v864
      %v1159 = vmin.f32 %v1157, %v1158
      %v1160 = vrot.slane %v1159, 4
      %v1161 = vmin.f32 %v1159, %v1160
      %v1162 = vrot.slane %v1161, 2
      %v1163 = vmin.f32 %v1161, %v1162
      %v1164 = vrot.slane %v1163, 1
      %v1165 = vmin.f32 %v1163, %v1164
      %v1168 = vcombine.low %v1144, %v1165
      %v1170 = vunpack.c.l.s4 1966171168
      %v1171 = vunpack.c.0.s8 %v1170
      %v1172 = vlaneseq
      %v1173 = vshrl.u32 %v1172, 7
      %v1174 = vsub.s32 %v1171, %v1173
      %v1175 = vrot.slane %v1168, %v1174
      %v1177 = vunpack.c.l.s4 1966171168
      %v1178 = vunpack.c.0.s8 %v1177
      %v1179 = vlaneseq
      %v1180 = vshrl.u32 %v1179, 7
      %v1181 = vsub.s32 %v1178, %v1180
      %v1182 = vrot.slane %v1175, %v1181
      %v1184 = vmin.f32 %v1123, %v1182
      %1185 = vst.msk [vmem:[%s414] sm:$0x3] %vm963, %v1184
      %s1186 = smul.u32 16, %s26
      %p1187 = scmp.lt.s32.totalorder %s25, 1
      %s1188 = scalar_select %p1187, %s25, 1
      %p1189 = scmp.lt.s32.totalorder %s1186, 63
      %s1190 = scalar_select %p1189, %s1186, 63
      %s1191 = smul.addr %s1190, 2
      %s1192 = smul.addr %s1188, 128
      %s1193 = sadd.s32 %s1191, %s1192
      %s1194 = smul.addr %s1193, 8
      %s1195 = scalar_lea.vmem %s5, %s1194
      %p1196 = scmp.lt.s32.totalorder %s25, 1
      %s1197 = scalar_select %p1196, %s25, 1
      %s1198 = smul.addr %s1197, 2
      %s1199 = scalar_lea.vmem %s6, %s1198
      %p1200 = scmp.lt.s32.totalorder %s25, 1
      %s1201 = scalar_select %p1200, %s25, 1
      %s1202 = smul.addr %s1201, 2
      %s1203 = scalar_lea.vmem %s7, %s1202
      %p1204 = scmp.lt.s32.totalorder %s25, 1
      %s1205 = scalar_select %p1204, %s25, 1
      %s1206 = smul.addr %s1205, 2
      %s1207 = scalar_lea.vmem %s8, %s1206
      %p1208 = scmp.lt.s32.totalorder %s25, 1
      %s1209 = scalar_select %p1208, %s25, 1
      %s1210 = smul.addr %s1209, 2
      %s1211 = scalar_lea.vmem %s9, %s1210
      // Predicated region
      $region45: #{pcn_encoder.5} parent=39 // pred_check
        %p1212 = pneg %p165
      $region46: #{pcn_encoder.5} parent=39 // pred_check_branch
        %1214 = sbr.rel (%p1212) target = $region48
      $region47: #{pcn_encoder.5} parent=39 // pred_region
        %s1215 = smul.u32 16, %s26
      $region48: #{pcn_encoder.5} parent=39 // pred_fallthru
        _
      // Predicated region
      $region49: #{pcn_encoder.5} parent=39 // pred_check
        %p1216 = pneg %p191
      $region50: #{pcn_encoder.5} parent=39 // pred_check_branch
        %1218 = sbr.rel (%p1216) target = $region52
      $region51: #{pcn_encoder.5} parent=39 // pred_region
        _
      $region52: #{pcn_encoder.5} parent=39 // pred_fallthru
        _
      // Predicated region
      $region53: #{pcn_encoder.5} parent=39 // pred_check
        %p1219 = pneg %p217
      $region54: #{pcn_encoder.5} parent=39 // pred_check_branch
        %1221 = sbr.rel (%p1219) target = $region56
      $region55: #{pcn_encoder.5} parent=39 // pred_region
        _
      $region56: #{pcn_encoder.5} parent=39 // pred_fallthru
        _
      // Predicated region
      $region57: #{pcn_encoder.5} parent=39 // pred_check
        %p1222 = pneg %p243
      $region58: #{pcn_encoder.5} parent=39 // pred_check_branch
        %1224 = sbr.rel (%p1222) target = $region60
      $region59: #{pcn_encoder.5} parent=39 // pred_region
        _
      $region60: #{pcn_encoder.5} parent=39 // pred_fallthru
        _
      // Predicated region
      $region61: #{pcn_encoder.5} parent=39 // pred_check
        %p1225 = pneg %p269
      $region62: #{pcn_encoder.5} parent=39 // pred_check_branch
        %1227 = sbr.rel (%p1225) target = $region64
      $region63: #{pcn_encoder.5} parent=39 // pred_region
        _
      $region64: #{pcn_encoder.5} parent=39 // pred_fallthru
        _
    $region40: #{pcn_encoder.5} parent=5 // pred_fallthru
      _
    %p1228 = scmp.le.s32.totalorder 2, %s16
    // Predicated region
    $region65: #{pcn_encoder.5} parent=5 // pred_check
      %p1229 = pneg %p1228
    $region66: #{pcn_encoder.5} parent=5 // pred_check_branch
      %1231 = sbr.rel (%p1229) target = $region68
    $region67: #{pcn_encoder.5} parent=5 // pred_region
      %s1232 = ssub.s32 %s16, 2
      // Predicated region
      $region69: #{pcn_encoder.5} parent=67 // pred_check
        %p1233 = pneg %p171
      $region70: #{pcn_encoder.5} parent=67 // pred_check_branch
        %1235 = sbr.rel (%p1233) target = $region72
      $region71: #{pcn_encoder.5} parent=67 // pred_region
        %s1236 = smul.u32 16, %s28
        %p1237 = scmp.lt.s32.totalorder %s27, 1
        %s1238 = scalar_select %p1237, %s27, 1
        %p1239 = scmp.lt.s32.totalorder %s1236, 63
        %s1240 = scalar_select %p1239, %s1236, 63
        %s1241 = smul.addr %s1240, 2
        %s1242 = smul.addr %s1238, 128
        %s1243 = sadd.s32 %s1241, %s1242
        %s1244 = smul.addr %s1243, 8
        %s1245 = scalar_lea.vmem %s5, %s1244
      $region72: #{pcn_encoder.5} parent=67 // pred_fallthru
        _
      // Predicated region
      $region73: #{pcn_encoder.5} parent=67 // pred_check
        %p1246 = pneg %p197
      $region74: #{pcn_encoder.5} parent=67 // pred_check_branch
        %1248 = sbr.rel (%p1246) target = $region76
      $region75: #{pcn_encoder.5} parent=67 // pred_region
        %p1249 = scmp.lt.s32.totalorder %s27, 1
        %s1250 = scalar_select %p1249, %s27, 1
        %s1251 = smul.addr %s1250, 2
        %s1252 = scalar_lea.vmem %s6, %s1251
      $region76: #{pcn_encoder.5} parent=67 // pred_fallthru
        _
      // Predicated region
      $region77: #{pcn_encoder.5} parent=67 // pred_check
        %p1253 = pneg %p223
      $region78: #{pcn_encoder.5} parent=67 // pred_check_branch
        %1255 = sbr.rel (%p1253) target = $region80
      $region79: #{pcn_encoder.5} parent=67 // pred_region
        %p1256 = scmp.lt.s32.totalorder %s27, 1
        %s1257 = scalar_select %p1256, %s27, 1
        %s1258 = smul.addr %s1257, 2
        %s1259 = scalar_lea.vmem %s7, %s1258
      $region80: #{pcn_encoder.5} parent=67 // pred_fallthru
        _
      // Predicated region
      $region81: #{pcn_encoder.5} parent=67 // pred_check
        %p1260 = pneg %p249
      $region82: #{pcn_encoder.5} parent=67 // pred_check_branch
        %1262 = sbr.rel (%p1260) target = $region84
      $region83: #{pcn_encoder.5} parent=67 // pred_region
        %p1263 = scmp.lt.s32.totalorder %s27, 1
        %s1264 = scalar_select %p1263, %s27, 1
        %s1265 = smul.addr %s1264, 2
        %s1266 = scalar_lea.vmem %s8, %s1265
      $region84: #{pcn_encoder.5} parent=67 // pred_fallthru
        _
      // Predicated region
      $region85: #{pcn_encoder.5} parent=67 // pred_check
        %p1267 = pneg %p275
      $region86: #{pcn_encoder.5} parent=67 // pred_check_branch
        %1269 = sbr.rel (%p1267) target = $region88
      $region87: #{pcn_encoder.5} parent=67 // pred_region
        %p1270 = scmp.lt.s32.totalorder %s27, 1
        %s1271 = scalar_select %p1270, %s27, 1
        %s1272 = smul.addr %s1271, 2
        %s1273 = scalar_lea.vmem %s9, %s1272
      $region88: #{pcn_encoder.5} parent=67 // pred_fallthru
        _
    $region68: #{pcn_encoder.5} parent=5 // pred_fallthru
      _
  $region6: #{pcn_encoder.5} parent=0 // loop_footer
    %s20 = sadd.s32 1, %s16
  $region7: #{pcn_encoder.5} parent=0 // loop_footer_branch
    %15 = sbr.rel target = $region3
  $region8: #{pcn_encoder.5} parent=0 // loop_exit
    _

// kernel: pcn_encoder.6
$region0: #{pcn_encoder.6}
  #allocation0 [shape = 'u32[]', space=smem, size = 0x4, offset = 0x4, fixed_abs, tag = 'smem constant byte address 0x4 - core index']
  #allocation1 [shape = 'u32[144,128]{1,0:T(1,128)}', space=vmem, size = 0x12000, scoped, tag = 'internal scratch']
  %s0 = inlined_call_operand.vmem [shape: f32[2,512,256], index: 0, kind: input, shape index: {}]
  %s1 = inlined_call_operand.vmem [shape: f32[256,512], index: 1, kind: input, shape index: {}]
  %s2 = inlined_call_operand.vmem [shape: f32[2,1,512], index: 2, kind: input, shape index: {}]
  %s3 = inlined_call_operand.vmem [shape: f32[2,1,512], index: 3, kind: output, shape index: {0}]
  %s4 = inlined_call_operand.vmem [shape: f32[2,1,512], index: 4, kind: output, shape index: {1}]
  %5 = xla_tuple %s3, %s4
  %s6 = sld [smem:[#allocation0]]
  $region57: #{pcn_encoder.6} parent=0
    _
  %s8 = ssub.s32 1, %s6
  %s9 = scalar_select 0, %s8, %s6
  loop: start=0, step=1, limit=10
  $region2: #{pcn_encoder.6} parent=0 // loop_pre_header
    _
  $region3: #{pcn_encoder.6} parent=0 // loop_header
    %s11 = sphi 0, %s15
    %p12 = scmp.ge.s32.totalorder %s11, 10
    %s18 = sphi 0, %s30
    %s19 = sphi 0, %s26
    %s20 = sphi 0, %s18
    %s21 = sphi 0, %s19
    %s22 = sphi 0, %s20
    %s23 = sphi 0, %s21
    %s35 = sphi 0, %s37
    %s38 = sphi 0, %s35
    %s39 = sphi 0, %s38
    %s55 = sphi 0, %s39
    %s59 = sphi 0, %s59
    %s61 = sphi 0, %s59
    %s62 = sphi 0, %s61
    %s76 = sphi 0, %s62
    %s82 = sphi 0, %s84
    %s85 = sphi 0, %s82
    %s86 = sphi 0, %s85
    %s102 = sphi 0, %s86
    %s108 = sphi 0, %s110
    %s111 = sphi 0, %s108
    %s112 = sphi 0, %s111
    %s128 = sphi 0, %s112
    %s134 = sphi 0, %s136
    %s137 = sphi 0, %s134
    %s138 = sphi 0, %s137
    %s154 = sphi 0, %s138
  $region4: #{pcn_encoder.6} parent=0 // loop_header_branch
    %14 = sbr.rel (%p12) target = $region8
  $region5: #{pcn_encoder.6} parent=0 // loop_body
    %s16 = ssub.s32 %s11, 1
    %s17 = ssub.s32 %s11, 2
    %s24 = sadd.s32 1, %s19
    %p25 = scmp.ge.s32.totalorder %s24, 4
    %s26 = scalar_select %p25, 0, %s24
    %s27 = sadd.s32 1, %s18
    %s28 = scalar_select %p25, %s27, %s18
    %p29 = scmp.ge.s32.totalorder %s28, 2
    %s30 = scalar_select %p29, 0, %s28
    %s31 = ssub.s32 %s18, %s30
    %s32 = ssub.s32 %s19, %s26
    %s33 = sor.u32 %s31, %s32
    %p34 = scmp.eq.s32.totalorder %s33, 0
    %s36 = sadd.s32 %s35, 1
    %s37 = scalar_select %p34, %s35, %s36
    %p40 = pneg %p34
    %p41 = scmp.eq.s32.totalorder %s11, 7
    %p42 = por %p40, %p41
    %p43 = scmp.ne.s32.totalorder %s35, %s38
    %p44 = scmp.eq.s32.totalorder %s11, 0
    %p45 = por %p43, %p44
    %p46 = scmp.ne.s32.totalorder %s35, %s38
    %p47 = scmp.eq.s32.totalorder %s16, 7
    %p48 = por %p46, %p47
    %p49 = scmp.ne.s32.totalorder %s38, %s39
    %p50 = scmp.eq.s32.totalorder %s16, 0
    %p51 = por %p49, %p50
    %p52 = scmp.ne.s32.totalorder %s38, %s39
    %p53 = scmp.eq.s32.totalorder %s17, 7
    %p54 = por %p52, %p53
    %p56 = scmp.ne.s32.totalorder %s39, %s55
    %p57 = scmp.eq.s32.totalorder %s17, 0
    %p58 = por %p56, %p57
    %s60 = sadd.s32 %s59, 1
    %p63 = scmp.eq.s32.totalorder %s11, 7
    %p64 = scmp.ne.s32.totalorder %s59, %s61
    %p65 = scmp.eq.s32.totalorder %s11, 0
    %p66 = por %p64, %p65
    %p67 = scmp.ne.s32.totalorder %s59, %s61
    %p68 = scmp.eq.s32.totalorder %s16, 7
    %p69 = por %p67, %p68
    %p70 = scmp.ne.s32.totalorder %s61, %s62
    %p71 = scmp.eq.s32.totalorder %s16, 0
    %p72 = por %p70, %p71
    %p73 = scmp.ne.s32.totalorder %s61, %s62
    %p74 = scmp.eq.s32.totalorder %s17, 7
    %p75 = por %p73, %p74
    %p77 = scmp.ne.s32.totalorder %s62, %s76
    %p78 = scmp.eq.s32.totalorder %s17, 0
    %p79 = por %p77, %p78
    %s80 = ssub.s32 %s18, %s30
    %p81 = scmp.eq.s32.totalorder %s80, 0
    %s83 = sadd.s32 %s82, 1
    %s84 = scalar_select %p81, %s82, %s83
    %p87 = pneg %p81
    %p88 = scmp.eq.s32.totalorder %s11, 7
    %p89 = por %p87, %p88
    %p90 = scmp.ne.s32.totalorder %s82, %s85
    %p91 = scmp.eq.s32.totalorder %s11, 0
    %p92 = por %p90, %p91
    %p93 = scmp.ne.s32.totalorder %s82, %s85
    %p94 = scmp.eq.s32.totalorder %s16, 7
    %p95 = por %p93, %p94
    %p96 = scmp.ne.s32.totalorder %s85, %s86
    %p97 = scmp.eq.s32.totalorder %s16, 0
    %p98 = por %p96, %p97
    %p99 = scmp.ne.s32.totalorder %s85, %s86
    %p100 = scmp.eq.s32.totalorder %s17, 7
    %p101 = por %p99, %p100
    %p103 = scmp.ne.s32.totalorder %s86, %s102
    %p104 = scmp.eq.s32.totalorder %s17, 0
    %p105 = por %p103, %p104
    %s106 = ssub.s32 %s18, %s30
    %p107 = scmp.eq.s32.totalorder %s106, 0
    %s109 = sadd.s32 %s108, 1
    %s110 = scalar_select %p107, %s108, %s109
    %p113 = pneg %p107
    %p114 = scmp.eq.s32.totalorder %s11, 7
    %p115 = por %p113, %p114
    %p116 = scmp.ne.s32.totalorder %s108, %s111
    %p117 = scmp.eq.s32.totalorder %s11, 0
    %p118 = por %p116, %p117
    %p119 = scmp.ne.s32.totalorder %s108, %s111
    %p120 = scmp.eq.s32.totalorder %s16, 7
    %p121 = por %p119, %p120
    %p122 = scmp.ne.s32.totalorder %s111, %s112
    %p123 = scmp.eq.s32.totalorder %s16, 0
    %p124 = por %p122, %p123
    %p125 = scmp.ne.s32.totalorder %s111, %s112
    %p126 = scmp.eq.s32.totalorder %s17, 7
    %p127 = por %p125, %p126
    %p129 = scmp.ne.s32.totalorder %s112, %s128
    %p130 = scmp.eq.s32.totalorder %s17, 0
    %p131 = por %p129, %p130
    %s132 = ssub.s32 %s18, %s30
    %p133 = scmp.eq.s32.totalorder %s132, 0
    %s135 = sadd.s32 %s134, 1
    %s136 = scalar_select %p133, %s134, %s135
    %p139 = pneg %p133
    %p140 = scmp.eq.s32.totalorder %s11, 7
    %p141 = por %p139, %p140
    %p142 = scmp.ne.s32.totalorder %s134, %s137
    %p143 = scmp.eq.s32.totalorder %s11, 0
    %p144 = por %p142, %p143
    %p145 = scmp.ne.s32.totalorder %s134, %s137
    %p146 = scmp.eq.s32.totalorder %s16, 7
    %p147 = por %p145, %p146
    %p148 = scmp.ne.s32.totalorder %s137, %s138
    %p149 = scmp.eq.s32.totalorder %s16, 0
    %p150 = por %p148, %p149
    %p151 = scmp.ne.s32.totalorder %s137, %s138
    %p152 = scmp.eq.s32.totalorder %s17, 7
    %p153 = por %p151, %p152
    %p155 = scmp.ne.s32.totalorder %s138, %s154
    %p156 = scmp.eq.s32.totalorder %s17, 0
    %p157 = por %p155, %p156
    %p158 = scmp.le.s32.totalorder 1, %s11
    %p159 = scmp.lt.s32.totalorder %s11, 9
    %p160 = pnand %p158, %p159
    %p161 = pneg %p160
    // Predicated region
    $region9: #{pcn_encoder.6} parent=5 // pred_check
      _
    $region10: #{pcn_encoder.6} parent=5 // pred_check_branch
      %163 = sbr.rel (%p160) target = $region12
    $region11: #{pcn_encoder.6} parent=5 // pred_region
      %s164 = ssub.s32 %s11, 1
      // Predicated region
      $region13: #{pcn_encoder.6} parent=11 // pred_check
        %p165 = pneg %p72
      $region14: #{pcn_encoder.6} parent=11 // pred_check_branch
        %167 = sbr.rel (%p165) target = $region16
      $region15: #{pcn_encoder.6} parent=11 // pred_region
        _
      $region16: #{pcn_encoder.6} parent=11 // pred_fallthru
        _
    $region12: #{pcn_encoder.6} parent=5 // pred_fallthru
      _
    %p168 = scmp.lt.s32.totalorder %s11, 8
    // Predicated region
    $region17: #{pcn_encoder.6} parent=5 // pred_check
      %p169 = pneg %p168
    $region18: #{pcn_encoder.6} parent=5 // pred_check_branch
      %171 = sbr.rel (%p169) target = $region20
    $region19: #{pcn_encoder.6} parent=5 // pred_region
      // Predicated region
      $region21: #{pcn_encoder.6} parent=19 // pred_check
        %p172 = pneg %p45
      $region22: #{pcn_encoder.6} parent=19 // pred_check_branch
        %174 = sbr.rel (%p172) target = $region24
      $region23: #{pcn_encoder.6} parent=19 // pred_region
        %s175 = smul.u32 16, %s19
        %p176 = scmp.lt.s32.totalorder %s18, 1
        %s177 = scalar_select %p176, %s18, 1
        %p178 = scmp.lt.s32.totalorder %s175, 63
        %s179 = scalar_select %p178, %s175, 63
        %s180 = smul.addr %s179, 2
        %s181 = smul.addr %s177, 128
        %s182 = sadd.s32 %s180, %s181
        %s183 = smul.addr %s182, 8
        %s184 = scalar_lea.vmem %s0, %s183
        %s185 = smul.u32 16, %s19
      $region24: #{pcn_encoder.6} parent=19 // pred_fallthru
        _
      // Predicated region
      $region25: #{pcn_encoder.6} parent=19 // pred_check
        %p186 = pneg %p92
      $region26: #{pcn_encoder.6} parent=19 // pred_check_branch
        %188 = sbr.rel (%p186) target = $region28
      $region27: #{pcn_encoder.6} parent=19 // pred_region
        %p189 = scmp.lt.s32.totalorder %s18, 1
        %s190 = scalar_select %p189, %s18, 1
        %s191 = smul.addr %s190, 4
        %s192 = scalar_lea.vmem %s2, %s191
      $region28: #{pcn_encoder.6} parent=19 // pred_fallthru
        _
    $region20: #{pcn_encoder.6} parent=5 // pred_fallthru
      _
    %p193 = scmp.le.s32.totalorder 1, %s11
    %p194 = scmp.lt.s32.totalorder %s11, 9
    %p195 = pnand %p193, %p194
    %p196 = pneg %p195
    // Predicated region
    $region29: #{pcn_encoder.6} parent=5 // pred_check
      _
    $region30: #{pcn_encoder.6} parent=5 // pred_check_branch
      %198 = sbr.rel (%p195) target = $region32
    $region31: #{pcn_encoder.6} parent=5 // pred_region
      %s199 = ssub.s32 %s11, 1
      %s200 = smul.u32 16, %s21
      %p201 = scmp.lt.s32.totalorder %s20, 1
      %s202 = scalar_select %p201, %s20, 1
      %p203 = scmp.lt.s32.totalorder %s200, 63
      %s204 = scalar_select %p203, %s200, 63
      %s205 = smul.addr %s204, 2
      %s206 = smul.addr %s202, 128
      %s207 = sadd.s32 %s205, %s206
      %s208 = smul.addr %s207, 8
      %s209 = scalar_lea.vmem %s0, %s208
      %p210 = pneg %p51
      %p211 = pneg %p48
      %p212 = pneg %p72
      %p213 = pneg %p69
      %p214 = scmp.lt.s32.totalorder %s20, 1
      %s215 = scalar_select %p214, %s20, 1
      %s216 = smul.addr %s215, 4
      %s217 = scalar_lea.vmem %s2, %s216
      %p218 = pneg %p98
      %p219 = pneg %p95
      %p220 = pneg %p124
      %p221 = pneg %p121
      %p222 = scmp.lt.s32.totalorder %s20, 1
      %s223 = scalar_select %p222, %s20, 1
      %s224 = smul.addr %s223, 4
      %s225 = scalar_lea.vmem %s3, %s224
      %p226 = pneg %p150
      %p227 = pneg %p147
      %p228 = scmp.lt.s32.totalorder %s20, 1
      %s229 = scalar_select %p228, %s20, 1
      %s230 = smul.addr %s229, 4
      %s231 = scalar_lea.vmem %s4, %s230
      %s232 = smul.u32 16, %s21
      %p233 = scmp.lt.s32.totalorder %s20, 1
      %s234 = scalar_select %p233, %s20, 1
      %p235 = scmp.lt.s32.totalorder %s232, 63
      %s236 = scalar_select %p235, %s232, 63
      %s237 = smul.addr %s236, 2
      %s238 = smul.addr %s234, 128
      %s239 = sadd.s32 %s237, %s238
      %s240 = smul.addr %s239, 8
      %s241 = scalar_lea.vmem %s0, %s240
      %s242 = smul.u32 16, %s21
      %p243 = scmp.lt.s32.totalorder %s20, 1
      %s244 = scalar_select %p243, %s20, 1
      %s245 = smul.addr %s244, 4
      %s246 = scalar_lea.vmem %s2, %s245
      %p247 = scmp.lt.s32.totalorder %s20, 1
      %s248 = scalar_select %p247, %s20, 1
      %s249 = smul.addr %s248, 4
      %s250 = scalar_lea.vmem %s3, %s249
      %p251 = scmp.lt.s32.totalorder %s20, 1
      %s252 = scalar_select %p251, %s20, 1
      %s253 = smul.addr %s252, 4
      %s254 = scalar_lea.vmem %s4, %s253
      %p255 = scmp.eq.s32.totalorder %s21, 0
      // Predicated region
      $region33: #{pcn_encoder.6} parent=31 // pred_check
        %p256 = pneg %p255
      $region34: #{pcn_encoder.6} parent=31 // pred_check_branch
        %258 = sbr.rel (%p256) target = $region36
      $region35: #{pcn_encoder.6} parent=31 // pred_region
        %v259 = vlaneseq
        %vm260 = vcmp.ge.s32.totalorder %v259, 0
        %vm261 = vcmp.lt.s32.totalorder %v259, 512
        %vm262 = vmand %vm260, %vm261
        %263 = vst.msk [vmem:[%s250] sm:$0xf] %vm262, 0.0
        %264 = vst.msk [vmem:[%s254] sm:$0xf] %vm262, 0.0
      $region36: #{pcn_encoder.6} parent=31 // pred_fallthru
        _
      %v265 = vld [vmem:[%s241] sm:$0xff]
      %v266 = vld [vmem:[%s241 + $0x8] sm:$0xff]
      %v267 = vld [vmem:[%s241 + $0x10] sm:$0xff]
      %v268 = vld [vmem:[%s241 + $0x18] sm:$0xff]
      %v269 = vld [vmem:[%s241 + $0x20] sm:$0xff]
      %v270 = vld [vmem:[%s241 + $0x28] sm:$0xff]
      %v271 = vld [vmem:[%s241 + $0x30] sm:$0xff]
      %v272 = vld [vmem:[%s241 + $0x38] sm:$0xff]
      %v273 = vld [vmem:[%s241 + $0x40] sm:$0xff]
      %v274 = vld [vmem:[%s241 + $0x48] sm:$0xff]
      %v275 = vld [vmem:[%s241 + $0x50] sm:$0xff]
      %v276 = vld [vmem:[%s241 + $0x58] sm:$0xff]
      %v277 = vld [vmem:[%s241 + $0x60] sm:$0xff]
      %v278 = vld [vmem:[%s241 + $0x68] sm:$0xff]
      %v279 = vld [vmem:[%s241 + $0x70] sm:$0xff]
      %v280 = vld [vmem:[%s241 + $0x78] sm:$0xff]
      %v281 = vld [vmem:[%s241 + $0x80] sm:$0xff]
      %v282 = vld [vmem:[%s241 + $0x88] sm:$0xff]
      %v283 = vld [vmem:[%s241 + $0x90] sm:$0xff]
      %v284 = vld [vmem:[%s241 + $0x98] sm:$0xff]
      %v285 = vld [vmem:[%s241 + $0xa0] sm:$0xff]
      %v286 = vld [vmem:[%s241 + $0xa8] sm:$0xff]
      %v287 = vld [vmem:[%s241 + $0xb0] sm:$0xff]
      %v288 = vld [vmem:[%s241 + $0xb8] sm:$0xff]
      %v289 = vld [vmem:[%s241 + $0xc0] sm:$0xff]
      %v290 = vld [vmem:[%s241 + $0xc8] sm:$0xff]
      %v291 = vld [vmem:[%s241 + $0xd0] sm:$0xff]
      %v292 = vld [vmem:[%s241 + $0xd8] sm:$0xff]
      %v293 = vld [vmem:[%s241 + $0xe0] sm:$0xff]
      %v294 = vld [vmem:[%s241 + $0xe8] sm:$0xff]
      %v295 = vld [vmem:[%s241 + $0xf0] sm:$0xff]
      %v296 = vld [vmem:[%s241 + $0xf8] sm:$0xff]
      %v297 = vld [vmem:[%s1] sm:$0xff]
      %v298 = vld [vmem:[%s1 + $0x8] sm:$0xff]
      %v299 = vld [vmem:[%s1 + $0x10] sm:$0xff]
      %v300 = vld [vmem:[%s1 + $0x18] sm:$0xff]
      %v301 = vld [vmem:[%s1 + $0x20] sm:$0xff]
      %v302 = vld [vmem:[%s1 + $0x28] sm:$0xff]
      %v303 = vld [vmem:[%s1 + $0x30] sm:$0xff]
      %v304 = vld [vmem:[%s1 + $0x38] sm:$0xff]
      %v305 = vld [vmem:[%s1 + $0x40] sm:$0xff]
      %v306 = vld [vmem:[%s1 + $0x48] sm:$0xff]
      %v307 = vld [vmem:[%s1 + $0x50] sm:$0xff]
      %v308 = vld [vmem:[%s1 + $0x58] sm:$0xff]
      %v309 = vld [vmem:[%s1 + $0x60] sm:$0xff]
      %v310 = vld [vmem:[%s1 + $0x68] sm:$0xff]
      %v311 = vld [vmem:[%s1 + $0x70] sm:$0xff]
      %v312 = vld [vmem:[%s1 + $0x78] sm:$0xff]
      %v313 = vld [vmem:[%s1 + $0x80] sm:$0xff]
      %v314 = vld [vmem:[%s1 + $0x88] sm:$0xff]
      %v315 = vld [vmem:[%s1 + $0x90] sm:$0xff]
      %v316 = vld [vmem:[%s1 + $0x98] sm:$0xff]
      %v317 = vld [vmem:[%s1 + $0xa0] sm:$0xff]
      %v318 = vld [vmem:[%s1 + $0xa8] sm:$0xff]
      %v319 = vld [vmem:[%s1 + $0xb0] sm:$0xff]
      %v320 = vld [vmem:[%s1 + $0xb8] sm:$0xff]
      %v321 = vld [vmem:[%s1 + $0xc0] sm:$0xff]
      %v322 = vld [vmem:[%s1 + $0xc8] sm:$0xff]
      %v323 = vld [vmem:[%s1 + $0xd0] sm:$0xff]
      %v324 = vld [vmem:[%s1 + $0xd8] sm:$0xff]
      %v325 = vld [vmem:[%s1 + $0xe0] sm:$0xff]
      %v326 = vld [vmem:[%s1 + $0xe8] sm:$0xff]
      %v327 = vld [vmem:[%s1 + $0xf0] sm:$0xff]
      %v328 = vld [vmem:[%s1 + $0xf8] sm:$0xff]
      %v329 = vld [vmem:[%s1 + $0x100] sm:$0xff]
      %v330 = vld [vmem:[%s1 + $0x108] sm:$0xff]
      %v331 = vld [vmem:[%s1 + $0x110] sm:$0xff]
      %v332 = vld [vmem:[%s1 + $0x118] sm:$0xff]
      %v333 = vld [vmem:[%s1 + $0x120] sm:$0xff]
      %v334 = vld [vmem:[%s1 + $0x128] sm:$0xff]
      %v335 = vld [vmem:[%s1 + $0x130] sm:$0xff]
      %v336 = vld [vmem:[%s1 + $0x138] sm:$0xff]
      %v337 = vld [vmem:[%s1 + $0x140] sm:$0xff]
      %v338 = vld [vmem:[%s1 + $0x148] sm:$0xff]
      %v339 = vld [vmem:[%s1 + $0x150] sm:$0xff]
      %v340 = vld [vmem:[%s1 + $0x158] sm:$0xff]
      %v341 = vld [vmem:[%s1 + $0x160] sm:$0xff]
      %v342 = vld [vmem:[%s1 + $0x168] sm:$0xff]
      %v343 = vld [vmem:[%s1 + $0x170] sm:$0xff]
      %v344 = vld [vmem:[%s1 + $0x178] sm:$0xff]
      %v345 = vld [vmem:[%s1 + $0x180] sm:$0xff]
      %v346 = vld [vmem:[%s1 + $0x188] sm:$0xff]
      %v347 = vld [vmem:[%s1 + $0x190] sm:$0xff]
      %v348 = vld [vmem:[%s1 + $0x198] sm:$0xff]
      %v349 = vld [vmem:[%s1 + $0x1a0] sm:$0xff]
      %v350 = vld [vmem:[%s1 + $0x1a8] sm:$0xff]
      %v351 = vld [vmem:[%s1 + $0x1b0] sm:$0xff]
      %v352 = vld [vmem:[%s1 + $0x1b8] sm:$0xff]
      %v353 = vld [vmem:[%s1 + $0x1c0] sm:$0xff]
      %v354 = vld [vmem:[%s1 + $0x1c8] sm:$0xff]
      %v355 = vld [vmem:[%s1 + $0x1d0] sm:$0xff]
      %v356 = vld [vmem:[%s1 + $0x1d8] sm:$0xff]
      %v357 = vld [vmem:[%s1 + $0x1e0] sm:$0xff]
      %v358 = vld [vmem:[%s1 + $0x1e8] sm:$0xff]
      %v359 = vld [vmem:[%s1 + $0x1f0] sm:$0xff]
      %v360 = vld [vmem:[%s1 + $0x1f8] sm:$0xff]
      %v361 = vld [vmem:[%s1 + $0x200] sm:$0xff]
      %v362 = vld [vmem:[%s1 + $0x208] sm:$0xff]
      %v363 = vld [vmem:[%s1 + $0x210] sm:$0xff]
      %v364 = vld [vmem:[%s1 + $0x218] sm:$0xff]
      %v365 = vld [vmem:[%s1 + $0x220] sm:$0xff]
      %v366 = vld [vmem:[%s1 + $0x228] sm:$0xff]
      %v367 = vld [vmem:[%s1 + $0x230] sm:$0xff]
      %v368 = vld [vmem:[%s1 + $0x238] sm:$0xff]
      %v369 = vld [vmem:[%s1 + $0x240] sm:$0xff]
      %v370 = vld [vmem:[%s1 + $0x248] sm:$0xff]
      %v371 = vld [vmem:[%s1 + $0x250] sm:$0xff]
      %v372 = vld [vmem:[%s1 + $0x258] sm:$0xff]
      %v373 = vld [vmem:[%s1 + $0x260] sm:$0xff]
      %v374 = vld [vmem:[%s1 + $0x268] sm:$0xff]
      %v375 = vld [vmem:[%s1 + $0x270] sm:$0xff]
      %v376 = vld [vmem:[%s1 + $0x278] sm:$0xff]
      %v377 = vld [vmem:[%s1 + $0x280] sm:$0xff]
      %v378 = vld [vmem:[%s1 + $0x288] sm:$0xff]
      %v379 = vld [vmem:[%s1 + $0x290] sm:$0xff]
      %v380 = vld [vmem:[%s1 + $0x298] sm:$0xff]
      %v381 = vld [vmem:[%s1 + $0x2a0] sm:$0xff]
      %v382 = vld [vmem:[%s1 + $0x2a8] sm:$0xff]
      %v383 = vld [vmem:[%s1 + $0x2b0] sm:$0xff]
      %v384 = vld [vmem:[%s1 + $0x2b8] sm:$0xff]
      %v385 = vld [vmem:[%s1 + $0x2c0] sm:$0xff]
      %v386 = vld [vmem:[%s1 + $0x2c8] sm:$0xff]
      %v387 = vld [vmem:[%s1 + $0x2d0] sm:$0xff]
      %v388 = vld [vmem:[%s1 + $0x2d8] sm:$0xff]
      %v389 = vld [vmem:[%s1 + $0x2e0] sm:$0xff]
      %v390 = vld [vmem:[%s1 + $0x2e8] sm:$0xff]
      %v391 = vld [vmem:[%s1 + $0x2f0] sm:$0xff]
      %v392 = vld [vmem:[%s1 + $0x2f8] sm:$0xff]
      %v393 = vld [vmem:[%s1 + $0x300] sm:$0xff]
      %v394 = vld [vmem:[%s1 + $0x308] sm:$0xff]
      %v395 = vld [vmem:[%s1 + $0x310] sm:$0xff]
      %v396 = vld [vmem:[%s1 + $0x318] sm:$0xff]
      %v397 = vld [vmem:[%s1 + $0x320] sm:$0xff]
      %v398 = vld [vmem:[%s1 + $0x328] sm:$0xff]
      %v399 = vld [vmem:[%s1 + $0x330] sm:$0xff]
      %v400 = vld [vmem:[%s1 + $0x338] sm:$0xff]
      %v401 = vld [vmem:[%s1 + $0x340] sm:$0xff]
      %v402 = vld [vmem:[%s1 + $0x348] sm:$0xff]
      %v403 = vld [vmem:[%s1 + $0x350] sm:$0xff]
      %v404 = vld [vmem:[%s1 + $0x358] sm:$0xff]
      %v405 = vld [vmem:[%s1 + $0x360] sm:$0xff]
      %v406 = vld [vmem:[%s1 + $0x368] sm:$0xff]
      %v407 = vld [vmem:[%s1 + $0x370] sm:$0xff]
      %v408 = vld [vmem:[%s1 + $0x378] sm:$0xff]
      %v409 = vld [vmem:[%s1 + $0x380] sm:$0xff]
      %v410 = vld [vmem:[%s1 + $0x388] sm:$0xff]
      %v411 = vld [vmem:[%s1 + $0x390] sm:$0xff]
      %v412 = vld [vmem:[%s1 + $0x398] sm:$0xff]
      %v413 = vld [vmem:[%s1 + $0x3a0] sm:$0xff]
      %v414 = vld [vmem:[%s1 + $0x3a8] sm:$0xff]
      %v415 = vld [vmem:[%s1 + $0x3b0] sm:$0xff]
      %v416 = vld [vmem:[%s1 + $0x3b8] sm:$0xff]
      %v417 = vld [vmem:[%s1 + $0x3c0] sm:$0xff]
      %v418 = vld [vmem:[%s1 + $0x3c8] sm:$0xff]
      %v419 = vld [vmem:[%s1 + $0x3d0] sm:$0xff]
      %v420 = vld [vmem:[%s1 + $0x3d8] sm:$0xff]
      %v421 = vld [vmem:[%s1 + $0x3e0] sm:$0xff]
      %v422 = vld [vmem:[%s1 + $0x3e8] sm:$0xff]
      %v423 = vld [vmem:[%s1 + $0x3f0] sm:$0xff]
      %v424 = vld [vmem:[%s1 + $0x3f8] sm:$0xff]
      %v425 = vld [vmem:[%s246] sm:$0xf]
      %v427 = vlaneseq
      %v428 = vshrl.u32 %v427, 7
      %v429 = vsub.s32 0, %v428
      %v430 = vrot.slane %v425, %v429
      %v431 = vlaneseq
      %v432 = vshrl.u32 %v431, 7
      %v433 = vsub.s32 1, %v432
      %v434 = vrot.slane %v425, %v433
      %v435 = vlaneseq
      %v436 = vshrl.u32 %v435, 7
      %v437 = vsub.s32 2, %v436
      %v438 = vrot.slane %v425, %v437
      %v439 = vlaneseq
      %v440 = vshrl.u32 %v439, 7
      %v441 = vsub.s32 3, %v440
      %v442 = vrot.slane %v425, %v441
      %447 = vmatprep.subr.mxu0 %v358
      %448 = vmatpush1.msra.mxu0 %v357
      %449 = vmatprep.subr.mxu0 %v354
      %450 = vmatpush1.msra.mxu0 %v353
      %451 = vmatprep.subr.mxu0 %v350
      %452 = vmatpush1.msra.mxu0 %v349
      %453 = vmatprep.subr.mxu0 %v346
      %454 = vmatpush1.msra.mxu0 %v345
      %455 = vmatprep.subr.mxu0 %v342
      %456 = vmatpush1.msra.mxu0 %v341
      %457 = vmatprep.subr.mxu0 %v338
      %458 = vmatpush1.msra.mxu0 %v337
      %459 = vmatprep.subr.mxu0 %v334
      %460 = vmatpush1.msra.mxu0 %v333
      %461 = vmatprep.subr.mxu0 %v330
      %462 = vmatpush1.msra.mxu0 %v329
      %463 = vmatprep.subr.mxu0 %v326
      %464 = vmatpush1.msra.mxu0 %v325
      %465 = vmatprep.subr.mxu0 %v322
      %466 = vmatpush1.msra.mxu0 %v321
      %467 = vmatprep.subr.mxu0 %v318
      %468 = vmatpush1.msra.mxu0 %v317
      %469 = vmatprep.subr.mxu0 %v314
      %470 = vmatpush1.msra.mxu0 %v313
      %471 = vmatprep.subr.mxu0 %v310
      %472 = vmatpush1.msra.mxu0 %v309
      %473 = vmatprep.subr.mxu0 %v306
      %474 = vmatpush1.msra.mxu0 %v305
      %475 = vmatprep.subr.mxu0 %v302
      %476 = vmatpush1.msra.mxu0 %v301
      %477 = vmatprep.subr.mxu0 %v298
      %478 = vmatpush1.msra.mxu0 %v297
      %479 = vmatprep.subr.mxu0 %v422
      %480 = vmatpush2.msra.mxu0 %v421
      %481 = vmatprep.subr.mxu0 %v418
      %482 = vmatpush2.msra.mxu0 %v417
      %483 = vmatprep.subr.mxu0 %v414
      %484 = vmatpush2.msra.mxu0 %v413
      %485 = vmatprep.subr.mxu0 %v410
      %486 = vmatpush2.msra.mxu0 %v409
      %487 = vmatprep.subr.mxu0 %v406
      %488 = vmatpush2.msra.mxu0 %v405
      %489 = vmatprep.subr.mxu0 %v402
      %490 = vmatpush2.msra.mxu0 %v401
      %491 = vmatprep.subr.mxu0 %v398
      %492 = vmatpush2.msra.mxu0 %v397
      %493 = vmatprep.subr.mxu0 %v394
      %494 = vmatpush2.msra.mxu0 %v393
      %495 = vmatprep.subr.mxu0 %v390
      %496 = vmatpush2.msra.mxu0 %v389
      %497 = vmatprep.subr.mxu0 %v386
      %498 = vmatpush2.msra.mxu0 %v385
      %499 = vmatprep.subr.mxu0 %v382
      %500 = vmatpush2.msra.mxu0 %v381
      %501 = vmatprep.subr.mxu0 %v378
      %502 = vmatpush2.msra.mxu0 %v377
      %503 = vmatprep.subr.mxu0 %v374
      %504 = vmatpush2.msra.mxu0 %v373
      %505 = vmatprep.subr.mxu0 %v370
      %506 = vmatpush2.msra.mxu0 %v369
      %507 = vmatprep.subr.mxu0 %v366
      %508 = vmatpush2.msra.mxu0 %v365
      %509 = vmatprep.subr.mxu0 %v362
      %510 = vmatpush2.msra.mxu0 %v361
      %511 = vmatprep.mubr.f32.mxu0 %v266
      %512 = vmatmul.mubr.f32.gmra.mxu0 %v265
      %v513 = vpop.f32.mrf.mxu0
      %v514 = vadd.f32 %v430, %v513
      %v515 = vpop.f32.mrf.mxu0
      %v516 = vadd.f32 %v434, %v515
      %517 = vmatprep.mubr.f32.mxu0 %v268
      %518 = vmatmul.mubr.f32.gmra.mxu0 %v267
      %v519 = vpop.f32.mrf.mxu0
      %v520 = vadd.f32 %v430, %v519
      %v521 = vpop.f32.mrf.mxu0
      %v522 = vadd.f32 %v434, %v521
      %523 = vmatprep.mubr.f32.mxu0 %v270
      %524 = vmatmul.mubr.f32.gmra.mxu0 %v269
      %v525 = vpop.f32.mrf.mxu0
      %v526 = vadd.f32 %v430, %v525
      %v527 = vpop.f32.mrf.mxu0
      %v528 = vadd.f32 %v434, %v527
      %529 = vmatprep.mubr.f32.mxu0 %v272
      %530 = vmatmul.mubr.f32.gmra.mxu0 %v271
      %v531 = vpop.f32.mrf.mxu0
      %v532 = vadd.f32 %v430, %v531
      %v533 = vpop.f32.mrf.mxu0
      %v534 = vadd.f32 %v434, %v533
      %535 = vmatprep.mubr.f32.mxu0 %v274
      %536 = vmatmul.mubr.f32.gmra.mxu0 %v273
      %v537 = vpop.f32.mrf.mxu0
      %v538 = vadd.f32 %v430, %v537
      %v539 = vpop.f32.mrf.mxu0
      %v540 = vadd.f32 %v434, %v539
      %541 = vmatprep.mubr.f32.mxu0 %v276
      %542 = vmatmul.mubr.f32.gmra.mxu0 %v275
      %v543 = vpop.f32.mrf.mxu0
      %v544 = vadd.f32 %v430, %v543
      %v545 = vpop.f32.mrf.mxu0
      %v546 = vadd.f32 %v434, %v545
      %547 = vmatprep.mubr.f32.mxu0 %v278
      %548 = vmatmul.mubr.f32.gmra.mxu0 %v277
      %v549 = vpop.f32.mrf.mxu0
      %v550 = vadd.f32 %v430, %v549
      %v551 = vpop.f32.mrf.mxu0
      %v552 = vadd.f32 %v434, %v551
      %553 = vmatprep.mubr.f32.mxu0 %v280
      %554 = vmatmul.mubr.f32.gmra.mxu0 %v279
      %v555 = vpop.f32.mrf.mxu0
      %v556 = vadd.f32 %v430, %v555
      %v557 = vpop.f32.mrf.mxu0
      %v558 = vadd.f32 %v434, %v557
      %559 = vmatprep.mubr.f32.mxu0 %v282
      %560 = vmatmul.mubr.f32.gmra.mxu0 %v281
      %v561 = vpop.f32.mrf.mxu0
      %v562 = vadd.f32 %v430, %v561
      %v563 = vpop.f32.mrf.mxu0
      %v564 = vadd.f32 %v434, %v563
      %565 = vmatprep.mubr.f32.mxu0 %v284
      %566 = vmatmul.mubr.f32.gmra.mxu0 %v283
      %v567 = vpop.f32.mrf.mxu0
      %v568 = vadd.f32 %v430, %v567
      %v569 = vpop.f32.mrf.mxu0
      %v570 = vadd.f32 %v434, %v569
      %571 = vmatprep.mubr.f32.mxu0 %v286
      %572 = vmatmul.mubr.f32.gmra.mxu0 %v285
      %v573 = vpop.f32.mrf.mxu0
      %v574 = vadd.f32 %v430, %v573
      %v575 = vpop.f32.mrf.mxu0
      %v576 = vadd.f32 %v434, %v575
      %577 = vmatprep.mubr.f32.mxu0 %v288
      %578 = vmatmul.mubr.f32.gmra.mxu0 %v287
      %v579 = vpop.f32.mrf.mxu0
      %v580 = vadd.f32 %v430, %v579
      %v581 = vpop.f32.mrf.mxu0
      %v582 = vadd.f32 %v434, %v581
      %583 = vmatprep.mubr.f32.mxu0 %v290
      %584 = vmatmul.mubr.f32.gmra.mxu0 %v289
      %v585 = vpop.f32.mrf.mxu0
      %v586 = vadd.f32 %v430, %v585
      %v587 = vpop.f32.mrf.mxu0
      %v588 = vadd.f32 %v434, %v587
      %589 = vmatprep.mubr.f32.mxu0 %v292
      %590 = vmatmul.mubr.f32.gmra.mxu0 %v291
      %v591 = vpop.f32.mrf.mxu0
      %v592 = vadd.f32 %v430, %v591
      %v593 = vpop.f32.mrf.mxu0
      %v594 = vadd.f32 %v434, %v593
      %595 = vmatprep.mubr.f32.mxu0 %v294
      %596 = vmatmul.mubr.f32.gmra.mxu0 %v293
      %v597 = vpop.f32.mrf.mxu0
      %v598 = vadd.f32 %v430, %v597
      %v599 = vpop.f32.mrf.mxu0
      %v600 = vadd.f32 %v434, %v599
      %601 = vmatprep.mubr.f32.mxu0 %v296
      %602 = vmatmul.mubr.f32.gmra.mxu0 %v295
      %v603 = vpop.f32.mrf.mxu0
      %v604 = vadd.f32 %v430, %v603
      %v605 = vpop.f32.mrf.mxu0
      %v606 = vadd.f32 %v434, %v605
      %607 = vdwg.mxu0
      %608 = vmatprep.subr.mxu0 %v360
      %609 = vmatpush1.msra.mxu0 %v359
      %610 = vmatprep.subr.mxu0 %v356
      %611 = vmatpush1.msra.mxu0 %v355
      %612 = vmatprep.subr.mxu0 %v352
      %613 = vmatpush1.msra.mxu0 %v351
      %614 = vmatprep.subr.mxu0 %v348
      %615 = vmatpush1.msra.mxu0 %v347
      %616 = vmatprep.subr.mxu0 %v344
      %617 = vmatpush1.msra.mxu0 %v343
      %618 = vmatprep.subr.mxu0 %v340
      %619 = vmatpush1.msra.mxu0 %v339
      %620 = vmatprep.subr.mxu0 %v336
      %621 = vmatpush1.msra.mxu0 %v335
      %622 = vmatprep.subr.mxu0 %v332
      %623 = vmatpush1.msra.mxu0 %v331
      %624 = vmatprep.subr.mxu0 %v328
      %625 = vmatpush1.msra.mxu0 %v327
      %626 = vmatprep.subr.mxu0 %v324
      %627 = vmatpush1.msra.mxu0 %v323
      %628 = vmatprep.subr.mxu0 %v320
      %629 = vmatpush1.msra.mxu0 %v319
      %630 = vmatprep.subr.mxu0 %v316
      %631 = vmatpush1.msra.mxu0 %v315
      %632 = vmatprep.subr.mxu0 %v312
      %633 = vmatpush1.msra.mxu0 %v311
      %634 = vmatprep.subr.mxu0 %v308
      %635 = vmatpush1.msra.mxu0 %v307
      %636 = vmatprep.subr.mxu0 %v304
      %637 = vmatpush1.msra.mxu0 %v303
      %638 = vmatprep.subr.mxu0 %v300
      %639 = vmatpush1.msra.mxu0 %v299
      %640 = vmatprep.subr.mxu0 %v424
      %641 = vmatpush2.msra.mxu0 %v423
      %642 = vmatprep.subr.mxu0 %v420
      %643 = vmatpush2.msra.mxu0 %v419
      %644 = vmatprep.subr.mxu0 %v416
      %645 = vmatpush2.msra.mxu0 %v415
      %646 = vmatprep.subr.mxu0 %v412
      %647 = vmatpush2.msra.mxu0 %v411
      %648 = vmatprep.subr.mxu0 %v408
      %649 = vmatpush2.msra.mxu0 %v407
      %650 = vmatprep.subr.mxu0 %v404
      %651 = vmatpush2.msra.mxu0 %v403
      %652 = vmatprep.subr.mxu0 %v400
      %653 = vmatpush2.msra.mxu0 %v399
      %654 = vmatprep.subr.mxu0 %v396
      %655 = vmatpush2.msra.mxu0 %v395
      %656 = vmatprep.subr.mxu0 %v392
      %657 = vmatpush2.msra.mxu0 %v391
      %658 = vmatprep.subr.mxu0 %v388
      %659 = vmatpush2.msra.mxu0 %v387
      %660 = vmatprep.subr.mxu0 %v384
      %661 = vmatpush2.msra.mxu0 %v383
      %662 = vmatprep.subr.mxu0 %v380
      %663 = vmatpush2.msra.mxu0 %v379
      %664 = vmatprep.subr.mxu0 %v376
      %665 = vmatpush2.msra.mxu0 %v375
      %666 = vmatprep.subr.mxu0 %v372
      %667 = vmatpush2.msra.mxu0 %v371
      %668 = vmatprep.subr.mxu0 %v368
      %669 = vmatpush2.msra.mxu0 %v367
      %670 = vmatprep.subr.mxu0 %v364
      %671 = vmatpush2.msra.mxu0 %v363
      %672 = vmatprep.mubr.f32.mxu0 %v266
      %673 = vmatmul.mubr.f32.gmra.mxu0 %v265
      %v674 = vpop.f32.mrf.mxu0
      %v675 = vadd.f32 %v438, %v674
      %v676 = vpop.f32.mrf.mxu0
      %v677 = vadd.f32 %v442, %v676
      %678 = vmatprep.mubr.f32.mxu0 %v268
      %679 = vmatmul.mubr.f32.gmra.mxu0 %v267
      %v680 = vpop.f32.mrf.mxu0
      %v681 = vadd.f32 %v438, %v680
      %v682 = vpop.f32.mrf.mxu0
      %v683 = vadd.f32 %v442, %v682
      %684 = vmatprep.mubr.f32.mxu0 %v270
      %685 = vmatmul.mubr.f32.gmra.mxu0 %v269
      %v686 = vpop.f32.mrf.mxu0
      %v687 = vadd.f32 %v438, %v686
      %v688 = vpop.f32.mrf.mxu0
      %v689 = vadd.f32 %v442, %v688
      %690 = vmatprep.mubr.f32.mxu0 %v272
      %691 = vmatmul.mubr.f32.gmra.mxu0 %v271
      %v692 = vpop.f32.mrf.mxu0
      %v693 = vadd.f32 %v438, %v692
      %v694 = vpop.f32.mrf.mxu0
      %v695 = vadd.f32 %v442, %v694
      %696 = vmatprep.mubr.f32.mxu0 %v274
      %697 = vmatmul.mubr.f32.gmra.mxu0 %v273
      %v698 = vpop.f32.mrf.mxu0
      %v699 = vadd.f32 %v438, %v698
      %v700 = vpop.f32.mrf.mxu0
      %v701 = vadd.f32 %v442, %v700
      %702 = vmatprep.mubr.f32.mxu0 %v276
      %703 = vmatmul.mubr.f32.gmra.mxu0 %v275
      %v704 = vpop.f32.mrf.mxu0
      %v705 = vadd.f32 %v438, %v704
      %v706 = vpop.f32.mrf.mxu0
      %v707 = vadd.f32 %v442, %v706
      %708 = vmatprep.mubr.f32.mxu0 %v278
      %709 = vmatmul.mubr.f32.gmra.mxu0 %v277
      %v710 = vpop.f32.mrf.mxu0
      %v711 = vadd.f32 %v438, %v710
      %v712 = vpop.f32.mrf.mxu0
      %v713 = vadd.f32 %v442, %v712
      %714 = vmatprep.mubr.f32.mxu0 %v280
      %715 = vmatmul.mubr.f32.gmra.mxu0 %v279
      %v716 = vpop.f32.mrf.mxu0
      %v717 = vadd.f32 %v438, %v716
      %v718 = vpop.f32.mrf.mxu0
      %v719 = vadd.f32 %v442, %v718
      %720 = vmatprep.mubr.f32.mxu0 %v282
      %721 = vmatmul.mubr.f32.gmra.mxu0 %v281
      %v722 = vpop.f32.mrf.mxu0
      %v723 = vadd.f32 %v438, %v722
      %v724 = vpop.f32.mrf.mxu0
      %v725 = vadd.f32 %v442, %v724
      %726 = vmatprep.mubr.f32.mxu0 %v284
      %727 = vmatmul.mubr.f32.gmra.mxu0 %v283
      %v728 = vpop.f32.mrf.mxu0
      %v729 = vadd.f32 %v438, %v728
      %v730 = vpop.f32.mrf.mxu0
      %v731 = vadd.f32 %v442, %v730
      %732 = vmatprep.mubr.f32.mxu0 %v286
      %733 = vmatmul.mubr.f32.gmra.mxu0 %v285
      %v734 = vpop.f32.mrf.mxu0
      %v735 = vadd.f32 %v438, %v734
      %v736 = vpop.f32.mrf.mxu0
      %v737 = vadd.f32 %v442, %v736
      %738 = vmatprep.mubr.f32.mxu0 %v288
      %739 = vmatmul.mubr.f32.gmra.mxu0 %v287
      %v740 = vpop.f32.mrf.mxu0
      %v741 = vadd.f32 %v438, %v740
      %v742 = vpop.f32.mrf.mxu0
      %v743 = vadd.f32 %v442, %v742
      %744 = vmatprep.mubr.f32.mxu0 %v290
      %745 = vmatmul.mubr.f32.gmra.mxu0 %v289
      %v746 = vpop.f32.mrf.mxu0
      %v747 = vadd.f32 %v438, %v746
      %v748 = vpop.f32.mrf.mxu0
      %v749 = vadd.f32 %v442, %v748
      %750 = vmatprep.mubr.f32.mxu0 %v292
      %751 = vmatmul.mubr.f32.gmra.mxu0 %v291
      %v752 = vpop.f32.mrf.mxu0
      %v753 = vadd.f32 %v438, %v752
      %v754 = vpop.f32.mrf.mxu0
      %v755 = vadd.f32 %v442, %v754
      %756 = vmatprep.mubr.f32.mxu0 %v294
      %757 = vmatmul.mubr.f32.gmra.mxu0 %v293
      %v758 = vpop.f32.mrf.mxu0
      %v759 = vadd.f32 %v438, %v758
      %v760 = vpop.f32.mrf.mxu0
      %v761 = vadd.f32 %v442, %v760
      %762 = vmatprep.mubr.f32.mxu0 %v296
      %763 = vmatmul.mubr.f32.gmra.mxu0 %v295
      %v764 = vpop.f32.mrf.mxu0
      %v765 = vadd.f32 %v438, %v764
      %v766 = vpop.f32.mrf.mxu0
      %v767 = vadd.f32 %v442, %v766
      %768 = vdwg.mxu0
      %v769 = vld [vmem:[%s250] sm:$0xf]
      %v770 = vadd.f32 %v514, %v520
      %v771 = vadd.f32 %v770, %v526
      %v772 = vadd.f32 %v771, %v532
      %v773 = vadd.f32 %v772, %v538
      %v774 = vadd.f32 %v773, %v544
      %v775 = vadd.f32 %v774, %v550
      %v776 = vadd.f32 %v775, %v556
      %v777 = vadd.f32 %v776, %v562
      %v778 = vadd.f32 %v777, %v568
      %v779 = vadd.f32 %v778, %v574
      %v780 = vadd.f32 %v779, %v580
      %v781 = vadd.f32 %v780, %v586
      %v782 = vadd.f32 %v781, %v592
      %v783 = vadd.f32 %v782, %v598
      %v784 = vadd.f32 %v783, %v604
      %v785 = vrot.slane %v784, 4
      %v786 = vadd.f32 %v784, %v785
      %v787 = vrot.slane %v786, 2
      %v788 = vadd.f32 %v786, %v787
      %v789 = vrot.slane %v788, 1
      %v790 = vadd.f32 %v788, %v789
      %v791 = vadd.f32 %v516, %v522
      %v792 = vadd.f32 %v791, %v528
      %v793 = vadd.f32 %v792, %v534
      %v794 = vadd.f32 %v793, %v540
      %v795 = vadd.f32 %v794, %v546
      %v796 = vadd.f32 %v795, %v552
      %v797 = vadd.f32 %v796, %v558
      %v798 = vadd.f32 %v797, %v564
      %v799 = vadd.f32 %v798, %v570
      %v800 = vadd.f32 %v799, %v576
      %v801 = vadd.f32 %v800, %v582
      %v802 = vadd.f32 %v801, %v588
      %v803 = vadd.f32 %v802, %v594
      %v804 = vadd.f32 %v803, %v600
      %v805 = vadd.f32 %v804, %v606
      %v806 = vrot.slane %v805, 4
      %v807 = vadd.f32 %v805, %v806
      %v808 = vrot.slane %v807, 2
      %v809 = vadd.f32 %v807, %v808
      %v810 = vrot.slane %v809, 1
      %v811 = vadd.f32 %v809, %v810
      %v812 = vadd.f32 %v675, %v681
      %v813 = vadd.f32 %v812, %v687
      %v814 = vadd.f32 %v813, %v693
      %v815 = vadd.f32 %v814, %v699
      %v816 = vadd.f32 %v815, %v705
      %v817 = vadd.f32 %v816, %v711
      %v818 = vadd.f32 %v817, %v717
      %v819 = vadd.f32 %v818, %v723
      %v820 = vadd.f32 %v819, %v729
      %v821 = vadd.f32 %v820, %v735
      %v822 = vadd.f32 %v821, %v741
      %v823 = vadd.f32 %v822, %v747
      %v824 = vadd.f32 %v823, %v753
      %v825 = vadd.f32 %v824, %v759
      %v826 = vadd.f32 %v825, %v765
      %v827 = vrot.slane %v826, 4
      %v828 = vadd.f32 %v826, %v827
      %v829 = vrot.slane %v828, 2
      %v830 = vadd.f32 %v828, %v829
      %v831 = vrot.slane %v830, 1
      %v832 = vadd.f32 %v830, %v831
      %v833 = vadd.f32 %v677, %v683
      %v834 = vadd.f32 %v833, %v689
      %v835 = vadd.f32 %v834, %v695
      %v836 = vadd.f32 %v835, %v701
      %v837 = vadd.f32 %v836, %v707
      %v838 = vadd.f32 %v837, %v713
      %v839 = vadd.f32 %v838, %v719
      %v840 = vadd.f32 %v839, %v725
      %v841 = vadd.f32 %v840, %v731
      %v842 = vadd.f32 %v841, %v737
      %v843 = vadd.f32 %v842, %v743
      %v844 = vadd.f32 %v843, %v749
      %v845 = vadd.f32 %v844, %v755
      %v846 = vadd.f32 %v845, %v761
      %v847 = vadd.f32 %v846, %v767
      %v848 = vrot.slane %v847, 4
      %v849 = vadd.f32 %v847, %v848
      %v850 = vrot.slane %v849, 2
      %v851 = vadd.f32 %v849, %v850
      %v852 = vrot.slane %v851, 1
      %v853 = vadd.f32 %v851, %v852
      %v858 = vcombine.low %v790, %v811
      %v859 = vcombine.low %v832, %v853
      %v861 = vunpack.c.l.s4 1966171168
      %v862 = vunpack.c.0.s8 %v861
      %v863 = vlaneseq
      %v864 = vshrl.u32 %v863, 7
      %v865 = vsub.s32 %v862, %v864
      %v866 = vrot.slane %v858, %v865
      %v868 = vunpack.c.l.s4 1966171168
      %v869 = vunpack.c.0.s8 %v868
      %v870 = vlaneseq
      %v871 = vshrl.u32 %v870, 7
      %v872 = vsub.s32 %v869, %v871
      %v873 = vrot.slane %v859, %v872
      %v874 = vcombine.low %v866, %v873
      %v876 = vunpack.c.l.s4 1966171168
      %v877 = vunpack.c.0.s8 %v876
      %v878 = vlaneseq
      %v879 = vshrl.u32 %v878, 7
      %v880 = vsub.s32 %v877, %v879
      %v881 = vrot.slane %v874, %v880
      %v883 = vadd.f32 %v769, %v881
      %v884 = vlaneseq
      %vm885 = vcmp.ge.s32.totalorder %v884, 0
      %vm886 = vcmp.lt.s32.totalorder %v884, 512
      %vm887 = vmand %vm885, %vm886
      %888 = vst.msk [vmem:[%s250] sm:$0xf] %vm887, %v883
      %v889 = vld [vmem:[%s254] sm:$0xf]
      %v890 = vmul.f32 %v514, %v514
      %v891 = vmul.f32 %v516, %v516
      %v892 = vmul.f32 %v675, %v675
      %v893 = vmul.f32 %v677, %v677
      %v894 = vmul.f32 %v520, %v520
      %v895 = vmul.f32 %v522, %v522
      %v896 = vmul.f32 %v681, %v681
      %v897 = vmul.f32 %v683, %v683
      %v898 = vmul.f32 %v526, %v526
      %v899 = vmul.f32 %v528, %v528
      %v900 = vmul.f32 %v687, %v687
      %v901 = vmul.f32 %v689, %v689
      %v902 = vmul.f32 %v532, %v532
      %v903 = vmul.f32 %v534, %v534
      %v904 = vmul.f32 %v693, %v693
      %v905 = vmul.f32 %v695, %v695
      %v906 = vmul.f32 %v538, %v538
      %v907 = vmul.f32 %v540, %v540
      %v908 = vmul.f32 %v699, %v699
      %v909 = vmul.f32 %v701, %v701
      %v910 = vmul.f32 %v544, %v544
      %v911 = vmul.f32 %v546, %v546
      %v912 = vmul.f32 %v705, %v705
      %v913 = vmul.f32 %v707, %v707
      %v914 = vmul.f32 %v550, %v550
      %v915 = vmul.f32 %v552, %v552
      %v916 = vmul.f32 %v711, %v711
      %v917 = vmul.f32 %v713, %v713
      %v918 = vmul.f32 %v556, %v556
      %v919 = vmul.f32 %v558, %v558
      %v920 = vmul.f32 %v717, %v717
      %v921 = vmul.f32 %v719, %v719
      %v922 = vmul.f32 %v562, %v562
      %v923 = vmul.f32 %v564, %v564
      %v924 = vmul.f32 %v723, %v723
      %v925 = vmul.f32 %v725, %v725
      %v926 = vmul.f32 %v568, %v568
      %v927 = vmul.f32 %v570, %v570
      %v928 = vmul.f32 %v729, %v729
      %v929 = vmul.f32 %v731, %v731
      %v930 = vmul.f32 %v574, %v574
      %v931 = vmul.f32 %v576, %v576
      %v932 = vmul.f32 %v735, %v735
      %v933 = vmul.f32 %v737, %v737
      %v934 = vmul.f32 %v580, %v580
      %v935 = vmul.f32 %v582, %v582
      %v936 = vmul.f32 %v741, %v741
      %v937 = vmul.f32 %v743, %v743
      %v938 = vmul.f32 %v586, %v586
      %v939 = vmul.f32 %v588, %v588
      %v940 = vmul.f32 %v747, %v747
      %v941 = vmul.f32 %v749, %v749
      %v942 = vmul.f32 %v592, %v592
      %v943 = vmul.f32 %v594, %v594
      %v944 = vmul.f32 %v753, %v753
      %v945 = vmul.f32 %v755, %v755
      %v946 = vmul.f32 %v598, %v598
      %v947 = vmul.f32 %v600, %v600
      %v948 = vmul.f32 %v759, %v759
      %v949 = vmul.f32 %v761, %v761
      %v950 = vmul.f32 %v604, %v604
      %v951 = vmul.f32 %v606, %v606
      %v952 = vmul.f32 %v765, %v765
      %v953 = vmul.f32 %v767, %v767
      %v954 = vadd.f32 %v890, %v894
      %v955 = vadd.f32 %v954, %v898
      %v956 = vadd.f32 %v955, %v902
      %v957 = vadd.f32 %v956, %v906
      %v958 = vadd.f32 %v957, %v910
      %v959 = vadd.f32 %v958, %v914
      %v960 = vadd.f32 %v959, %v918
      %v961 = vadd.f32 %v960, %v922
      %v962 = vadd.f32 %v961, %v926
      %v963 = vadd.f32 %v962, %v930
      %v964 = vadd.f32 %v963, %v934
      %v965 = vadd.f32 %v964, %v938
      %v966 = vadd.f32 %v965, %v942
      %v967 = vadd.f32 %v966, %v946
      %v968 = vadd.f32 %v967, %v950
      %v969 = vrot.slane %v968, 4
      %v970 = vadd.f32 %v968, %v969
      %v971 = vrot.slane %v970, 2
      %v972 = vadd.f32 %v970, %v971
      %v973 = vrot.slane %v972, 1
      %v974 = vadd.f32 %v972, %v973
      %v975 = vadd.f32 %v891, %v895
      %v976 = vadd.f32 %v975, %v899
      %v977 = vadd.f32 %v976, %v903
      %v978 = vadd.f32 %v977, %v907
      %v979 = vadd.f32 %v978, %v911
      %v980 = vadd.f32 %v979, %v915
      %v981 = vadd.f32 %v980, %v919
      %v982 = vadd.f32 %v981, %v923
      %v983 = vadd.f32 %v982, %v927
      %v984 = vadd.f32 %v983, %v931
      %v985 = vadd.f32 %v984, %v935
      %v986 = vadd.f32 %v985, %v939
      %v987 = vadd.f32 %v986, %v943
      %v988 = vadd.f32 %v987, %v947
      %v989 = vadd.f32 %v988, %v951
      %v990 = vrot.slane %v989, 4
      %v991 = vadd.f32 %v989, %v990
      %v992 = vrot.slane %v991, 2
      %v993 = vadd.f32 %v991, %v992
      %v994 = vrot.slane %v993, 1
      %v995 = vadd.f32 %v993, %v994
      %v996 = vadd.f32 %v892, %v896
      %v997 = vadd.f32 %v996, %v900
      %v998 = vadd.f32 %v997, %v904
      %v999 = vadd.f32 %v998, %v908
      %v1000 = vadd.f32 %v999, %v912
      %v1001 = vadd.f32 %v1000, %v916
      %v1002 = vadd.f32 %v1001, %v920
      %v1003 = vadd.f32 %v1002, %v924
      %v1004 = vadd.f32 %v1003, %v928
      %v1005 = vadd.f32 %v1004, %v932
      %v1006 = vadd.f32 %v1005, %v936
      %v1007 = vadd.f32 %v1006, %v940
      %v1008 = vadd.f32 %v1007, %v944
      %v1009 = vadd.f32 %v1008, %v948
      %v1010 = vadd.f32 %v1009, %v952
      %v1011 = vrot.slane %v1010, 4
      %v1012 = vadd.f32 %v1010, %v1011
      %v1013 = vrot.slane %v1012, 2
      %v1014 = vadd.f32 %v1012, %v1013
      %v1015 = vrot.slane %v1014, 1
      %v1016 = vadd.f32 %v1014, %v1015
      %v1017 = vadd.f32 %v893, %v897
      %v1018 = vadd.f32 %v1017, %v901
      %v1019 = vadd.f32 %v1018, %v905
      %v1020 = vadd.f32 %v1019, %v909
      %v1021 = vadd.f32 %v1020, %v913
      %v1022 = vadd.f32 %v1021, %v917
      %v1023 = vadd.f32 %v1022, %v921
      %v1024 = vadd.f32 %v1023, %v925
      %v1025 = vadd.f32 %v1024, %v929
      %v1026 = vadd.f32 %v1025, %v933
      %v1027 = vadd.f32 %v1026, %v937
      %v1028 = vadd.f32 %v1027, %v941
      %v1029 = vadd.f32 %v1028, %v945
      %v1030 = vadd.f32 %v1029, %v949
      %v1031 = vadd.f32 %v1030, %v953
      %v1032 = vrot.slane %v1031, 4
      %v1033 = vadd.f32 %v1031, %v1032
      %v1034 = vrot.slane %v1033, 2
      %v1035 = vadd.f32 %v1033, %v1034
      %v1036 = vrot.slane %v1035, 1
      %v1037 = vadd.f32 %v1035, %v1036
      %v1042 = vcombine.low %v974, %v995
      %v1043 = vcombine.low %v1016, %v1037
      %v1045 = vunpack.c.l.s4 1966171168
      %v1046 = vunpack.c.0.s8 %v1045
      %v1047 = vlaneseq
      %v1048 = vshrl.u32 %v1047, 7
      %v1049 = vsub.s32 %v1046, %v1048
      %v1050 = vrot.slane %v1042, %v1049
      %v1052 = vunpack.c.l.s4 1966171168
      %v1053 = vunpack.c.0.s8 %v1052
      %v1054 = vlaneseq
      %v1055 = vshrl.u32 %v1054, 7
      %v1056 = vsub.s32 %v1053, %v1055
      %v1057 = vrot.slane %v1043, %v1056
      %v1058 = vcombine.low %v1050, %v1057
      %v1060 = vunpack.c.l.s4 1966171168
      %v1061 = vunpack.c.0.s8 %v1060
      %v1062 = vlaneseq
      %v1063 = vshrl.u32 %v1062, 7
      %v1064 = vsub.s32 %v1061, %v1063
      %v1065 = vrot.slane %v1058, %v1064
      %v1067 = vadd.f32 %v889, %v1065
      %1068 = vst.msk [vmem:[%s254] sm:$0xf] %vm887, %v1067
      %p1069 = scmp.lt.s32.totalorder %s20, 1
      %s1070 = scalar_select %p1069, %s20, 1
      %s1071 = smul.addr %s1070, 4
      %s1072 = scalar_lea.vmem %s3, %s1071
      %p1073 = scmp.lt.s32.totalorder %s20, 1
      %s1074 = scalar_select %p1073, %s20, 1
      %s1075 = smul.addr %s1074, 4
      %s1076 = scalar_lea.vmem %s4, %s1075
      // Predicated region
      $region37: #{pcn_encoder.6} parent=31 // pred_check
        %p1077 = pneg %p121
      $region38: #{pcn_encoder.6} parent=31 // pred_check_branch
        %1079 = sbr.rel (%p1077) target = $region40
      $region39: #{pcn_encoder.6} parent=31 // pred_region
        _
      $region40: #{pcn_encoder.6} parent=31 // pred_fallthru
        _
      // Predicated region
      $region41: #{pcn_encoder.6} parent=31 // pred_check
        %p1080 = pneg %p147
      $region42: #{pcn_encoder.6} parent=31 // pred_check_branch
        %1082 = sbr.rel (%p1080) target = $region44
      $region43: #{pcn_encoder.6} parent=31 // pred_region
        _
      $region44: #{pcn_encoder.6} parent=31 // pred_fallthru
        _
    $region32: #{pcn_encoder.6} parent=5 // pred_fallthru
      _
    %p1083 = scmp.le.s32.totalorder 2, %s11
    // Predicated region
    $region45: #{pcn_encoder.6} parent=5 // pred_check
      %p1084 = pneg %p1083
    $region46: #{pcn_encoder.6} parent=5 // pred_check_branch
      %1086 = sbr.rel (%p1084) target = $region48
    $region47: #{pcn_encoder.6} parent=5 // pred_region
      %s1087 = ssub.s32 %s11, 2
      // Predicated region
      $region49: #{pcn_encoder.6} parent=47 // pred_check
        %p1088 = pneg %p127
      $region50: #{pcn_encoder.6} parent=47 // pred_check_branch
        %1090 = sbr.rel (%p1088) target = $region52
      $region51: #{pcn_encoder.6} parent=47 // pred_region
        %p1091 = scmp.lt.s32.totalorder %s22, 1
        %s1092 = scalar_select %p1091, %s22, 1
        %s1093 = smul.addr %s1092, 4
        %s1094 = scalar_lea.vmem %s3, %s1093
      $region52: #{pcn_encoder.6} parent=47 // pred_fallthru
        _
      // Predicated region
      $region53: #{pcn_encoder.6} parent=47 // pred_check
        %p1095 = pneg %p153
      $region54: #{pcn_encoder.6} parent=47 // pred_check_branch
        %1097 = sbr.rel (%p1095) target = $region56
      $region55: #{pcn_encoder.6} parent=47 // pred_region
        %p1098 = scmp.lt.s32.totalorder %s22, 1
        %s1099 = scalar_select %p1098, %s22, 1
        %s1100 = smul.addr %s1099, 4
        %s1101 = scalar_lea.vmem %s4, %s1100
      $region56: #{pcn_encoder.6} parent=47 // pred_fallthru
        _
    $region48: #{pcn_encoder.6} parent=5 // pred_fallthru
      _
  $region6: #{pcn_encoder.6} parent=0 // loop_footer
    %s15 = sadd.s32 1, %s11
  $region7: #{pcn_encoder.6} parent=0 // loop_footer_branch
    %10 = sbr.rel target = $region3
  $region8: #{pcn_encoder.6} parent=0 // loop_exit
    _

// kernel: pcn_encoder.7
$region0: #{pcn_encoder.7}
  #allocation0 [shape = 'u32[]', space=smem, size = 0x4, offset = 0x4, fixed_abs, tag = 'smem constant byte address 0x4 - core index']
  #allocation1 [shape = 'u32[144,128]{1,0:T(1,128)}', space=vmem, size = 0x12000, scoped, tag = 'internal scratch']
  %s0 = inlined_call_operand.vmem [shape: f32[2,512,256], index: 0, kind: input, shape index: {}]
  %s1 = inlined_call_operand.vmem [shape: f32[256,512], index: 1, kind: input, shape index: {}]
  %s2 = inlined_call_operand.vmem [shape: f32[2,1,512], index: 2, kind: input, shape index: {}]
  %s3 = inlined_call_operand.vmem [shape: f32[512,256], index: 3, kind: input, shape index: {}]
  %s4 = inlined_call_operand.vmem [shape: f32[1,256], index: 4, kind: input, shape index: {}]
  %s5 = inlined_call_operand.vmem [shape: f32[2,1,256], index: 5, kind: output, shape index: {0}]
  %s6 = inlined_call_operand.vmem [shape: f32[2,1,256], index: 6, kind: output, shape index: {1}]
  %s7 = inlined_call_operand.vmem [shape: f32[2,1,256], index: 7, kind: output, shape index: {2}]
  %s8 = inlined_call_operand.vmem [shape: f32[2,1,256], index: 8, kind: output, shape index: {3}]
  %9 = xla_tuple %s5, %s6, %s7, %s8
  %s10 = sld [smem:[#allocation0]]
  $region81: #{pcn_encoder.7} parent=0
    _
  %s12 = ssub.s32 1, %s10
  %s13 = scalar_select 0, %s12, %s10
  loop: start=0, step=1, limit=10
  $region2: #{pcn_encoder.7} parent=0 // loop_pre_header
    _
  $region3: #{pcn_encoder.7} parent=0 // loop_header
    %s15 = sphi 0, %s19
    %p16 = scmp.ge.s32.totalorder %s15, 10
    %s22 = sphi 0, %s34
    %s23 = sphi 0, %s30
    %s24 = sphi 0, %s22
    %s25 = sphi 0, %s23
    %s26 = sphi 0, %s24
    %s27 = sphi 0, %s25
    %s39 = sphi 0, %s41
    %s42 = sphi 0, %s39
    %s43 = sphi 0, %s42
    %s59 = sphi 0, %s43
    %s63 = sphi 0, %s63
    %s65 = sphi 0, %s63
    %s66 = sphi 0, %s65
    %s80 = sphi 0, %s66
    %s86 = sphi 0, %s88
    %s89 = sphi 0, %s86
    %s90 = sphi 0, %s89
    %s106 = sphi 0, %s90
    %s110 = sphi 0, %s110
    %s112 = sphi 0, %s110
    %s113 = sphi 0, %s112
    %s127 = sphi 0, %s113
    %s131 = sphi 0, %s131
    %s133 = sphi 0, %s131
    %s134 = sphi 0, %s133
    %s148 = sphi 0, %s134
    %s154 = sphi 0, %s156
    %s157 = sphi 0, %s154
    %s158 = sphi 0, %s157
    %s174 = sphi 0, %s158
    %s180 = sphi 0, %s182
    %s183 = sphi 0, %s180
    %s184 = sphi 0, %s183
    %s200 = sphi 0, %s184
    %s206 = sphi 0, %s208
    %s209 = sphi 0, %s206
    %s210 = sphi 0, %s209
    %s226 = sphi 0, %s210
    %s232 = sphi 0, %s234
    %s235 = sphi 0, %s232
    %s236 = sphi 0, %s235
    %s252 = sphi 0, %s236
  $region4: #{pcn_encoder.7} parent=0 // loop_header_branch
    %18 = sbr.rel (%p16) target = $region8
  $region5: #{pcn_encoder.7} parent=0 // loop_body
    %s20 = ssub.s32 %s15, 1
    %s21 = ssub.s32 %s15, 2
    %s28 = sadd.s32 1, %s23
    %p29 = scmp.ge.s32.totalorder %s28, 4
    %s30 = scalar_select %p29, 0, %s28
    %s31 = sadd.s32 1, %s22
    %s32 = scalar_select %p29, %s31, %s22
    %p33 = scmp.ge.s32.totalorder %s32, 2
    %s34 = scalar_select %p33, 0, %s32
    %s35 = ssub.s32 %s22, %s34
    %s36 = ssub.s32 %s23, %s30
    %s37 = sor.u32 %s35, %s36
    %p38 = scmp.eq.s32.totalorder %s37, 0
    %s40 = sadd.s32 %s39, 1
    %s41 = scalar_select %p38, %s39, %s40
    %p44 = pneg %p38
    %p45 = scmp.eq.s32.totalorder %s15, 7
    %p46 = por %p44, %p45
    %p47 = scmp.ne.s32.totalorder %s39, %s42
    %p48 = scmp.eq.s32.totalorder %s15, 0
    %p49 = por %p47, %p48
    %p50 = scmp.ne.s32.totalorder %s39, %s42
    %p51 = scmp.eq.s32.totalorder %s20, 7
    %p52 = por %p50, %p51
    %p53 = scmp.ne.s32.totalorder %s42, %s43
    %p54 = scmp.eq.s32.totalorder %s20, 0
    %p55 = por %p53, %p54
    %p56 = scmp.ne.s32.totalorder %s42, %s43
    %p57 = scmp.eq.s32.totalorder %s21, 7
    %p58 = por %p56, %p57
    %p60 = scmp.ne.s32.totalorder %s43, %s59
    %p61 = scmp.eq.s32.totalorder %s21, 0
    %p62 = por %p60, %p61
    %s64 = sadd.s32 %s63, 1
    %p67 = scmp.eq.s32.totalorder %s15, 7
    %p68 = scmp.ne.s32.totalorder %s63, %s65
    %p69 = scmp.eq.s32.totalorder %s15, 0
    %p70 = por %p68, %p69
    %p71 = scmp.ne.s32.totalorder %s63, %s65
    %p72 = scmp.eq.s32.totalorder %s20, 7
    %p73 = por %p71, %p72
    %p74 = scmp.ne.s32.totalorder %s65, %s66
    %p75 = scmp.eq.s32.totalorder %s20, 0
    %p76 = por %p74, %p75
    %p77 = scmp.ne.s32.totalorder %s65, %s66
    %p78 = scmp.eq.s32.totalorder %s21, 7
    %p79 = por %p77, %p78
    %p81 = scmp.ne.s32.totalorder %s66, %s80
    %p82 = scmp.eq.s32.totalorder %s21, 0
    %p83 = por %p81, %p82
    %s84 = ssub.s32 %s22, %s34
    %p85 = scmp.eq.s32.totalorder %s84, 0
    %s87 = sadd.s32 %s86, 1
    %s88 = scalar_select %p85, %s86, %s87
    %p91 = pneg %p85
    %p92 = scmp.eq.s32.totalorder %s15, 7
    %p93 = por %p91, %p92
    %p94 = scmp.ne.s32.totalorder %s86, %s89
    %p95 = scmp.eq.s32.totalorder %s15, 0
    %p96 = por %p94, %p95
    %p97 = scmp.ne.s32.totalorder %s86, %s89
    %p98 = scmp.eq.s32.totalorder %s20, 7
    %p99 = por %p97, %p98
    %p100 = scmp.ne.s32.totalorder %s89, %s90
    %p101 = scmp.eq.s32.totalorder %s20, 0
    %p102 = por %p100, %p101
    %p103 = scmp.ne.s32.totalorder %s89, %s90
    %p104 = scmp.eq.s32.totalorder %s21, 7
    %p105 = por %p103, %p104
    %p107 = scmp.ne.s32.totalorder %s90, %s106
    %p108 = scmp.eq.s32.totalorder %s21, 0
    %p109 = por %p107, %p108
    %s111 = sadd.s32 %s110, 1
    %p114 = scmp.eq.s32.totalorder %s15, 7
    %p115 = scmp.ne.s32.totalorder %s110, %s112
    %p116 = scmp.eq.s32.totalorder %s15, 0
    %p117 = por %p115, %p116
    %p118 = scmp.ne.s32.totalorder %s110, %s112
    %p119 = scmp.eq.s32.totalorder %s20, 7
    %p120 = por %p118, %p119
    %p121 = scmp.ne.s32.totalorder %s112, %s113
    %p122 = scmp.eq.s32.totalorder %s20, 0
    %p123 = por %p121, %p122
    %p124 = scmp.ne.s32.totalorder %s112, %s113
    %p125 = scmp.eq.s32.totalorder %s21, 7
    %p126 = por %p124, %p125
    %p128 = scmp.ne.s32.totalorder %s113, %s127
    %p129 = scmp.eq.s32.totalorder %s21, 0
    %p130 = por %p128, %p129
    %s132 = sadd.s32 %s131, 1
    %p135 = scmp.eq.s32.totalorder %s15, 7
    %p136 = scmp.ne.s32.totalorder %s131, %s133
    %p137 = scmp.eq.s32.totalorder %s15, 0
    %p138 = por %p136, %p137
    %p139 = scmp.ne.s32.totalorder %s131, %s133
    %p140 = scmp.eq.s32.totalorder %s20, 7
    %p141 = por %p139, %p140
    %p142 = scmp.ne.s32.totalorder %s133, %s134
    %p143 = scmp.eq.s32.totalorder %s20, 0
    %p144 = por %p142, %p143
    %p145 = scmp.ne.s32.totalorder %s133, %s134
    %p146 = scmp.eq.s32.totalorder %s21, 7
    %p147 = por %p145, %p146
    %p149 = scmp.ne.s32.totalorder %s134, %s148
    %p150 = scmp.eq.s32.totalorder %s21, 0
    %p151 = por %p149, %p150
    %s152 = ssub.s32 %s22, %s34
    %p153 = scmp.eq.s32.totalorder %s152, 0
    %s155 = sadd.s32 %s154, 1
    %s156 = scalar_select %p153, %s154, %s155
    %p159 = pneg %p153
    %p160 = scmp.eq.s32.totalorder %s15, 7
    %p161 = por %p159, %p160
    %p162 = scmp.ne.s32.totalorder %s154, %s157
    %p163 = scmp.eq.s32.totalorder %s15, 0
    %p164 = por %p162, %p163
    %p165 = scmp.ne.s32.totalorder %s154, %s157
    %p166 = scmp.eq.s32.totalorder %s20, 7
    %p167 = por %p165, %p166
    %p168 = scmp.ne.s32.totalorder %s157, %s158
    %p169 = scmp.eq.s32.totalorder %s20, 0
    %p170 = por %p168, %p169
    %p171 = scmp.ne.s32.totalorder %s157, %s158
    %p172 = scmp.eq.s32.totalorder %s21, 7
    %p173 = por %p171, %p172
    %p175 = scmp.ne.s32.totalorder %s158, %s174
    %p176 = scmp.eq.s32.totalorder %s21, 0
    %p177 = por %p175, %p176
    %s178 = ssub.s32 %s22, %s34
    %p179 = scmp.eq.s32.totalorder %s178, 0
    %s181 = sadd.s32 %s180, 1
    %s182 = scalar_select %p179, %s180, %s181
    %p185 = pneg %p179
    %p186 = scmp.eq.s32.totalorder %s15, 7
    %p187 = por %p185, %p186
    %p188 = scmp.ne.s32.totalorder %s180, %s183
    %p189 = scmp.eq.s32.totalorder %s15, 0
    %p190 = por %p188, %p189
    %p191 = scmp.ne.s32.totalorder %s180, %s183
    %p192 = scmp.eq.s32.totalorder %s20, 7
    %p193 = por %p191, %p192
    %p194 = scmp.ne.s32.totalorder %s183, %s184
    %p195 = scmp.eq.s32.totalorder %s20, 0
    %p196 = por %p194, %p195
    %p197 = scmp.ne.s32.totalorder %s183, %s184
    %p198 = scmp.eq.s32.totalorder %s21, 7
    %p199 = por %p197, %p198
    %p201 = scmp.ne.s32.totalorder %s184, %s200
    %p202 = scmp.eq.s32.totalorder %s21, 0
    %p203 = por %p201, %p202
    %s204 = ssub.s32 %s22, %s34
    %p205 = scmp.eq.s32.totalorder %s204, 0
    %s207 = sadd.s32 %s206, 1
    %s208 = scalar_select %p205, %s206, %s207
    %p211 = pneg %p205
    %p212 = scmp.eq.s32.totalorder %s15, 7
    %p213 = por %p211, %p212
    %p214 = scmp.ne.s32.totalorder %s206, %s209
    %p215 = scmp.eq.s32.totalorder %s15, 0
    %p216 = por %p214, %p215
    %p217 = scmp.ne.s32.totalorder %s206, %s209
    %p218 = scmp.eq.s32.totalorder %s20, 7
    %p219 = por %p217, %p218
    %p220 = scmp.ne.s32.totalorder %s209, %s210
    %p221 = scmp.eq.s32.totalorder %s20, 0
    %p222 = por %p220, %p221
    %p223 = scmp.ne.s32.totalorder %s209, %s210
    %p224 = scmp.eq.s32.totalorder %s21, 7
    %p225 = por %p223, %p224
    %p227 = scmp.ne.s32.totalorder %s210, %s226
    %p228 = scmp.eq.s32.totalorder %s21, 0
    %p229 = por %p227, %p228
    %s230 = ssub.s32 %s22, %s34
    %p231 = scmp.eq.s32.totalorder %s230, 0
    %s233 = sadd.s32 %s232, 1
    %s234 = scalar_select %p231, %s232, %s233
    %p237 = pneg %p231
    %p238 = scmp.eq.s32.totalorder %s15, 7
    %p239 = por %p237, %p238
    %p240 = scmp.ne.s32.totalorder %s232, %s235
    %p241 = scmp.eq.s32.totalorder %s15, 0
    %p242 = por %p240, %p241
    %p243 = scmp.ne.s32.totalorder %s232, %s235
    %p244 = scmp.eq.s32.totalorder %s20, 7
    %p245 = por %p243, %p244
    %p246 = scmp.ne.s32.totalorder %s235, %s236
    %p247 = scmp.eq.s32.totalorder %s20, 0
    %p248 = por %p246, %p247
    %p249 = scmp.ne.s32.totalorder %s235, %s236
    %p250 = scmp.eq.s32.totalorder %s21, 7
    %p251 = por %p249, %p250
    %p253 = scmp.ne.s32.totalorder %s236, %s252
    %p254 = scmp.eq.s32.totalorder %s21, 0
    %p255 = por %p253, %p254
    %p256 = scmp.le.s32.totalorder 1, %s15
    %p257 = scmp.lt.s32.totalorder %s15, 9
    %p258 = pnand %p256, %p257
    %p259 = pneg %p258
    // Predicated region
    $region9: #{pcn_encoder.7} parent=5 // pred_check
      _
    $region10: #{pcn_encoder.7} parent=5 // pred_check_branch
      %261 = sbr.rel (%p258) target = $region12
    $region11: #{pcn_encoder.7} parent=5 // pred_region
      %s262 = ssub.s32 %s15, 1
      // Predicated region
      $region13: #{pcn_encoder.7} parent=11 // pred_check
        %p263 = pneg %p76
      $region14: #{pcn_encoder.7} parent=11 // pred_check_branch
        %265 = sbr.rel (%p263) target = $region16
      $region15: #{pcn_encoder.7} parent=11 // pred_region
        _
      $region16: #{pcn_encoder.7} parent=11 // pred_fallthru
        _
      // Predicated region
      $region17: #{pcn_encoder.7} parent=11 // pred_check
        %p266 = pneg %p123
      $region18: #{pcn_encoder.7} parent=11 // pred_check_branch
        %268 = sbr.rel (%p266) target = $region20
      $region19: #{pcn_encoder.7} parent=11 // pred_region
        _
      $region20: #{pcn_encoder.7} parent=11 // pred_fallthru
        _
      // Predicated region
      $region21: #{pcn_encoder.7} parent=11 // pred_check
        %p269 = pneg %p144
      $region22: #{pcn_encoder.7} parent=11 // pred_check_branch
        %271 = sbr.rel (%p269) target = $region24
      $region23: #{pcn_encoder.7} parent=11 // pred_region
        _
      $region24: #{pcn_encoder.7} parent=11 // pred_fallthru
        _
    $region12: #{pcn_encoder.7} parent=5 // pred_fallthru
      _
    %p272 = scmp.lt.s32.totalorder %s15, 8
    // Predicated region
    $region25: #{pcn_encoder.7} parent=5 // pred_check
      %p273 = pneg %p272
    $region26: #{pcn_encoder.7} parent=5 // pred_check_branch
      %275 = sbr.rel (%p273) target = $region28
    $region27: #{pcn_encoder.7} parent=5 // pred_region
      // Predicated region
      $region29: #{pcn_encoder.7} parent=27 // pred_check
        %p276 = pneg %p49
      $region30: #{pcn_encoder.7} parent=27 // pred_check_branch
        %278 = sbr.rel (%p276) target = $region32
      $region31: #{pcn_encoder.7} parent=27 // pred_region
        %s279 = smul.u32 16, %s23
        %p280 = scmp.lt.s32.totalorder %s22, 1
        %s281 = scalar_select %p280, %s22, 1
        %p282 = scmp.lt.s32.totalorder %s279, 63
        %s283 = scalar_select %p282, %s279, 63
        %s284 = smul.addr %s283, 2
        %s285 = smul.addr %s281, 128
        %s286 = sadd.s32 %s284, %s285
        %s287 = smul.addr %s286, 8
        %s288 = scalar_lea.vmem %s0, %s287
        %s289 = smul.u32 16, %s23
      $region32: #{pcn_encoder.7} parent=27 // pred_fallthru
        _
      // Predicated region
      $region33: #{pcn_encoder.7} parent=27 // pred_check
        %p290 = pneg %p96
      $region34: #{pcn_encoder.7} parent=27 // pred_check_branch
        %292 = sbr.rel (%p290) target = $region36
      $region35: #{pcn_encoder.7} parent=27 // pred_region
        %p293 = scmp.lt.s32.totalorder %s22, 1
        %s294 = scalar_select %p293, %s22, 1
        %s295 = smul.addr %s294, 4
        %s296 = scalar_lea.vmem %s2, %s295
      $region36: #{pcn_encoder.7} parent=27 // pred_fallthru
        _
    $region28: #{pcn_encoder.7} parent=5 // pred_fallthru
      _
    %p297 = scmp.le.s32.totalorder 1, %s15
    %p298 = scmp.lt.s32.totalorder %s15, 9
    %p299 = pnand %p297, %p298
    %p300 = pneg %p299
    // Predicated region
    $region37: #{pcn_encoder.7} parent=5 // pred_check
      _
    $region38: #{pcn_encoder.7} parent=5 // pred_check_branch
      %302 = sbr.rel (%p299) target = $region40
    $region39: #{pcn_encoder.7} parent=5 // pred_region
      %s303 = ssub.s32 %s15, 1
      %s304 = smul.u32 16, %s25
      %p305 = scmp.lt.s32.totalorder %s24, 1
      %s306 = scalar_select %p305, %s24, 1
      %p307 = scmp.lt.s32.totalorder %s304, 63
      %s308 = scalar_select %p307, %s304, 63
      %s309 = smul.addr %s308, 2
      %s310 = smul.addr %s306, 128
      %s311 = sadd.s32 %s309, %s310
      %s312 = smul.addr %s311, 8
      %s313 = scalar_lea.vmem %s0, %s312
      %p314 = pneg %p55
      %p315 = pneg %p52
      %p316 = pneg %p76
      %p317 = pneg %p73
      %p318 = scmp.lt.s32.totalorder %s24, 1
      %s319 = scalar_select %p318, %s24, 1
      %s320 = smul.addr %s319, 4
      %s321 = scalar_lea.vmem %s2, %s320
      %p322 = pneg %p102
      %p323 = pneg %p99
      %p324 = pneg %p123
      %p325 = pneg %p120
      %p326 = pneg %p144
      %p327 = pneg %p141
      %p328 = pneg %p170
      %p329 = pneg %p167
      %p330 = scmp.lt.s32.totalorder %s24, 1
      %s331 = scalar_select %p330, %s24, 1
      %s332 = smul.addr %s331, 2
      %s333 = scalar_lea.vmem %s5, %s332
      %p334 = pneg %p196
      %p335 = pneg %p193
      %p336 = scmp.lt.s32.totalorder %s24, 1
      %s337 = scalar_select %p336, %s24, 1
      %s338 = smul.addr %s337, 2
      %s339 = scalar_lea.vmem %s6, %s338
      %p340 = pneg %p222
      %p341 = pneg %p219
      %p342 = scmp.lt.s32.totalorder %s24, 1
      %s343 = scalar_select %p342, %s24, 1
      %s344 = smul.addr %s343, 2
      %s345 = scalar_lea.vmem %s7, %s344
      %p346 = pneg %p248
      %p347 = pneg %p245
      %p348 = scmp.lt.s32.totalorder %s24, 1
      %s349 = scalar_select %p348, %s24, 1
      %s350 = smul.addr %s349, 2
      %s351 = scalar_lea.vmem %s8, %s350
      %s352 = smul.u32 16, %s25
      %p353 = scmp.lt.s32.totalorder %s24, 1
      %s354 = scalar_select %p353, %s24, 1
      %p355 = scmp.lt.s32.totalorder %s352, 63
      %s356 = scalar_select %p355, %s352, 63
      %s357 = smul.addr %s356, 2
      %s358 = smul.addr %s354, 128
      %s359 = sadd.s32 %s357, %s358
      %s360 = smul.addr %s359, 8
      %s361 = scalar_lea.vmem %s0, %s360
      %s362 = smul.u32 16, %s25
      %p363 = scmp.lt.s32.totalorder %s24, 1
      %s364 = scalar_select %p363, %s24, 1
      %s365 = smul.addr %s364, 4
      %s366 = scalar_lea.vmem %s2, %s365
      %p367 = scmp.lt.s32.totalorder %s24, 1
      %s368 = scalar_select %p367, %s24, 1
      %s369 = smul.addr %s368, 2
      %s370 = scalar_lea.vmem %s5, %s369
      %p371 = scmp.lt.s32.totalorder %s24, 1
      %s372 = scalar_select %p371, %s24, 1
      %s373 = smul.addr %s372, 2
      %s374 = scalar_lea.vmem %s6, %s373
      %p375 = scmp.lt.s32.totalorder %s24, 1
      %s376 = scalar_select %p375, %s24, 1
      %s377 = smul.addr %s376, 2
      %s378 = scalar_lea.vmem %s7, %s377
      %p379 = scmp.lt.s32.totalorder %s24, 1
      %s380 = scalar_select %p379, %s24, 1
      %s381 = smul.addr %s380, 2
      %s382 = scalar_lea.vmem %s8, %s381
      %p383 = scmp.eq.s32.totalorder %s25, 0
      // Predicated region
      $region41: #{pcn_encoder.7} parent=39 // pred_check
        %p384 = pneg %p383
      $region42: #{pcn_encoder.7} parent=39 // pred_check_branch
        %386 = sbr.rel (%p384) target = $region44
      $region43: #{pcn_encoder.7} parent=39 // pred_region
        %v387 = vlaneseq
        %vm388 = vcmp.ge.s32.totalorder %v387, 0
        %vm389 = vcmp.lt.s32.totalorder %v387, 256
        %vm390 = vmand %vm388, %vm389
        %391 = vst.msk [vmem:[%s370] sm:$0x3] %vm390, 0.0
        %392 = vst.msk [vmem:[%s374] sm:$0x3] %vm390, 0.0
        %393 = vst.msk [vmem:[%s378] sm:$0x3] %vm390, -inf
        %394 = vst.msk [vmem:[%s382] sm:$0x3] %vm390, inf
      $region44: #{pcn_encoder.7} parent=39 // pred_fallthru
        _
      %v395 = vld [vmem:[%s361] sm:$0xff]
      %v396 = vld [vmem:[%s361 + $0x8] sm:$0xff]
      %v397 = vld [vmem:[%s361 + $0x10] sm:$0xff]
      %v398 = vld [vmem:[%s361 + $0x18] sm:$0xff]
      %v399 = vld [vmem:[%s361 + $0x20] sm:$0xff]
      %v400 = vld [vmem:[%s361 + $0x28] sm:$0xff]
      %v401 = vld [vmem:[%s361 + $0x30] sm:$0xff]
      %v402 = vld [vmem:[%s361 + $0x38] sm:$0xff]
      %v403 = vld [vmem:[%s361 + $0x40] sm:$0xff]
      %v404 = vld [vmem:[%s361 + $0x48] sm:$0xff]
      %v405 = vld [vmem:[%s361 + $0x50] sm:$0xff]
      %v406 = vld [vmem:[%s361 + $0x58] sm:$0xff]
      %v407 = vld [vmem:[%s361 + $0x60] sm:$0xff]
      %v408 = vld [vmem:[%s361 + $0x68] sm:$0xff]
      %v409 = vld [vmem:[%s361 + $0x70] sm:$0xff]
      %v410 = vld [vmem:[%s361 + $0x78] sm:$0xff]
      %v411 = vld [vmem:[%s361 + $0x80] sm:$0xff]
      %v412 = vld [vmem:[%s361 + $0x88] sm:$0xff]
      %v413 = vld [vmem:[%s361 + $0x90] sm:$0xff]
      %v414 = vld [vmem:[%s361 + $0x98] sm:$0xff]
      %v415 = vld [vmem:[%s361 + $0xa0] sm:$0xff]
      %v416 = vld [vmem:[%s361 + $0xa8] sm:$0xff]
      %v417 = vld [vmem:[%s361 + $0xb0] sm:$0xff]
      %v418 = vld [vmem:[%s361 + $0xb8] sm:$0xff]
      %v419 = vld [vmem:[%s361 + $0xc0] sm:$0xff]
      %v420 = vld [vmem:[%s361 + $0xc8] sm:$0xff]
      %v421 = vld [vmem:[%s361 + $0xd0] sm:$0xff]
      %v422 = vld [vmem:[%s361 + $0xd8] sm:$0xff]
      %v423 = vld [vmem:[%s361 + $0xe0] sm:$0xff]
      %v424 = vld [vmem:[%s361 + $0xe8] sm:$0xff]
      %v425 = vld [vmem:[%s361 + $0xf0] sm:$0xff]
      %v426 = vld [vmem:[%s361 + $0xf8] sm:$0xff]
      %v427 = vld [vmem:[%s1] sm:$0xff]
      %v428 = vld [vmem:[%s1 + $0x8] sm:$0xff]
      %v429 = vld [vmem:[%s1 + $0x10] sm:$0xff]
      %v430 = vld [vmem:[%s1 + $0x18] sm:$0xff]
      %v431 = vld [vmem:[%s1 + $0x20] sm:$0xff]
      %v432 = vld [vmem:[%s1 + $0x28] sm:$0xff]
      %v433 = vld [vmem:[%s1 + $0x30] sm:$0xff]
      %v434 = vld [vmem:[%s1 + $0x38] sm:$0xff]
      %v435 = vld [vmem:[%s1 + $0x40] sm:$0xff]
      %v436 = vld [vmem:[%s1 + $0x48] sm:$0xff]
      %v437 = vld [vmem:[%s1 + $0x50] sm:$0xff]
      %v438 = vld [vmem:[%s1 + $0x58] sm:$0xff]
      %v439 = vld [vmem:[%s1 + $0x60] sm:$0xff]
      %v440 = vld [vmem:[%s1 + $0x68] sm:$0xff]
      %v441 = vld [vmem:[%s1 + $0x70] sm:$0xff]
      %v442 = vld [vmem:[%s1 + $0x78] sm:$0xff]
      %v443 = vld [vmem:[%s1 + $0x80] sm:$0xff]
      %v444 = vld [vmem:[%s1 + $0x88] sm:$0xff]
      %v445 = vld [vmem:[%s1 + $0x90] sm:$0xff]
      %v446 = vld [vmem:[%s1 + $0x98] sm:$0xff]
      %v447 = vld [vmem:[%s1 + $0xa0] sm:$0xff]
      %v448 = vld [vmem:[%s1 + $0xa8] sm:$0xff]
      %v449 = vld [vmem:[%s1 + $0xb0] sm:$0xff]
      %v450 = vld [vmem:[%s1 + $0xb8] sm:$0xff]
      %v451 = vld [vmem:[%s1 + $0xc0] sm:$0xff]
      %v452 = vld [vmem:[%s1 + $0xc8] sm:$0xff]
      %v453 = vld [vmem:[%s1 + $0xd0] sm:$0xff]
      %v454 = vld [vmem:[%s1 + $0xd8] sm:$0xff]
      %v455 = vld [vmem:[%s1 + $0xe0] sm:$0xff]
      %v456 = vld [vmem:[%s1 + $0xe8] sm:$0xff]
      %v457 = vld [vmem:[%s1 + $0xf0] sm:$0xff]
      %v458 = vld [vmem:[%s1 + $0xf8] sm:$0xff]
      %v459 = vld [vmem:[%s1 + $0x100] sm:$0xff]
      %v460 = vld [vmem:[%s1 + $0x108] sm:$0xff]
      %v461 = vld [vmem:[%s1 + $0x110] sm:$0xff]
      %v462 = vld [vmem:[%s1 + $0x118] sm:$0xff]
      %v463 = vld [vmem:[%s1 + $0x120] sm:$0xff]
      %v464 = vld [vmem:[%s1 + $0x128] sm:$0xff]
      %v465 = vld [vmem:[%s1 + $0x130] sm:$0xff]
      %v466 = vld [vmem:[%s1 + $0x138] sm:$0xff]
      %v467 = vld [vmem:[%s1 + $0x140] sm:$0xff]
      %v468 = vld [vmem:[%s1 + $0x148] sm:$0xff]
      %v469 = vld [vmem:[%s1 + $0x150] sm:$0xff]
      %v470 = vld [vmem:[%s1 + $0x158] sm:$0xff]
      %v471 = vld [vmem:[%s1 + $0x160] sm:$0xff]
      %v472 = vld [vmem:[%s1 + $0x168] sm:$0xff]
      %v473 = vld [vmem:[%s1 + $0x170] sm:$0xff]
      %v474 = vld [vmem:[%s1 + $0x178] sm:$0xff]
      %v475 = vld [vmem:[%s1 + $0x180] sm:$0xff]
      %v476 = vld [vmem:[%s1 + $0x188] sm:$0xff]
      %v477 = vld [vmem:[%s1 + $0x190] sm:$0xff]
      %v478 = vld [vmem:[%s1 + $0x198] sm:$0xff]
      %v479 = vld [vmem:[%s1 + $0x1a0] sm:$0xff]
      %v480 = vld [vmem:[%s1 + $0x1a8] sm:$0xff]
      %v481 = vld [vmem:[%s1 + $0x1b0] sm:$0xff]
      %v482 = vld [vmem:[%s1 + $0x1b8] sm:$0xff]
      %v483 = vld [vmem:[%s1 + $0x1c0] sm:$0xff]
      %v484 = vld [vmem:[%s1 + $0x1c8] sm:$0xff]
      %v485 = vld [vmem:[%s1 + $0x1d0] sm:$0xff]
      %v486 = vld [vmem:[%s1 + $0x1d8] sm:$0xff]
      %v487 = vld [vmem:[%s1 + $0x1e0] sm:$0xff]
      %v488 = vld [vmem:[%s1 + $0x1e8] sm:$0xff]
      %v489 = vld [vmem:[%s1 + $0x1f0] sm:$0xff]
      %v490 = vld [vmem:[%s1 + $0x1f8] sm:$0xff]
      %v491 = vld [vmem:[%s1 + $0x200] sm:$0xff]
      %v492 = vld [vmem:[%s1 + $0x208] sm:$0xff]
      %v493 = vld [vmem:[%s1 + $0x210] sm:$0xff]
      %v494 = vld [vmem:[%s1 + $0x218] sm:$0xff]
      %v495 = vld [vmem:[%s1 + $0x220] sm:$0xff]
      %v496 = vld [vmem:[%s1 + $0x228] sm:$0xff]
      %v497 = vld [vmem:[%s1 + $0x230] sm:$0xff]
      %v498 = vld [vmem:[%s1 + $0x238] sm:$0xff]
      %v499 = vld [vmem:[%s1 + $0x240] sm:$0xff]
      %v500 = vld [vmem:[%s1 + $0x248] sm:$0xff]
      %v501 = vld [vmem:[%s1 + $0x250] sm:$0xff]
      %v502 = vld [vmem:[%s1 + $0x258] sm:$0xff]
      %v503 = vld [vmem:[%s1 + $0x260] sm:$0xff]
      %v504 = vld [vmem:[%s1 + $0x268] sm:$0xff]
      %v505 = vld [vmem:[%s1 + $0x270] sm:$0xff]
      %v506 = vld [vmem:[%s1 + $0x278] sm:$0xff]
      %v507 = vld [vmem:[%s1 + $0x280] sm:$0xff]
      %v508 = vld [vmem:[%s1 + $0x288] sm:$0xff]
      %v509 = vld [vmem:[%s1 + $0x290] sm:$0xff]
      %v510 = vld [vmem:[%s1 + $0x298] sm:$0xff]
      %v511 = vld [vmem:[%s1 + $0x2a0] sm:$0xff]
      %v512 = vld [vmem:[%s1 + $0x2a8] sm:$0xff]
      %v513 = vld [vmem:[%s1 + $0x2b0] sm:$0xff]
      %v514 = vld [vmem:[%s1 + $0x2b8] sm:$0xff]
      %v515 = vld [vmem:[%s1 + $0x2c0] sm:$0xff]
      %v516 = vld [vmem:[%s1 + $0x2c8] sm:$0xff]
      %v517 = vld [vmem:[%s1 + $0x2d0] sm:$0xff]
      %v518 = vld [vmem:[%s1 + $0x2d8] sm:$0xff]
      %v519 = vld [vmem:[%s1 + $0x2e0] sm:$0xff]
      %v520 = vld [vmem:[%s1 + $0x2e8] sm:$0xff]
      %v521 = vld [vmem:[%s1 + $0x2f0] sm:$0xff]
      %v522 = vld [vmem:[%s1 + $0x2f8] sm:$0xff]
      %v523 = vld [vmem:[%s1 + $0x300] sm:$0xff]
      %v524 = vld [vmem:[%s1 + $0x308] sm:$0xff]
      %v525 = vld [vmem:[%s1 + $0x310] sm:$0xff]
      %v526 = vld [vmem:[%s1 + $0x318] sm:$0xff]
      %v527 = vld [vmem:[%s1 + $0x320] sm:$0xff]
      %v528 = vld [vmem:[%s1 + $0x328] sm:$0xff]
      %v529 = vld [vmem:[%s1 + $0x330] sm:$0xff]
      %v530 = vld [vmem:[%s1 + $0x338] sm:$0xff]
      %v531 = vld [vmem:[%s1 + $0x340] sm:$0xff]
      %v532 = vld [vmem:[%s1 + $0x348] sm:$0xff]
      %v533 = vld [vmem:[%s1 + $0x350] sm:$0xff]
      %v534 = vld [vmem:[%s1 + $0x358] sm:$0xff]
      %v535 = vld [vmem:[%s1 + $0x360] sm:$0xff]
      %v536 = vld [vmem:[%s1 + $0x368] sm:$0xff]
      %v537 = vld [vmem:[%s1 + $0x370] sm:$0xff]
      %v538 = vld [vmem:[%s1 + $0x378] sm:$0xff]
      %v539 = vld [vmem:[%s1 + $0x380] sm:$0xff]
      %v540 = vld [vmem:[%s1 + $0x388] sm:$0xff]
      %v541 = vld [vmem:[%s1 + $0x390] sm:$0xff]
      %v542 = vld [vmem:[%s1 + $0x398] sm:$0xff]
      %v543 = vld [vmem:[%s1 + $0x3a0] sm:$0xff]
      %v544 = vld [vmem:[%s1 + $0x3a8] sm:$0xff]
      %v545 = vld [vmem:[%s1 + $0x3b0] sm:$0xff]
      %v546 = vld [vmem:[%s1 + $0x3b8] sm:$0xff]
      %v547 = vld [vmem:[%s1 + $0x3c0] sm:$0xff]
      %v548 = vld [vmem:[%s1 + $0x3c8] sm:$0xff]
      %v549 = vld [vmem:[%s1 + $0x3d0] sm:$0xff]
      %v550 = vld [vmem:[%s1 + $0x3d8] sm:$0xff]
      %v551 = vld [vmem:[%s1 + $0x3e0] sm:$0xff]
      %v552 = vld [vmem:[%s1 + $0x3e8] sm:$0xff]
      %v553 = vld [vmem:[%s1 + $0x3f0] sm:$0xff]
      %v554 = vld [vmem:[%s1 + $0x3f8] sm:$0xff]
      %v555 = vld [vmem:[%s366] sm:$0xf]
      %v557 = vlaneseq
      %v558 = vshrl.u32 %v557, 7
      %v559 = vsub.s32 0, %v558
      %v560 = vrot.slane %v555, %v559
      %v561 = vlaneseq
      %v562 = vshrl.u32 %v561, 7
      %v563 = vsub.s32 1, %v562
      %v564 = vrot.slane %v555, %v563
      %v565 = vlaneseq
      %v566 = vshrl.u32 %v565, 7
      %v567 = vsub.s32 2, %v566
      %v568 = vrot.slane %v555, %v567
      %v569 = vlaneseq
      %v570 = vshrl.u32 %v569, 7
      %v571 = vsub.s32 3, %v570
      %v572 = vrot.slane %v555, %v571
      %577 = vmatprep.subr.mxu0 %v488
      %578 = vmatpush1.msra.mxu0 %v487
      %579 = vmatprep.subr.mxu0 %v484
      %580 = vmatpush1.msra.mxu0 %v483
      %581 = vmatprep.subr.mxu0 %v480
      %582 = vmatpush1.msra.mxu0 %v479
      %583 = vmatprep.subr.mxu0 %v476
      %584 = vmatpush1.msra.mxu0 %v475
      %585 = vmatprep.subr.mxu0 %v472
      %586 = vmatpush1.msra.mxu0 %v471
      %587 = vmatprep.subr.mxu0 %v468
      %588 = vmatpush1.msra.mxu0 %v467
      %589 = vmatprep.subr.mxu0 %v464
      %590 = vmatpush1.msra.mxu0 %v463
      %591 = vmatprep.subr.mxu0 %v460
      %592 = vmatpush1.msra.mxu0 %v459
      %593 = vmatprep.subr.mxu0 %v456
      %594 = vmatpush1.msra.mxu0 %v455
      %595 = vmatprep.subr.mxu0 %v452
      %596 = vmatpush1.msra.mxu0 %v451
      %597 = vmatprep.subr.mxu0 %v448
      %598 = vmatpush1.msra.mxu0 %v447
      %599 = vmatprep.subr.mxu0 %v444
      %600 = vmatpush1.msra.mxu0 %v443
      %601 = vmatprep.subr.mxu0 %v440
      %602 = vmatpush1.msra.mxu0 %v439
      %603 = vmatprep.subr.mxu0 %v436
      %604 = vmatpush1.msra.mxu0 %v435
      %605 = vmatprep.subr.mxu0 %v432
      %606 = vmatpush1.msra.mxu0 %v431
      %607 = vmatprep.subr.mxu0 %v428
      %608 = vmatpush1.msra.mxu0 %v427
      %609 = vmatprep.subr.mxu0 %v552
      %610 = vmatpush2.msra.mxu0 %v551
      %611 = vmatprep.subr.mxu0 %v548
      %612 = vmatpush2.msra.mxu0 %v547
      %613 = vmatprep.subr.mxu0 %v544
      %614 = vmatpush2.msra.mxu0 %v543
      %615 = vmatprep.subr.mxu0 %v540
      %616 = vmatpush2.msra.mxu0 %v539
      %617 = vmatprep.subr.mxu0 %v536
      %618 = vmatpush2.msra.mxu0 %v535
      %619 = vmatprep.subr.mxu0 %v532
      %620 = vmatpush2.msra.mxu0 %v531
      %621 = vmatprep.subr.mxu0 %v528
      %622 = vmatpush2.msra.mxu0 %v527
      %623 = vmatprep.subr.mxu0 %v524
      %624 = vmatpush2.msra.mxu0 %v523
      %625 = vmatprep.subr.mxu0 %v520
      %626 = vmatpush2.msra.mxu0 %v519
      %627 = vmatprep.subr.mxu0 %v516
      %628 = vmatpush2.msra.mxu0 %v515
      %629 = vmatprep.subr.mxu0 %v512
      %630 = vmatpush2.msra.mxu0 %v511
      %631 = vmatprep.subr.mxu0 %v508
      %632 = vmatpush2.msra.mxu0 %v507
      %633 = vmatprep.subr.mxu0 %v504
      %634 = vmatpush2.msra.mxu0 %v503
      %635 = vmatprep.subr.mxu0 %v500
      %636 = vmatpush2.msra.mxu0 %v499
      %637 = vmatprep.subr.mxu0 %v496
      %638 = vmatpush2.msra.mxu0 %v495
      %639 = vmatprep.subr.mxu0 %v492
      %640 = vmatpush2.msra.mxu0 %v491
      %641 = vmatprep.mubr.f32.mxu0 %v396
      %642 = vmatmul.mubr.f32.gmra.mxu0 %v395
      %v643 = vpop.f32.mrf.mxu0
      %v644 = vadd.f32 %v560, %v643
      %v645 = vpop.f32.mrf.mxu0
      %v646 = vadd.f32 %v564, %v645
      %647 = vmatprep.mubr.f32.mxu0 %v398
      %648 = vmatmul.mubr.f32.gmra.mxu0 %v397
      %v649 = vpop.f32.mrf.mxu0
      %v650 = vadd.f32 %v560, %v649
      %v651 = vpop.f32.mrf.mxu0
      %v652 = vadd.f32 %v564, %v651
      %653 = vmatprep.mubr.f32.mxu0 %v400
      %654 = vmatmul.mubr.f32.gmra.mxu0 %v399
      %v655 = vpop.f32.mrf.mxu0
      %v656 = vadd.f32 %v560, %v655
      %v657 = vpop.f32.mrf.mxu0
      %v658 = vadd.f32 %v564, %v657
      %659 = vmatprep.mubr.f32.mxu0 %v402
      %660 = vmatmul.mubr.f32.gmra.mxu0 %v401
      %v661 = vpop.f32.mrf.mxu0
      %v662 = vadd.f32 %v560, %v661
      %v663 = vpop.f32.mrf.mxu0
      %v664 = vadd.f32 %v564, %v663
      %665 = vmatprep.mubr.f32.mxu0 %v404
      %666 = vmatmul.mubr.f32.gmra.mxu0 %v403
      %v667 = vpop.f32.mrf.mxu0
      %v668 = vadd.f32 %v560, %v667
      %v669 = vpop.f32.mrf.mxu0
      %v670 = vadd.f32 %v564, %v669
      %671 = vmatprep.mubr.f32.mxu0 %v406
      %672 = vmatmul.mubr.f32.gmra.mxu0 %v405
      %v673 = vpop.f32.mrf.mxu0
      %v674 = vadd.f32 %v560, %v673
      %v675 = vpop.f32.mrf.mxu0
      %v676 = vadd.f32 %v564, %v675
      %677 = vmatprep.mubr.f32.mxu0 %v408
      %678 = vmatmul.mubr.f32.gmra.mxu0 %v407
      %v679 = vpop.f32.mrf.mxu0
      %v680 = vadd.f32 %v560, %v679
      %v681 = vpop.f32.mrf.mxu0
      %v682 = vadd.f32 %v564, %v681
      %683 = vmatprep.mubr.f32.mxu0 %v410
      %684 = vmatmul.mubr.f32.gmra.mxu0 %v409
      %v685 = vpop.f32.mrf.mxu0
      %v686 = vadd.f32 %v560, %v685
      %v687 = vpop.f32.mrf.mxu0
      %v688 = vadd.f32 %v564, %v687
      %689 = vmatprep.mubr.f32.mxu0 %v412
      %690 = vmatmul.mubr.f32.gmra.mxu0 %v411
      %v691 = vpop.f32.mrf.mxu0
      %v692 = vadd.f32 %v560, %v691
      %v693 = vpop.f32.mrf.mxu0
      %v694 = vadd.f32 %v564, %v693
      %695 = vmatprep.mubr.f32.mxu0 %v414
      %696 = vmatmul.mubr.f32.gmra.mxu0 %v413
      %v697 = vpop.f32.mrf.mxu0
      %v698 = vadd.f32 %v560, %v697
      %v699 = vpop.f32.mrf.mxu0
      %v700 = vadd.f32 %v564, %v699
      %701 = vmatprep.mubr.f32.mxu0 %v416
      %702 = vmatmul.mubr.f32.gmra.mxu0 %v415
      %v703 = vpop.f32.mrf.mxu0
      %v704 = vadd.f32 %v560, %v703
      %v705 = vpop.f32.mrf.mxu0
      %v706 = vadd.f32 %v564, %v705
      %707 = vmatprep.mubr.f32.mxu0 %v418
      %708 = vmatmul.mubr.f32.gmra.mxu0 %v417
      %v709 = vpop.f32.mrf.mxu0
      %v710 = vadd.f32 %v560, %v709
      %v711 = vpop.f32.mrf.mxu0
      %v712 = vadd.f32 %v564, %v711
      %713 = vmatprep.mubr.f32.mxu0 %v420
      %714 = vmatmul.mubr.f32.gmra.mxu0 %v419
      %v715 = vpop.f32.mrf.mxu0
      %v716 = vadd.f32 %v560, %v715
      %v717 = vpop.f32.mrf.mxu0
      %v718 = vadd.f32 %v564, %v717
      %719 = vmatprep.mubr.f32.mxu0 %v422
      %720 = vmatmul.mubr.f32.gmra.mxu0 %v421
      %v721 = vpop.f32.mrf.mxu0
      %v722 = vadd.f32 %v560, %v721
      %v723 = vpop.f32.mrf.mxu0
      %v724 = vadd.f32 %v564, %v723
      %725 = vmatprep.mubr.f32.mxu0 %v424
      %726 = vmatmul.mubr.f32.gmra.mxu0 %v423
      %v727 = vpop.f32.mrf.mxu0
      %v728 = vadd.f32 %v560, %v727
      %v729 = vpop.f32.mrf.mxu0
      %v730 = vadd.f32 %v564, %v729
      %731 = vmatprep.mubr.f32.mxu0 %v426
      %732 = vmatmul.mubr.f32.gmra.mxu0 %v425
      %v733 = vpop.f32.mrf.mxu0
      %v734 = vadd.f32 %v560, %v733
      %v735 = vpop.f32.mrf.mxu0
      %v736 = vadd.f32 %v564, %v735
      %737 = vdwg.mxu0
      %738 = vmatprep.subr.mxu0 %v490
      %739 = vmatpush1.msra.mxu0 %v489
      %740 = vmatprep.subr.mxu0 %v486
      %741 = vmatpush1.msra.mxu0 %v485
      %742 = vmatprep.subr.mxu0 %v482
      %743 = vmatpush1.msra.mxu0 %v481
      %744 = vmatprep.subr.mxu0 %v478
      %745 = vmatpush1.msra.mxu0 %v477
      %746 = vmatprep.subr.mxu0 %v474
      %747 = vmatpush1.msra.mxu0 %v473
      %748 = vmatprep.subr.mxu0 %v470
      %749 = vmatpush1.msra.mxu0 %v469
      %750 = vmatprep.subr.mxu0 %v466
      %751 = vmatpush1.msra.mxu0 %v465
      %752 = vmatprep.subr.mxu0 %v462
      %753 = vmatpush1.msra.mxu0 %v461
      %754 = vmatprep.subr.mxu0 %v458
      %755 = vmatpush1.msra.mxu0 %v457
      %756 = vmatprep.subr.mxu0 %v454
      %757 = vmatpush1.msra.mxu0 %v453
      %758 = vmatprep.subr.mxu0 %v450
      %759 = vmatpush1.msra.mxu0 %v449
      %760 = vmatprep.subr.mxu0 %v446
      %761 = vmatpush1.msra.mxu0 %v445
      %762 = vmatprep.subr.mxu0 %v442
      %763 = vmatpush1.msra.mxu0 %v441
      %764 = vmatprep.subr.mxu0 %v438
      %765 = vmatpush1.msra.mxu0 %v437
      %766 = vmatprep.subr.mxu0 %v434
      %767 = vmatpush1.msra.mxu0 %v433
      %768 = vmatprep.subr.mxu0 %v430
      %769 = vmatpush1.msra.mxu0 %v429
      %770 = vmatprep.subr.mxu0 %v554
      %771 = vmatpush2.msra.mxu0 %v553
      %772 = vmatprep.subr.mxu0 %v550
      %773 = vmatpush2.msra.mxu0 %v549
      %774 = vmatprep.subr.mxu0 %v546
      %775 = vmatpush2.msra.mxu0 %v545
      %776 = vmatprep.subr.mxu0 %v542
      %777 = vmatpush2.msra.mxu0 %v541
      %778 = vmatprep.subr.mxu0 %v538
      %779 = vmatpush2.msra.mxu0 %v537
      %780 = vmatprep.subr.mxu0 %v534
      %781 = vmatpush2.msra.mxu0 %v533
      %782 = vmatprep.subr.mxu0 %v530
      %783 = vmatpush2.msra.mxu0 %v529
      %784 = vmatprep.subr.mxu0 %v526
      %785 = vmatpush2.msra.mxu0 %v525
      %786 = vmatprep.subr.mxu0 %v522
      %787 = vmatpush2.msra.mxu0 %v521
      %788 = vmatprep.subr.mxu0 %v518
      %789 = vmatpush2.msra.mxu0 %v517
      %790 = vmatprep.subr.mxu0 %v514
      %791 = vmatpush2.msra.mxu0 %v513
      %792 = vmatprep.subr.mxu0 %v510
      %793 = vmatpush2.msra.mxu0 %v509
      %794 = vmatprep.subr.mxu0 %v506
      %795 = vmatpush2.msra.mxu0 %v505
      %796 = vmatprep.subr.mxu0 %v502
      %797 = vmatpush2.msra.mxu0 %v501
      %798 = vmatprep.subr.mxu0 %v498
      %799 = vmatpush2.msra.mxu0 %v497
      %800 = vmatprep.subr.mxu0 %v494
      %801 = vmatpush2.msra.mxu0 %v493
      %802 = vmatprep.mubr.f32.mxu0 %v396
      %803 = vmatmul.mubr.f32.gmra.mxu0 %v395
      %v804 = vpop.f32.mrf.mxu0
      %v805 = vadd.f32 %v568, %v804
      %v806 = vpop.f32.mrf.mxu0
      %v807 = vadd.f32 %v572, %v806
      %808 = vmatprep.mubr.f32.mxu0 %v398
      %809 = vmatmul.mubr.f32.gmra.mxu0 %v397
      %v810 = vpop.f32.mrf.mxu0
      %v811 = vadd.f32 %v568, %v810
      %v812 = vpop.f32.mrf.mxu0
      %v813 = vadd.f32 %v572, %v812
      %814 = vmatprep.mubr.f32.mxu0 %v400
      %815 = vmatmul.mubr.f32.gmra.mxu0 %v399
      %v816 = vpop.f32.mrf.mxu0
      %v817 = vadd.f32 %v568, %v816
      %v818 = vpop.f32.mrf.mxu0
      %v819 = vadd.f32 %v572, %v818
      %820 = vmatprep.mubr.f32.mxu0 %v402
      %821 = vmatmul.mubr.f32.gmra.mxu0 %v401
      %v822 = vpop.f32.mrf.mxu0
      %v823 = vadd.f32 %v568, %v822
      %v824 = vpop.f32.mrf.mxu0
      %v825 = vadd.f32 %v572, %v824
      %826 = vmatprep.mubr.f32.mxu0 %v404
      %827 = vmatmul.mubr.f32.gmra.mxu0 %v403
      %v828 = vpop.f32.mrf.mxu0
      %v829 = vadd.f32 %v568, %v828
      %v830 = vpop.f32.mrf.mxu0
      %v831 = vadd.f32 %v572, %v830
      %832 = vmatprep.mubr.f32.mxu0 %v406
      %833 = vmatmul.mubr.f32.gmra.mxu0 %v405
      %v834 = vpop.f32.mrf.mxu0
      %v835 = vadd.f32 %v568, %v834
      %v836 = vpop.f32.mrf.mxu0
      %v837 = vadd.f32 %v572, %v836
      %838 = vmatprep.mubr.f32.mxu0 %v408
      %839 = vmatmul.mubr.f32.gmra.mxu0 %v407
      %v840 = vpop.f32.mrf.mxu0
      %v841 = vadd.f32 %v568, %v840
      %v842 = vpop.f32.mrf.mxu0
      %v843 = vadd.f32 %v572, %v842
      %844 = vmatprep.mubr.f32.mxu0 %v410
      %845 = vmatmul.mubr.f32.gmra.mxu0 %v409
      %v846 = vpop.f32.mrf.mxu0
      %v847 = vadd.f32 %v568, %v846
      %v848 = vpop.f32.mrf.mxu0
      %v849 = vadd.f32 %v572, %v848
      %850 = vmatprep.mubr.f32.mxu0 %v412
      %851 = vmatmul.mubr.f32.gmra.mxu0 %v411
      %v852 = vpop.f32.mrf.mxu0
      %v853 = vadd.f32 %v568, %v852
      %v854 = vpop.f32.mrf.mxu0
      %v855 = vadd.f32 %v572, %v854
      %856 = vmatprep.mubr.f32.mxu0 %v414
      %857 = vmatmul.mubr.f32.gmra.mxu0 %v413
      %v858 = vpop.f32.mrf.mxu0
      %v859 = vadd.f32 %v568, %v858
      %v860 = vpop.f32.mrf.mxu0
      %v861 = vadd.f32 %v572, %v860
      %862 = vmatprep.mubr.f32.mxu0 %v416
      %863 = vmatmul.mubr.f32.gmra.mxu0 %v415
      %v864 = vpop.f32.mrf.mxu0
      %v865 = vadd.f32 %v568, %v864
      %v866 = vpop.f32.mrf.mxu0
      %v867 = vadd.f32 %v572, %v866
      %868 = vmatprep.mubr.f32.mxu0 %v418
      %869 = vmatmul.mubr.f32.gmra.mxu0 %v417
      %v870 = vpop.f32.mrf.mxu0
      %v871 = vadd.f32 %v568, %v870
      %v872 = vpop.f32.mrf.mxu0
      %v873 = vadd.f32 %v572, %v872
      %874 = vmatprep.mubr.f32.mxu0 %v420
      %875 = vmatmul.mubr.f32.gmra.mxu0 %v419
      %v876 = vpop.f32.mrf.mxu0
      %v877 = vadd.f32 %v568, %v876
      %v878 = vpop.f32.mrf.mxu0
      %v879 = vadd.f32 %v572, %v878
      %880 = vmatprep.mubr.f32.mxu0 %v422
      %881 = vmatmul.mubr.f32.gmra.mxu0 %v421
      %v882 = vpop.f32.mrf.mxu0
      %v883 = vadd.f32 %v568, %v882
      %v884 = vpop.f32.mrf.mxu0
      %v885 = vadd.f32 %v572, %v884
      %886 = vmatprep.mubr.f32.mxu0 %v424
      %887 = vmatmul.mubr.f32.gmra.mxu0 %v423
      %v888 = vpop.f32.mrf.mxu0
      %v889 = vadd.f32 %v568, %v888
      %v890 = vpop.f32.mrf.mxu0
      %v891 = vadd.f32 %v572, %v890
      %892 = vmatprep.mubr.f32.mxu0 %v426
      %893 = vmatmul.mubr.f32.gmra.mxu0 %v425
      %v894 = vpop.f32.mrf.mxu0
      %v895 = vadd.f32 %v568, %v894
      %v896 = vpop.f32.mrf.mxu0
      %v897 = vadd.f32 %v572, %v896
      %898 = vdwg.mxu0
      %v899 = vmax.f32 %v644, 0.0
      %v900 = vmax.f32 %v646, 0.0
      %v901 = vmax.f32 %v805, 0.0
      %v902 = vmax.f32 %v807, 0.0
      %v903 = vmax.f32 %v650, 0.0
      %v904 = vmax.f32 %v652, 0.0
      %v905 = vmax.f32 %v811, 0.0
      %v906 = vmax.f32 %v813, 0.0
      %v907 = vmax.f32 %v656, 0.0
      %v908 = vmax.f32 %v658, 0.0
      %v909 = vmax.f32 %v817, 0.0
      %v910 = vmax.f32 %v819, 0.0
      %v911 = vmax.f32 %v662, 0.0
      %v912 = vmax.f32 %v664, 0.0
      %v913 = vmax.f32 %v823, 0.0
      %v914 = vmax.f32 %v825, 0.0
      %v915 = vmax.f32 %v668, 0.0
      %v916 = vmax.f32 %v670, 0.0
      %v917 = vmax.f32 %v829, 0.0
      %v918 = vmax.f32 %v831, 0.0
      %v919 = vmax.f32 %v674, 0.0
      %v920 = vmax.f32 %v676, 0.0
      %v921 = vmax.f32 %v835, 0.0
      %v922 = vmax.f32 %v837, 0.0
      %v923 = vmax.f32 %v680, 0.0
      %v924 = vmax.f32 %v682, 0.0
      %v925 = vmax.f32 %v841, 0.0
      %v926 = vmax.f32 %v843, 0.0
      %v927 = vmax.f32 %v686, 0.0
      %v928 = vmax.f32 %v688, 0.0
      %v929 = vmax.f32 %v847, 0.0
      %v930 = vmax.f32 %v849, 0.0
      %v931 = vmax.f32 %v692, 0.0
      %v932 = vmax.f32 %v694, 0.0
      %v933 = vmax.f32 %v853, 0.0
      %v934 = vmax.f32 %v855, 0.0
      %v935 = vmax.f32 %v698, 0.0
      %v936 = vmax.f32 %v700, 0.0
      %v937 = vmax.f32 %v859, 0.0
      %v938 = vmax.f32 %v861, 0.0
      %v939 = vmax.f32 %v704, 0.0
      %v940 = vmax.f32 %v706, 0.0
      %v941 = vmax.f32 %v865, 0.0
      %v942 = vmax.f32 %v867, 0.0
      %v943 = vmax.f32 %v710, 0.0
      %v944 = vmax.f32 %v712, 0.0
      %v945 = vmax.f32 %v871, 0.0
      %v946 = vmax.f32 %v873, 0.0
      %v947 = vmax.f32 %v716, 0.0
      %v948 = vmax.f32 %v718, 0.0
      %v949 = vmax.f32 %v877, 0.0
      %v950 = vmax.f32 %v879, 0.0
      %v951 = vmax.f32 %v722, 0.0
      %v952 = vmax.f32 %v724, 0.0
      %v953 = vmax.f32 %v883, 0.0
      %v954 = vmax.f32 %v885, 0.0
      %v955 = vmax.f32 %v728, 0.0
      %v956 = vmax.f32 %v730, 0.0
      %v957 = vmax.f32 %v889, 0.0
      %v958 = vmax.f32 %v891, 0.0
      %v959 = vmax.f32 %v734, 0.0
      %v960 = vmax.f32 %v736, 0.0
      %v961 = vmax.f32 %v895, 0.0
      %v962 = vmax.f32 %v897, 0.0
      %v963 = vld [vmem:[%s3] sm:$0xff]
      %v964 = vld [vmem:[%s3 + $0x8] sm:$0xff]
      %v965 = vld [vmem:[%s3 + $0x10] sm:$0xff]
      %v966 = vld [vmem:[%s3 + $0x18] sm:$0xff]
      %v967 = vld [vmem:[%s3 + $0x20] sm:$0xff]
      %v968 = vld [vmem:[%s3 + $0x28] sm:$0xff]
      %v969 = vld [vmem:[%s3 + $0x30] sm:$0xff]
      %v970 = vld [vmem:[%s3 + $0x38] sm:$0xff]
      %v971 = vld [vmem:[%s3 + $0x40] sm:$0xff]
      %v972 = vld [vmem:[%s3 + $0x48] sm:$0xff]
      %v973 = vld [vmem:[%s3 + $0x50] sm:$0xff]
      %v974 = vld [vmem:[%s3 + $0x58] sm:$0xff]
      %v975 = vld [vmem:[%s3 + $0x60] sm:$0xff]
      %v976 = vld [vmem:[%s3 + $0x68] sm:$0xff]
      %v977 = vld [vmem:[%s3 + $0x70] sm:$0xff]
      %v978 = vld [vmem:[%s3 + $0x78] sm:$0xff]
      %v979 = vld [vmem:[%s3 + $0x80] sm:$0xff]
      %v980 = vld [vmem:[%s3 + $0x88] sm:$0xff]
      %v981 = vld [vmem:[%s3 + $0x90] sm:$0xff]
      %v982 = vld [vmem:[%s3 + $0x98] sm:$0xff]
      %v983 = vld [vmem:[%s3 + $0xa0] sm:$0xff]
      %v984 = vld [vmem:[%s3 + $0xa8] sm:$0xff]
      %v985 = vld [vmem:[%s3 + $0xb0] sm:$0xff]
      %v986 = vld [vmem:[%s3 + $0xb8] sm:$0xff]
      %v987 = vld [vmem:[%s3 + $0xc0] sm:$0xff]
      %v988 = vld [vmem:[%s3 + $0xc8] sm:$0xff]
      %v989 = vld [vmem:[%s3 + $0xd0] sm:$0xff]
      %v990 = vld [vmem:[%s3 + $0xd8] sm:$0xff]
      %v991 = vld [vmem:[%s3 + $0xe0] sm:$0xff]
      %v992 = vld [vmem:[%s3 + $0xe8] sm:$0xff]
      %v993 = vld [vmem:[%s3 + $0xf0] sm:$0xff]
      %v994 = vld [vmem:[%s3 + $0xf8] sm:$0xff]
      %v995 = vld [vmem:[%s3 + $0x100] sm:$0xff]
      %v996 = vld [vmem:[%s3 + $0x108] sm:$0xff]
      %v997 = vld [vmem:[%s3 + $0x110] sm:$0xff]
      %v998 = vld [vmem:[%s3 + $0x118] sm:$0xff]
      %v999 = vld [vmem:[%s3 + $0x120] sm:$0xff]
      %v1000 = vld [vmem:[%s3 + $0x128] sm:$0xff]
      %v1001 = vld [vmem:[%s3 + $0x130] sm:$0xff]
      %v1002 = vld [vmem:[%s3 + $0x138] sm:$0xff]
      %v1003 = vld [vmem:[%s3 + $0x140] sm:$0xff]
      %v1004 = vld [vmem:[%s3 + $0x148] sm:$0xff]
      %v1005 = vld [vmem:[%s3 + $0x150] sm:$0xff]
      %v1006 = vld [vmem:[%s3 + $0x158] sm:$0xff]
      %v1007 = vld [vmem:[%s3 + $0x160] sm:$0xff]
      %v1008 = vld [vmem:[%s3 + $0x168] sm:$0xff]
      %v1009 = vld [vmem:[%s3 + $0x170] sm:$0xff]
      %v1010 = vld [vmem:[%s3 + $0x178] sm:$0xff]
      %v1011 = vld [vmem:[%s3 + $0x180] sm:$0xff]
      %v1012 = vld [vmem:[%s3 + $0x188] sm:$0xff]
      %v1013 = vld [vmem:[%s3 + $0x190] sm:$0xff]
      %v1014 = vld [vmem:[%s3 + $0x198] sm:$0xff]
      %v1015 = vld [vmem:[%s3 + $0x1a0] sm:$0xff]
      %v1016 = vld [vmem:[%s3 + $0x1a8] sm:$0xff]
      %v1017 = vld [vmem:[%s3 + $0x1b0] sm:$0xff]
      %v1018 = vld [vmem:[%s3 + $0x1b8] sm:$0xff]
      %v1019 = vld [vmem:[%s3 + $0x1c0] sm:$0xff]
      %v1020 = vld [vmem:[%s3 + $0x1c8] sm:$0xff]
      %v1021 = vld [vmem:[%s3 + $0x1d0] sm:$0xff]
      %v1022 = vld [vmem:[%s3 + $0x1d8] sm:$0xff]
      %v1023 = vld [vmem:[%s3 + $0x1e0] sm:$0xff]
      %v1024 = vld [vmem:[%s3 + $0x1e8] sm:$0xff]
      %v1025 = vld [vmem:[%s3 + $0x1f0] sm:$0xff]
      %v1026 = vld [vmem:[%s3 + $0x1f8] sm:$0xff]
      %v1027 = vld [vmem:[%s3 + $0x200] sm:$0xff]
      %v1028 = vld [vmem:[%s3 + $0x208] sm:$0xff]
      %v1029 = vld [vmem:[%s3 + $0x210] sm:$0xff]
      %v1030 = vld [vmem:[%s3 + $0x218] sm:$0xff]
      %v1031 = vld [vmem:[%s3 + $0x220] sm:$0xff]
      %v1032 = vld [vmem:[%s3 + $0x228] sm:$0xff]
      %v1033 = vld [vmem:[%s3 + $0x230] sm:$0xff]
      %v1034 = vld [vmem:[%s3 + $0x238] sm:$0xff]
      %v1035 = vld [vmem:[%s3 + $0x240] sm:$0xff]
      %v1036 = vld [vmem:[%s3 + $0x248] sm:$0xff]
      %v1037 = vld [vmem:[%s3 + $0x250] sm:$0xff]
      %v1038 = vld [vmem:[%s3 + $0x258] sm:$0xff]
      %v1039 = vld [vmem:[%s3 + $0x260] sm:$0xff]
      %v1040 = vld [vmem:[%s3 + $0x268] sm:$0xff]
      %v1041 = vld [vmem:[%s3 + $0x270] sm:$0xff]
      %v1042 = vld [vmem:[%s3 + $0x278] sm:$0xff]
      %v1043 = vld [vmem:[%s3 + $0x280] sm:$0xff]
      %v1044 = vld [vmem:[%s3 + $0x288] sm:$0xff]
      %v1045 = vld [vmem:[%s3 + $0x290] sm:$0xff]
      %v1046 = vld [vmem:[%s3 + $0x298] sm:$0xff]
      %v1047 = vld [vmem:[%s3 + $0x2a0] sm:$0xff]
      %v1048 = vld [vmem:[%s3 + $0x2a8] sm:$0xff]
      %v1049 = vld [vmem:[%s3 + $0x2b0] sm:$0xff]
      %v1050 = vld [vmem:[%s3 + $0x2b8] sm:$0xff]
      %v1051 = vld [vmem:[%s3 + $0x2c0] sm:$0xff]
      %v1052 = vld [vmem:[%s3 + $0x2c8] sm:$0xff]
      %v1053 = vld [vmem:[%s3 + $0x2d0] sm:$0xff]
      %v1054 = vld [vmem:[%s3 + $0x2d8] sm:$0xff]
      %v1055 = vld [vmem:[%s3 + $0x2e0] sm:$0xff]
      %v1056 = vld [vmem:[%s3 + $0x2e8] sm:$0xff]
      %v1057 = vld [vmem:[%s3 + $0x2f0] sm:$0xff]
      %v1058 = vld [vmem:[%s3 + $0x2f8] sm:$0xff]
      %v1059 = vld [vmem:[%s3 + $0x300] sm:$0xff]
      %v1060 = vld [vmem:[%s3 + $0x308] sm:$0xff]
      %v1061 = vld [vmem:[%s3 + $0x310] sm:$0xff]
      %v1062 = vld [vmem:[%s3 + $0x318] sm:$0xff]
      %v1063 = vld [vmem:[%s3 + $0x320] sm:$0xff]
      %v1064 = vld [vmem:[%s3 + $0x328] sm:$0xff]
      %v1065 = vld [vmem:[%s3 + $0x330] sm:$0xff]
      %v1066 = vld [vmem:[%s3 + $0x338] sm:$0xff]
      %v1067 = vld [vmem:[%s3 + $0x340] sm:$0xff]
      %v1068 = vld [vmem:[%s3 + $0x348] sm:$0xff]
      %v1069 = vld [vmem:[%s3 + $0x350] sm:$0xff]
      %v1070 = vld [vmem:[%s3 + $0x358] sm:$0xff]
      %v1071 = vld [vmem:[%s3 + $0x360] sm:$0xff]
      %v1072 = vld [vmem:[%s3 + $0x368] sm:$0xff]
      %v1073 = vld [vmem:[%s3 + $0x370] sm:$0xff]
      %v1074 = vld [vmem:[%s3 + $0x378] sm:$0xff]
      %v1075 = vld [vmem:[%s3 + $0x380] sm:$0xff]
      %v1076 = vld [vmem:[%s3 + $0x388] sm:$0xff]
      %v1077 = vld [vmem:[%s3 + $0x390] sm:$0xff]
      %v1078 = vld [vmem:[%s3 + $0x398] sm:$0xff]
      %v1079 = vld [vmem:[%s3 + $0x3a0] sm:$0xff]
      %v1080 = vld [vmem:[%s3 + $0x3a8] sm:$0xff]
      %v1081 = vld [vmem:[%s3 + $0x3b0] sm:$0xff]
      %v1082 = vld [vmem:[%s3 + $0x3b8] sm:$0xff]
      %v1083 = vld [vmem:[%s3 + $0x3c0] sm:$0xff]
      %v1084 = vld [vmem:[%s3 + $0x3c8] sm:$0xff]
      %v1085 = vld [vmem:[%s3 + $0x3d0] sm:$0xff]
      %v1086 = vld [vmem:[%s3 + $0x3d8] sm:$0xff]
      %v1087 = vld [vmem:[%s3 + $0x3e0] sm:$0xff]
      %v1088 = vld [vmem:[%s3 + $0x3e8] sm:$0xff]
      %v1089 = vld [vmem:[%s3 + $0x3f0] sm:$0xff]
      %v1090 = vld [vmem:[%s3 + $0x3f8] sm:$0xff]
      %v1091 = vld [vmem:[%s4] sm:$0x3]
      %v1093 = vlaneseq
      %v1094 = vshrl.u32 %v1093, 7
      %v1095 = vsub.s32 0, %v1094
      %v1096 = vrot.slane %v1091, %v1095
      %v1097 = vlaneseq
      %v1098 = vshrl.u32 %v1097, 7
      %v1099 = vsub.s32 1, %v1098
      %v1100 = vrot.slane %v1091, %v1099
      %1103 = vmatprep.subr.mxu0 %v994
      %1104 = vmatpush1.msra.mxu0 %v993
      %1105 = vmatprep.subr.mxu0 %v992
      %1106 = vmatpush1.msra.mxu0 %v991
      %1107 = vmatprep.subr.mxu0 %v990
      %1108 = vmatpush1.msra.mxu0 %v989
      %1109 = vmatprep.subr.mxu0 %v988
      %1110 = vmatpush1.msra.mxu0 %v987
      %1111 = vmatprep.subr.mxu0 %v986
      %1112 = vmatpush1.msra.mxu0 %v985
      %1113 = vmatprep.subr.mxu0 %v984
      %1114 = vmatpush1.msra.mxu0 %v983
      %1115 = vmatprep.subr.mxu0 %v982
      %1116 = vmatpush1.msra.mxu0 %v981
      %1117 = vmatprep.subr.mxu0 %v980
      %1118 = vmatpush1.msra.mxu0 %v979
      %1119 = vmatprep.subr.mxu0 %v978
      %1120 = vmatpush1.msra.mxu0 %v977
      %1121 = vmatprep.subr.mxu0 %v976
      %1122 = vmatpush1.msra.mxu0 %v975
      %1123 = vmatprep.subr.mxu0 %v974
      %1124 = vmatpush1.msra.mxu0 %v973
      %1125 = vmatprep.subr.mxu0 %v972
      %1126 = vmatpush1.msra.mxu0 %v971
      %1127 = vmatprep.subr.mxu0 %v970
      %1128 = vmatpush1.msra.mxu0 %v969
      %1129 = vmatprep.subr.mxu0 %v968
      %1130 = vmatpush1.msra.mxu0 %v967
      %1131 = vmatprep.subr.mxu0 %v966
      %1132 = vmatpush1.msra.mxu0 %v965
      %1133 = vmatprep.subr.mxu0 %v964
      %1134 = vmatpush1.msra.mxu0 %v963
      %1135 = vmatprep.subr.mxu0 %v1026
      %1136 = vmatpush2.msra.mxu0 %v1025
      %1137 = vmatprep.subr.mxu0 %v1024
      %1138 = vmatpush2.msra.mxu0 %v1023
      %1139 = vmatprep.subr.mxu0 %v1022
      %1140 = vmatpush2.msra.mxu0 %v1021
      %1141 = vmatprep.subr.mxu0 %v1020
      %1142 = vmatpush2.msra.mxu0 %v1019
      %1143 = vmatprep.subr.mxu0 %v1018
      %1144 = vmatpush2.msra.mxu0 %v1017
      %1145 = vmatprep.subr.mxu0 %v1016
      %1146 = vmatpush2.msra.mxu0 %v1015
      %1147 = vmatprep.subr.mxu0 %v1014
      %1148 = vmatpush2.msra.mxu0 %v1013
      %1149 = vmatprep.subr.mxu0 %v1012
      %1150 = vmatpush2.msra.mxu0 %v1011
      %1151 = vmatprep.subr.mxu0 %v1010
      %1152 = vmatpush2.msra.mxu0 %v1009
      %1153 = vmatprep.subr.mxu0 %v1008
      %1154 = vmatpush2.msra.mxu0 %v1007
      %1155 = vmatprep.subr.mxu0 %v1006
      %1156 = vmatpush2.msra.mxu0 %v1005
      %1157 = vmatprep.subr.mxu0 %v1004
      %1158 = vmatpush2.msra.mxu0 %v1003
      %1159 = vmatprep.subr.mxu0 %v1002
      %1160 = vmatpush2.msra.mxu0 %v1001
      %1161 = vmatprep.subr.mxu0 %v1000
      %1162 = vmatpush2.msra.mxu0 %v999
      %1163 = vmatprep.subr.mxu0 %v998
      %1164 = vmatpush2.msra.mxu0 %v997
      %1165 = vmatprep.subr.mxu0 %v996
      %1166 = vmatpush2.msra.mxu0 %v995
      %1167 = vmatprep.mubr.f32.mxu0 %v900
      %1168 = vmatmul.mubr.f32.gmra.mxu0 %v899
      %v1169 = vpop.f32.mrf.mxu0
      %v1170 = vadd.f32 %v1096, %v1169
      %v1171 = vpop.f32.mrf.mxu0
      %v1172 = vadd.f32 %v1100, %v1171
      %1173 = vmatprep.mubr.f32.mxu0 %v904
      %1174 = vmatmul.mubr.f32.gmra.mxu0 %v903
      %v1175 = vpop.f32.mrf.mxu0
      %v1176 = vadd.f32 %v1096, %v1175
      %v1177 = vpop.f32.mrf.mxu0
      %v1178 = vadd.f32 %v1100, %v1177
      %1179 = vmatprep.mubr.f32.mxu0 %v908
      %1180 = vmatmul.mubr.f32.gmra.mxu0 %v907
      %v1181 = vpop.f32.mrf.mxu0
      %v1182 = vadd.f32 %v1096, %v1181
      %v1183 = vpop.f32.mrf.mxu0
      %v1184 = vadd.f32 %v1100, %v1183
      %1185 = vmatprep.mubr.f32.mxu0 %v912
      %1186 = vmatmul.mubr.f32.gmra.mxu0 %v911
      %v1187 = vpop.f32.mrf.mxu0
      %v1188 = vadd.f32 %v1096, %v1187
      %v1189 = vpop.f32.mrf.mxu0
      %v1190 = vadd.f32 %v1100, %v1189
      %1191 = vmatprep.mubr.f32.mxu0 %v916
      %1192 = vmatmul.mubr.f32.gmra.mxu0 %v915
      %v1193 = vpop.f32.mrf.mxu0
      %v1194 = vadd.f32 %v1096, %v1193
      %v1195 = vpop.f32.mrf.mxu0
      %v1196 = vadd.f32 %v1100, %v1195
      %1197 = vmatprep.mubr.f32.mxu0 %v920
      %1198 = vmatmul.mubr.f32.gmra.mxu0 %v919
      %v1199 = vpop.f32.mrf.mxu0
      %v1200 = vadd.f32 %v1096, %v1199
      %v1201 = vpop.f32.mrf.mxu0
      %v1202 = vadd.f32 %v1100, %v1201
      %1203 = vmatprep.mubr.f32.mxu0 %v924
      %1204 = vmatmul.mubr.f32.gmra.mxu0 %v923
      %v1205 = vpop.f32.mrf.mxu0
      %v1206 = vadd.f32 %v1096, %v1205
      %v1207 = vpop.f32.mrf.mxu0
      %v1208 = vadd.f32 %v1100, %v1207
      %1209 = vmatprep.mubr.f32.mxu0 %v928
      %1210 = vmatmul.mubr.f32.gmra.mxu0 %v927
      %v1211 = vpop.f32.mrf.mxu0
      %v1212 = vadd.f32 %v1096, %v1211
      %v1213 = vpop.f32.mrf.mxu0
      %v1214 = vadd.f32 %v1100, %v1213
      %1215 = vmatprep.mubr.f32.mxu0 %v932
      %1216 = vmatmul.mubr.f32.gmra.mxu0 %v931
      %v1217 = vpop.f32.mrf.mxu0
      %v1218 = vadd.f32 %v1096, %v1217
      %v1219 = vpop.f32.mrf.mxu0
      %v1220 = vadd.f32 %v1100, %v1219
      %1221 = vmatprep.mubr.f32.mxu0 %v936
      %1222 = vmatmul.mubr.f32.gmra.mxu0 %v935
      %v1223 = vpop.f32.mrf.mxu0
      %v1224 = vadd.f32 %v1096, %v1223
      %v1225 = vpop.f32.mrf.mxu0
      %v1226 = vadd.f32 %v1100, %v1225
      %1227 = vmatprep.mubr.f32.mxu0 %v940
      %1228 = vmatmul.mubr.f32.gmra.mxu0 %v939
      %v1229 = vpop.f32.mrf.mxu0
      %v1230 = vadd.f32 %v1096, %v1229
      %v1231 = vpop.f32.mrf.mxu0
      %v1232 = vadd.f32 %v1100, %v1231
      %1233 = vmatprep.mubr.f32.mxu0 %v944
      %1234 = vmatmul.mubr.f32.gmra.mxu0 %v943
      %v1235 = vpop.f32.mrf.mxu0
      %v1236 = vadd.f32 %v1096, %v1235
      %v1237 = vpop.f32.mrf.mxu0
      %v1238 = vadd.f32 %v1100, %v1237
      %1239 = vmatprep.mubr.f32.mxu0 %v948
      %1240 = vmatmul.mubr.f32.gmra.mxu0 %v947
      %v1241 = vpop.f32.mrf.mxu0
      %v1242 = vadd.f32 %v1096, %v1241
      %v1243 = vpop.f32.mrf.mxu0
      %v1244 = vadd.f32 %v1100, %v1243
      %1245 = vmatprep.mubr.f32.mxu0 %v952
      %1246 = vmatmul.mubr.f32.gmra.mxu0 %v951
      %v1247 = vpop.f32.mrf.mxu0
      %v1248 = vadd.f32 %v1096, %v1247
      %v1249 = vpop.f32.mrf.mxu0
      %v1250 = vadd.f32 %v1100, %v1249
      %1251 = vmatprep.mubr.f32.mxu0 %v956
      %1252 = vmatmul.mubr.f32.gmra.mxu0 %v955
      %v1253 = vpop.f32.mrf.mxu0
      %v1254 = vadd.f32 %v1096, %v1253
      %v1255 = vpop.f32.mrf.mxu0
      %v1256 = vadd.f32 %v1100, %v1255
      %1257 = vmatprep.mubr.f32.mxu0 %v960
      %1258 = vmatmul.mubr.f32.gmra.mxu0 %v959
      %v1259 = vpop.f32.mrf.mxu0
      %v1260 = vadd.f32 %v1096, %v1259
      %v1261 = vpop.f32.mrf.mxu0
      %v1262 = vadd.f32 %v1100, %v1261
      %1263 = vdwg.mxu0
      %1264 = vmatprep.subr.mxu0 %v1058
      %1265 = vmatpush1.msra.mxu0 %v1057
      %1266 = vmatprep.subr.mxu0 %v1056
      %1267 = vmatpush1.msra.mxu0 %v1055
      %1268 = vmatprep.subr.mxu0 %v1054
      %1269 = vmatpush1.msra.mxu0 %v1053
      %1270 = vmatprep.subr.mxu0 %v1052
      %1271 = vmatpush1.msra.mxu0 %v1051
      %1272 = vmatprep.subr.mxu0 %v1050
      %1273 = vmatpush1.msra.mxu0 %v1049
      %1274 = vmatprep.subr.mxu0 %v1048
      %1275 = vmatpush1.msra.mxu0 %v1047
      %1276 = vmatprep.subr.mxu0 %v1046
      %1277 = vmatpush1.msra.mxu0 %v1045
      %1278 = vmatprep.subr.mxu0 %v1044
      %1279 = vmatpush1.msra.mxu0 %v1043
      %1280 = vmatprep.subr.mxu0 %v1042
      %1281 = vmatpush1.msra.mxu0 %v1041
      %1282 = vmatprep.subr.mxu0 %v1040
      %1283 = vmatpush1.msra.mxu0 %v1039
      %1284 = vmatprep.subr.mxu0 %v1038
      %1285 = vmatpush1.msra.mxu0 %v1037
      %1286 = vmatprep.subr.mxu0 %v1036
      %1287 = vmatpush1.msra.mxu0 %v1035
      %1288 = vmatprep.subr.mxu0 %v1034
      %1289 = vmatpush1.msra.mxu0 %v1033
      %1290 = vmatprep.subr.mxu0 %v1032
      %1291 = vmatpush1.msra.mxu0 %v1031
      %1292 = vmatprep.subr.mxu0 %v1030
      %1293 = vmatpush1.msra.mxu0 %v1029
      %1294 = vmatprep.subr.mxu0 %v1028
      %1295 = vmatpush1.msra.mxu0 %v1027
      %1296 = vmatprep.subr.mxu0 %v1090
      %1297 = vmatpush2.msra.mxu0 %v1089
      %1298 = vmatprep.subr.mxu0 %v1088
      %1299 = vmatpush2.msra.mxu0 %v1087
      %1300 = vmatprep.subr.mxu0 %v1086
      %1301 = vmatpush2.msra.mxu0 %v1085
      %1302 = vmatprep.subr.mxu0 %v1084
      %1303 = vmatpush2.msra.mxu0 %v1083
      %1304 = vmatprep.subr.mxu0 %v1082
      %1305 = vmatpush2.msra.mxu0 %v1081
      %1306 = vmatprep.subr.mxu0 %v1080
      %1307 = vmatpush2.msra.mxu0 %v1079
      %1308 = vmatprep.subr.mxu0 %v1078
      %1309 = vmatpush2.msra.mxu0 %v1077
      %1310 = vmatprep.subr.mxu0 %v1076
      %1311 = vmatpush2.msra.mxu0 %v1075
      %1312 = vmatprep.subr.mxu0 %v1074
      %1313 = vmatpush2.msra.mxu0 %v1073
      %1314 = vmatprep.subr.mxu0 %v1072
      %1315 = vmatpush2.msra.mxu0 %v1071
      %1316 = vmatprep.subr.mxu0 %v1070
      %1317 = vmatpush2.msra.mxu0 %v1069
      %1318 = vmatprep.subr.mxu0 %v1068
      %1319 = vmatpush2.msra.mxu0 %v1067
      %1320 = vmatprep.subr.mxu0 %v1066
      %1321 = vmatpush2.msra.mxu0 %v1065
      %1322 = vmatprep.subr.mxu0 %v1064
      %1323 = vmatpush2.msra.mxu0 %v1063
      %1324 = vmatprep.subr.mxu0 %v1062
      %1325 = vmatpush2.msra.mxu0 %v1061
      %1326 = vmatprep.subr.mxu0 %v1060
      %1327 = vmatpush2.msra.mxu0 %v1059
      %1328 = vmatprep.mubr.f32.mxu0 %v902
      %1329 = vmatmul.mubr.f32.gmra.mxu0 %v901
      %v1330 = vpop.f32.mrf.mxu0
      %v1331 = vadd.f32 %v1170, %v1330
      %v1332 = vpop.f32.mrf.mxu0
      %v1333 = vadd.f32 %v1172, %v1332
      %1334 = vmatprep.mubr.f32.mxu0 %v906
      %1335 = vmatmul.mubr.f32.gmra.mxu0 %v905
      %v1336 = vpop.f32.mrf.mxu0
      %v1337 = vadd.f32 %v1176, %v1336
      %v1338 = vpop.f32.mrf.mxu0
      %v1339 = vadd.f32 %v1178, %v1338
      %1340 = vmatprep.mubr.f32.mxu0 %v910
      %1341 = vmatmul.mubr.f32.gmra.mxu0 %v909
      %v1342 = vpop.f32.mrf.mxu0
      %v1343 = vadd.f32 %v1182, %v1342
      %v1344 = vpop.f32.mrf.mxu0
      %v1345 = vadd.f32 %v1184, %v1344
      %1346 = vmatprep.mubr.f32.mxu0 %v914
      %1347 = vmatmul.mubr.f32.gmra.mxu0 %v913
      %v1348 = vpop.f32.mrf.mxu0
      %v1349 = vadd.f32 %v1188, %v1348
      %v1350 = vpop.f32.mrf.mxu0
      %v1351 = vadd.f32 %v1190, %v1350
      %1352 = vmatprep.mubr.f32.mxu0 %v918
      %1353 = vmatmul.mubr.f32.gmra.mxu0 %v917
      %v1354 = vpop.f32.mrf.mxu0
      %v1355 = vadd.f32 %v1194, %v1354
      %v1356 = vpop.f32.mrf.mxu0
      %v1357 = vadd.f32 %v1196, %v1356
      %1358 = vmatprep.mubr.f32.mxu0 %v922
      %1359 = vmatmul.mubr.f32.gmra.mxu0 %v921
      %v1360 = vpop.f32.mrf.mxu0
      %v1361 = vadd.f32 %v1200, %v1360
      %v1362 = vpop.f32.mrf.mxu0
      %v1363 = vadd.f32 %v1202, %v1362
      %1364 = vmatprep.mubr.f32.mxu0 %v926
      %1365 = vmatmul.mubr.f32.gmra.mxu0 %v925
      %v1366 = vpop.f32.mrf.mxu0
      %v1367 = vadd.f32 %v1206, %v1366
      %v1368 = vpop.f32.mrf.mxu0
      %v1369 = vadd.f32 %v1208, %v1368
      %1370 = vmatprep.mubr.f32.mxu0 %v930
      %1371 = vmatmul.mubr.f32.gmra.mxu0 %v929
      %v1372 = vpop.f32.mrf.mxu0
      %v1373 = vadd.f32 %v1212, %v1372
      %v1374 = vpop.f32.mrf.mxu0
      %v1375 = vadd.f32 %v1214, %v1374
      %1376 = vmatprep.mubr.f32.mxu0 %v934
      %1377 = vmatmul.mubr.f32.gmra.mxu0 %v933
      %v1378 = vpop.f32.mrf.mxu0
      %v1379 = vadd.f32 %v1218, %v1378
      %v1380 = vpop.f32.mrf.mxu0
      %v1381 = vadd.f32 %v1220, %v1380
      %1382 = vmatprep.mubr.f32.mxu0 %v938
      %1383 = vmatmul.mubr.f32.gmra.mxu0 %v937
      %v1384 = vpop.f32.mrf.mxu0
      %v1385 = vadd.f32 %v1224, %v1384
      %v1386 = vpop.f32.mrf.mxu0
      %v1387 = vadd.f32 %v1226, %v1386
      %1388 = vmatprep.mubr.f32.mxu0 %v942
      %1389 = vmatmul.mubr.f32.gmra.mxu0 %v941
      %v1390 = vpop.f32.mrf.mxu0
      %v1391 = vadd.f32 %v1230, %v1390
      %v1392 = vpop.f32.mrf.mxu0
      %v1393 = vadd.f32 %v1232, %v1392
      %1394 = vmatprep.mubr.f32.mxu0 %v946
      %1395 = vmatmul.mubr.f32.gmra.mxu0 %v945
      %v1396 = vpop.f32.mrf.mxu0
      %v1397 = vadd.f32 %v1236, %v1396
      %v1398 = vpop.f32.mrf.mxu0
      %v1399 = vadd.f32 %v1238, %v1398
      %1400 = vmatprep.mubr.f32.mxu0 %v950
      %1401 = vmatmul.mubr.f32.gmra.mxu0 %v949
      %v1402 = vpop.f32.mrf.mxu0
      %v1403 = vadd.f32 %v1242, %v1402
      %v1404 = vpop.f32.mrf.mxu0
      %v1405 = vadd.f32 %v1244, %v1404
      %1406 = vmatprep.mubr.f32.mxu0 %v954
      %1407 = vmatmul.mubr.f32.gmra.mxu0 %v953
      %v1408 = vpop.f32.mrf.mxu0
      %v1409 = vadd.f32 %v1248, %v1408
      %v1410 = vpop.f32.mrf.mxu0
      %v1411 = vadd.f32 %v1250, %v1410
      %1412 = vmatprep.mubr.f32.mxu0 %v958
      %1413 = vmatmul.mubr.f32.gmra.mxu0 %v957
      %v1414 = vpop.f32.mrf.mxu0
      %v1415 = vadd.f32 %v1254, %v1414
      %v1416 = vpop.f32.mrf.mxu0
      %v1417 = vadd.f32 %v1256, %v1416
      %1418 = vmatprep.mubr.f32.mxu0 %v962
      %1419 = vmatmul.mubr.f32.gmra.mxu0 %v961
      %v1420 = vpop.f32.mrf.mxu0
      %v1421 = vadd.f32 %v1260, %v1420
      %v1422 = vpop.f32.mrf.mxu0
      %v1423 = vadd.f32 %v1262, %v1422
      %1424 = vdwg.mxu0
      %v1425 = vld [vmem:[%s370] sm:$0x3]
      %v1426 = vadd.f32 %v1331, %v1337
      %v1427 = vadd.f32 %v1426, %v1343
      %v1428 = vadd.f32 %v1427, %v1349
      %v1429 = vadd.f32 %v1428, %v1355
      %v1430 = vadd.f32 %v1429, %v1361
      %v1431 = vadd.f32 %v1430, %v1367
      %v1432 = vadd.f32 %v1431, %v1373
      %v1433 = vadd.f32 %v1432, %v1379
      %v1434 = vadd.f32 %v1433, %v1385
      %v1435 = vadd.f32 %v1434, %v1391
      %v1436 = vadd.f32 %v1435, %v1397
      %v1437 = vadd.f32 %v1436, %v1403
      %v1438 = vadd.f32 %v1437, %v1409
      %v1439 = vadd.f32 %v1438, %v1415
      %v1440 = vadd.f32 %v1439, %v1421
      %v1441 = vrot.slane %v1440, 4
      %v1442 = vadd.f32 %v1440, %v1441
      %v1443 = vrot.slane %v1442, 2
      %v1444 = vadd.f32 %v1442, %v1443
      %v1445 = vrot.slane %v1444, 1
      %v1446 = vadd.f32 %v1444, %v1445
      %v1447 = vadd.f32 %v1333, %v1339
      %v1448 = vadd.f32 %v1447, %v1345
      %v1449 = vadd.f32 %v1448, %v1351
      %v1450 = vadd.f32 %v1449, %v1357
      %v1451 = vadd.f32 %v1450, %v1363
      %v1452 = vadd.f32 %v1451, %v1369
      %v1453 = vadd.f32 %v1452, %v1375
      %v1454 = vadd.f32 %v1453, %v1381
      %v1455 = vadd.f32 %v1454, %v1387
      %v1456 = vadd.f32 %v1455, %v1393
      %v1457 = vadd.f32 %v1456, %v1399
      %v1458 = vadd.f32 %v1457, %v1405
      %v1459 = vadd.f32 %v1458, %v1411
      %v1460 = vadd.f32 %v1459, %v1417
      %v1461 = vadd.f32 %v1460, %v1423
      %v1462 = vrot.slane %v1461, 4
      %v1463 = vadd.f32 %v1461, %v1462
      %v1464 = vrot.slane %v1463, 2
      %v1465 = vadd.f32 %v1463, %v1464
      %v1466 = vrot.slane %v1465, 1
      %v1467 = vadd.f32 %v1465, %v1466
      %v1470 = vcombine.low %v1446, %v1467
      %v1472 = vunpack.c.l.s4 1966171168
      %v1473 = vunpack.c.0.s8 %v1472
      %v1474 = vlaneseq
      %v1475 = vshrl.u32 %v1474, 7
      %v1476 = vsub.s32 %v1473, %v1475
      %v1477 = vrot.slane %v1470, %v1476
      %v1479 = vunpack.c.l.s4 1966171168
      %v1480 = vunpack.c.0.s8 %v1479
      %v1481 = vlaneseq
      %v1482 = vshrl.u32 %v1481, 7
      %v1483 = vsub.s32 %v1480, %v1482
      %v1484 = vrot.slane %v1477, %v1483
      %v1486 = vadd.f32 %v1425, %v1484
      %v1487 = vlaneseq
      %vm1488 = vcmp.ge.s32.totalorder %v1487, 0
      %vm1489 = vcmp.lt.s32.totalorder %v1487, 256
      %vm1490 = vmand %vm1488, %vm1489
      %1491 = vst.msk [vmem:[%s370] sm:$0x3] %vm1490, %v1486
      %v1492 = vld [vmem:[%s374] sm:$0x3]
      %v1493 = vmul.f32 %v1331, %v1331
      %v1494 = vmul.f32 %v1333, %v1333
      %v1495 = vmul.f32 %v1337, %v1337
      %v1496 = vmul.f32 %v1339, %v1339
      %v1497 = vmul.f32 %v1343, %v1343
      %v1498 = vmul.f32 %v1345, %v1345
      %v1499 = vmul.f32 %v1349, %v1349
      %v1500 = vmul.f32 %v1351, %v1351
      %v1501 = vmul.f32 %v1355, %v1355
      %v1502 = vmul.f32 %v1357, %v1357
      %v1503 = vmul.f32 %v1361, %v1361
      %v1504 = vmul.f32 %v1363, %v1363
      %v1505 = vmul.f32 %v1367, %v1367
      %v1506 = vmul.f32 %v1369, %v1369
      %v1507 = vmul.f32 %v1373, %v1373
      %v1508 = vmul.f32 %v1375, %v1375
      %v1509 = vmul.f32 %v1379, %v1379
      %v1510 = vmul.f32 %v1381, %v1381
      %v1511 = vmul.f32 %v1385, %v1385
      %v1512 = vmul.f32 %v1387, %v1387
      %v1513 = vmul.f32 %v1391, %v1391
      %v1514 = vmul.f32 %v1393, %v1393
      %v1515 = vmul.f32 %v1397, %v1397
      %v1516 = vmul.f32 %v1399, %v1399
      %v1517 = vmul.f32 %v1403, %v1403
      %v1518 = vmul.f32 %v1405, %v1405
      %v1519 = vmul.f32 %v1409, %v1409
      %v1520 = vmul.f32 %v1411, %v1411
      %v1521 = vmul.f32 %v1415, %v1415
      %v1522 = vmul.f32 %v1417, %v1417
      %v1523 = vmul.f32 %v1421, %v1421
      %v1524 = vmul.f32 %v1423, %v1423
      %v1525 = vadd.f32 %v1493, %v1495
      %v1526 = vadd.f32 %v1525, %v1497
      %v1527 = vadd.f32 %v1526, %v1499
      %v1528 = vadd.f32 %v1527, %v1501
      %v1529 = vadd.f32 %v1528, %v1503
      %v1530 = vadd.f32 %v1529, %v1505
      %v1531 = vadd.f32 %v1530, %v1507
      %v1532 = vadd.f32 %v1531, %v1509
      %v1533 = vadd.f32 %v1532, %v1511
      %v1534 = vadd.f32 %v1533, %v1513
      %v1535 = vadd.f32 %v1534, %v1515
      %v1536 = vadd.f32 %v1535, %v1517
      %v1537 = vadd.f32 %v1536, %v1519
      %v1538 = vadd.f32 %v1537, %v1521
      %v1539 = vadd.f32 %v1538, %v1523
      %v1540 = vrot.slane %v1539, 4
      %v1541 = vadd.f32 %v1539, %v1540
      %v1542 = vrot.slane %v1541, 2
      %v1543 = vadd.f32 %v1541, %v1542
      %v1544 = vrot.slane %v1543, 1
      %v1545 = vadd.f32 %v1543, %v1544
      %v1546 = vadd.f32 %v1494, %v1496
      %v1547 = vadd.f32 %v1546, %v1498
      %v1548 = vadd.f32 %v1547, %v1500
      %v1549 = vadd.f32 %v1548, %v1502
      %v1550 = vadd.f32 %v1549, %v1504
      %v1551 = vadd.f32 %v1550, %v1506
      %v1552 = vadd.f32 %v1551, %v1508
      %v1553 = vadd.f32 %v1552, %v1510
      %v1554 = vadd.f32 %v1553, %v1512
      %v1555 = vadd.f32 %v1554, %v1514
      %v1556 = vadd.f32 %v1555, %v1516
      %v1557 = vadd.f32 %v1556, %v1518
      %v1558 = vadd.f32 %v1557, %v1520
      %v1559 = vadd.f32 %v1558, %v1522
      %v1560 = vadd.f32 %v1559, %v1524
      %v1561 = vrot.slane %v1560, 4
      %v1562 = vadd.f32 %v1560, %v1561
      %v1563 = vrot.slane %v1562, 2
      %v1564 = vadd.f32 %v1562, %v1563
      %v1565 = vrot.slane %v1564, 1
      %v1566 = vadd.f32 %v1564, %v1565
      %v1569 = vcombine.low %v1545, %v1566
      %v1571 = vunpack.c.l.s4 1966171168
      %v1572 = vunpack.c.0.s8 %v1571
      %v1573 = vlaneseq
      %v1574 = vshrl.u32 %v1573, 7
      %v1575 = vsub.s32 %v1572, %v1574
      %v1576 = vrot.slane %v1569, %v1575
      %v1578 = vunpack.c.l.s4 1966171168
      %v1579 = vunpack.c.0.s8 %v1578
      %v1580 = vlaneseq
      %v1581 = vshrl.u32 %v1580, 7
      %v1582 = vsub.s32 %v1579, %v1581
      %v1583 = vrot.slane %v1576, %v1582
      %v1585 = vadd.f32 %v1492, %v1583
      %1586 = vst.msk [vmem:[%s374] sm:$0x3] %vm1490, %v1585
      %v1587 = vld [vmem:[%s378] sm:$0x3]
      %v1588 = vmax.f32 %v1331, %v1343
      %v1589 = vmax.f32 %v1337, %v1349
      %v1590 = vmax.f32 %v1588, %v1355
      %v1591 = vmax.f32 %v1589, %v1361
      %v1592 = vmax.f32 %v1590, %v1367
      %v1593 = vmax.f32 %v1591, %v1373
      %v1594 = vmax.f32 %v1592, %v1379
      %v1595 = vmax.f32 %v1593, %v1385
      %v1596 = vmax.f32 %v1594, %v1391
      %v1597 = vmax.f32 %v1595, %v1397
      %v1598 = vmax.f32 %v1596, %v1403
      %v1599 = vmax.f32 %v1597, %v1409
      %v1600 = vmax.f32 %v1598, %v1415
      %v1601 = vmax.f32 %v1599, %v1421
      %v1602 = vmax.f32 %v1600, %v1601
      %v1603 = vrot.slane %v1602, 4
      %v1604 = vmax.f32 %v1602, %v1603
      %v1605 = vrot.slane %v1604, 2
      %v1606 = vmax.f32 %v1604, %v1605
      %v1607 = vrot.slane %v1606, 1
      %v1608 = vmax.f32 %v1606, %v1607
      %v1609 = vmax.f32 %v1333, %v1345
      %v1610 = vmax.f32 %v1339, %v1351
      %v1611 = vmax.f32 %v1609, %v1357
      %v1612 = vmax.f32 %v1610, %v1363
      %v1613 = vmax.f32 %v1611, %v1369
      %v1614 = vmax.f32 %v1612, %v1375
      %v1615 = vmax.f32 %v1613, %v1381
      %v1616 = vmax.f32 %v1614, %v1387
      %v1617 = vmax.f32 %v1615, %v1393
      %v1618 = vmax.f32 %v1616, %v1399
      %v1619 = vmax.f32 %v1617, %v1405
      %v1620 = vmax.f32 %v1618, %v1411
      %v1621 = vmax.f32 %v1619, %v1417
      %v1622 = vmax.f32 %v1620, %v1423
      %v1623 = vmax.f32 %v1621, %v1622
      %v1624 = vrot.slane %v1623, 4
      %v1625 = vmax.f32 %v1623, %v1624
      %v1626 = vrot.slane %v1625, 2
      %v1627 = vmax.f32 %v1625, %v1626
      %v1628 = vrot.slane %v1627, 1
      %v1629 = vmax.f32 %v1627, %v1628
      %v1632 = vcombine.low %v1608, %v1629
      %v1634 = vunpack.c.l.s4 1966171168
      %v1635 = vunpack.c.0.s8 %v1634
      %v1636 = vlaneseq
      %v1637 = vshrl.u32 %v1636, 7
      %v1638 = vsub.s32 %v1635, %v1637
      %v1639 = vrot.slane %v1632, %v1638
      %v1641 = vunpack.c.l.s4 1966171168
      %v1642 = vunpack.c.0.s8 %v1641
      %v1643 = vlaneseq
      %v1644 = vshrl.u32 %v1643, 7
      %v1645 = vsub.s32 %v1642, %v1644
      %v1646 = vrot.slane %v1639, %v1645
      %v1648 = vmax.f32 %v1587, %v1646
      %1649 = vst.msk [vmem:[%s378] sm:$0x3] %vm1490, %v1648
      %v1650 = vld [vmem:[%s382] sm:$0x3]
      %v1651 = vmin.f32 %v1331, %v1343
      %v1652 = vmin.f32 %v1337, %v1349
      %v1653 = vmin.f32 %v1651, %v1355
      %v1654 = vmin.f32 %v1652, %v1361
      %v1655 = vmin.f32 %v1653, %v1367
      %v1656 = vmin.f32 %v1654, %v1373
      %v1657 = vmin.f32 %v1655, %v1379
      %v1658 = vmin.f32 %v1656, %v1385
      %v1659 = vmin.f32 %v1657, %v1391
      %v1660 = vmin.f32 %v1658, %v1397
      %v1661 = vmin.f32 %v1659, %v1403
      %v1662 = vmin.f32 %v1660, %v1409
      %v1663 = vmin.f32 %v1661, %v1415
      %v1664 = vmin.f32 %v1662, %v1421
      %v1665 = vmin.f32 %v1663, %v1664
      %v1666 = vrot.slane %v1665, 4
      %v1667 = vmin.f32 %v1665, %v1666
      %v1668 = vrot.slane %v1667, 2
      %v1669 = vmin.f32 %v1667, %v1668
      %v1670 = vrot.slane %v1669, 1
      %v1671 = vmin.f32 %v1669, %v1670
      %v1672 = vmin.f32 %v1333, %v1345
      %v1673 = vmin.f32 %v1339, %v1351
      %v1674 = vmin.f32 %v1672, %v1357
      %v1675 = vmin.f32 %v1673, %v1363
      %v1676 = vmin.f32 %v1674, %v1369
      %v1677 = vmin.f32 %v1675, %v1375
      %v1678 = vmin.f32 %v1676, %v1381
      %v1679 = vmin.f32 %v1677, %v1387
      %v1680 = vmin.f32 %v1678, %v1393
      %v1681 = vmin.f32 %v1679, %v1399
      %v1682 = vmin.f32 %v1680, %v1405
      %v1683 = vmin.f32 %v1681, %v1411
      %v1684 = vmin.f32 %v1682, %v1417
      %v1685 = vmin.f32 %v1683, %v1423
      %v1686 = vmin.f32 %v1684, %v1685
      %v1687 = vrot.slane %v1686, 4
      %v1688 = vmin.f32 %v1686, %v1687
      %v1689 = vrot.slane %v1688, 2
      %v1690 = vmin.f32 %v1688, %v1689
      %v1691 = vrot.slane %v1690, 1
      %v1692 = vmin.f32 %v1690, %v1691
      %v1695 = vcombine.low %v1671, %v1692
      %v1697 = vunpack.c.l.s4 1966171168
      %v1698 = vunpack.c.0.s8 %v1697
      %v1699 = vlaneseq
      %v1700 = vshrl.u32 %v1699, 7
      %v1701 = vsub.s32 %v1698, %v1700
      %v1702 = vrot.slane %v1695, %v1701
      %v1704 = vunpack.c.l.s4 1966171168
      %v1705 = vunpack.c.0.s8 %v1704
      %v1706 = vlaneseq
      %v1707 = vshrl.u32 %v1706, 7
      %v1708 = vsub.s32 %v1705, %v1707
      %v1709 = vrot.slane %v1702, %v1708
      %v1711 = vmin.f32 %v1650, %v1709
      %1712 = vst.msk [vmem:[%s382] sm:$0x3] %vm1490, %v1711
      %p1713 = scmp.lt.s32.totalorder %s24, 1
      %s1714 = scalar_select %p1713, %s24, 1
      %s1715 = smul.addr %s1714, 2
      %s1716 = scalar_lea.vmem %s5, %s1715
      %p1717 = scmp.lt.s32.totalorder %s24, 1
      %s1718 = scalar_select %p1717, %s24, 1
      %s1719 = smul.addr %s1718, 2
      %s1720 = scalar_lea.vmem %s6, %s1719
      %p1721 = scmp.lt.s32.totalorder %s24, 1
      %s1722 = scalar_select %p1721, %s24, 1
      %s1723 = smul.addr %s1722, 2
      %s1724 = scalar_lea.vmem %s7, %s1723
      %p1725 = scmp.lt.s32.totalorder %s24, 1
      %s1726 = scalar_select %p1725, %s24, 1
      %s1727 = smul.addr %s1726, 2
      %s1728 = scalar_lea.vmem %s8, %s1727
      // Predicated region
      $region45: #{pcn_encoder.7} parent=39 // pred_check
        %p1729 = pneg %p167
      $region46: #{pcn_encoder.7} parent=39 // pred_check_branch
        %1731 = sbr.rel (%p1729) target = $region48
      $region47: #{pcn_encoder.7} parent=39 // pred_region
        _
      $region48: #{pcn_encoder.7} parent=39 // pred_fallthru
        _
      // Predicated region
      $region49: #{pcn_encoder.7} parent=39 // pred_check
        %p1732 = pneg %p193
      $region50: #{pcn_encoder.7} parent=39 // pred_check_branch
        %1734 = sbr.rel (%p1732) target = $region52
      $region51: #{pcn_encoder.7} parent=39 // pred_region
        _
      $region52: #{pcn_encoder.7} parent=39 // pred_fallthru
        _
      // Predicated region
      $region53: #{pcn_encoder.7} parent=39 // pred_check
        %p1735 = pneg %p219
      $region54: #{pcn_encoder.7} parent=39 // pred_check_branch
        %1737 = sbr.rel (%p1735) target = $region56
      $region55: #{pcn_encoder.7} parent=39 // pred_region
        _
      $region56: #{pcn_encoder.7} parent=39 // pred_fallthru
        _
      // Predicated region
      $region57: #{pcn_encoder.7} parent=39 // pred_check
        %p1738 = pneg %p245
      $region58: #{pcn_encoder.7} parent=39 // pred_check_branch
        %1740 = sbr.rel (%p1738) target = $region60
      $region59: #{pcn_encoder.7} parent=39 // pred_region
        _
      $region60: #{pcn_encoder.7} parent=39 // pred_fallthru
        _
    $region40: #{pcn_encoder.7} parent=5 // pred_fallthru
      _
    %p1741 = scmp.le.s32.totalorder 2, %s15
    // Predicated region
    $region61: #{pcn_encoder.7} parent=5 // pred_check
      %p1742 = pneg %p1741
    $region62: #{pcn_encoder.7} parent=5 // pred_check_branch
      %1744 = sbr.rel (%p1742) target = $region64
    $region63: #{pcn_encoder.7} parent=5 // pred_region
      %s1745 = ssub.s32 %s15, 2
      // Predicated region
      $region65: #{pcn_encoder.7} parent=63 // pred_check
        %p1746 = pneg %p173
      $region66: #{pcn_encoder.7} parent=63 // pred_check_branch
        %1748 = sbr.rel (%p1746) target = $region68
      $region67: #{pcn_encoder.7} parent=63 // pred_region
        %p1749 = scmp.lt.s32.totalorder %s26, 1
        %s1750 = scalar_select %p1749, %s26, 1
        %s1751 = smul.addr %s1750, 2
        %s1752 = scalar_lea.vmem %s5, %s1751
      $region68: #{pcn_encoder.7} parent=63 // pred_fallthru
        _
      // Predicated region
      $region69: #{pcn_encoder.7} parent=63 // pred_check
        %p1753 = pneg %p199
      $region70: #{pcn_encoder.7} parent=63 // pred_check_branch
        %1755 = sbr.rel (%p1753) target = $region72
      $region71: #{pcn_encoder.7} parent=63 // pred_region
        %p1756 = scmp.lt.s32.totalorder %s26, 1
        %s1757 = scalar_select %p1756, %s26, 1
        %s1758 = smul.addr %s1757, 2
        %s1759 = scalar_lea.vmem %s6, %s1758
      $region72: #{pcn_encoder.7} parent=63 // pred_fallthru
        _
      // Predicated region
      $region73: #{pcn_encoder.7} parent=63 // pred_check
        %p1760 = pneg %p225
      $region74: #{pcn_encoder.7} parent=63 // pred_check_branch
        %1762 = sbr.rel (%p1760) target = $region76
      $region75: #{pcn_encoder.7} parent=63 // pred_region
        %p1763 = scmp.lt.s32.totalorder %s26, 1
        %s1764 = scalar_select %p1763, %s26, 1
        %s1765 = smul.addr %s1764, 2
        %s1766 = scalar_lea.vmem %s7, %s1765
      $region76: #{pcn_encoder.7} parent=63 // pred_fallthru
        _
      // Predicated region
      $region77: #{pcn_encoder.7} parent=63 // pred_check
        %p1767 = pneg %p251
      $region78: #{pcn_encoder.7} parent=63 // pred_check_branch
        %1769 = sbr.rel (%p1767) target = $region80
      $region79: #{pcn_encoder.7} parent=63 // pred_region
        %p1770 = scmp.lt.s32.totalorder %s26, 1
        %s1771 = scalar_select %p1770, %s26, 1
        %s1772 = smul.addr %s1771, 2
        %s1773 = scalar_lea.vmem %s8, %s1772
      $region80: #{pcn_encoder.7} parent=63 // pred_fallthru
        _
    $region64: #{pcn_encoder.7} parent=5 // pred_fallthru
      _
  $region6: #{pcn_encoder.7} parent=0 // loop_footer
    %s19 = sadd.s32 1, %s15
  $region7: #{pcn_encoder.7} parent=0 // loop_footer_branch
    %14 = sbr.rel target = $region3
  $region8: #{pcn_encoder.7} parent=0 // loop_exit
    _

</llo_original>
